<compile_context>
chip_gen: v6e
topology: v6e:2x2x1
jax: 0.10.0
libtpu: 0.0.40
codegen_flags: <defaults>
</compile_context>

<pallas_src>
import jax
import jax.numpy as jnp
from jax.experimental import pallas as pl
from jax.experimental.pallas import tpu as pltpu

D_IN = 64 * 64 * 3          # 12288
D1, D2, D3, D_OUT = 120, 84, 32, 2          # logical sizes (PyTorch spec)
D1_P, D2_P, D3_P, D_OUT_P = 128, 128, 128, 128   # lane-dense padded sizes
NUM_TASKS = 6


def _mlp_kernel(x_ref, w1_ref, s1_ref, b1_ref, w2_ref, b2_ref,
                w3_ref, b3_ref, w4_ref, b4_ref, out_ref):
    t = pl.program_id(0)

    # ---- Layer 1: int8 W1 streamed from HBM, native bf16 MXU, f32 accum ----
    x = x_ref[0].astype(jnp.bfloat16)                  # (B, D_IN)
    w1 = w1_ref[0].astype(jnp.bfloat16)                # int8 -> bf16 is exact
    acc = jnp.dot(x, w1, preferred_element_type=jnp.float32)   # (B, 128)
    h = jnp.maximum(acc * s1_ref[t] + b1_ref[t], 0.0)  # per-column dequant + bias

    # ---- Layers 2-4: small VMEM-resident f32 weights (loaded once) ----
    h = jnp.maximum(
        jnp.dot(h, w2_ref[t], preferred_element_type=jnp.float32) + b2_ref[t], 0.0)
    h = jnp.maximum(
        jnp.dot(h, w3_ref[t], preferred_element_type=jnp.float32) + b3_ref[t], 0.0)
    out = jnp.dot(h, w4_ref[t], preferred_element_type=jnp.float32) + b4_ref[t]

    out_ref[0] = out.astype(out_ref.dtype)             # lane-dense (B, 128) store


def multi_mlp_forward(xs, p):
    """xs: (6, B, 12288) float32.  p: stacked (padded, int8-W1) params.
    Returns (6, B, 2) float32 logits."""
    T, B, d_in = xs.shape
    assert T == NUM_TASKS and d_in == D_IN

    def resident(arr):
        # Full-array block, constant index_map -> loaded once, stays in VMEM.
        return pl.BlockSpec(arr.shape, lambda t: (0, 0, 0))

    grid_spec = pltpu.PrefetchScalarGridSpec(
        num_scalar_prefetch=0,
        grid=(T,),
        in_specs=[
            pl.BlockSpec((1, B, D_IN), lambda t: (t, 0, 0)),      # x     f32  (streamed)
            pl.BlockSpec((1, D_IN, D1_P), lambda t: (t, 0, 0)),   # w1    int8 (streamed)
            resident(p["w1_scale"]),                              # (T,1,128) f32
            resident(p["b1"]),                                    # (T,1,128) f32
            resident(p["w2"]),                                    # (T,128,128) f32
            resident(p["b2"]),
            resident(p["w3"]),
            resident(p["b3"]),
            resident(p["w4"]),
            resident(p["b4"]),
        ],
        out_specs=pl.BlockSpec((1, B, D_OUT_P), lambda t: (t, 0, 0)),
    )

    args = (xs, p["w1"], p["w1_scale"], p["b1"], p["w2"], p["b2"],
            p["w3"], p["b3"], p["w4"], p["b4"])

    flops = 2 * T * B * (D_IN * D1_P + D1_P * D2_P + D2_P * D3_P + D3_P * D_OUT_P)
    bytes_accessed = sum(int(a.size) * a.dtype.itemsize for a in args)
    bytes_accessed += T * B * D_OUT_P * 4
    cost = pl.CostEstimate(flops=flops, transcendentals=0,
                           bytes_accessed=bytes_accessed)

    out = pl.pallas_call(
        _mlp_kernel,
        out_shape=jax.ShapeDtypeStruct((T, B, D_OUT_P), jnp.float32),
        grid_spec=grid_spec,
        compiler_params=pltpu.CompilerParams(
            dimension_semantics=("parallel",),   # 6 tasks split 3/3 on v7x megacore
            vmem_limit_bytes=32 << 20,
        ),
        cost_estimate=cost,
    )(*args)
    # TODO(synk): for large B on v7x (64 MiB VMEM), add a batch grid axis with a
    # constant w1 index_map so W1 stays resident per task.
    return out[:, :, :D_OUT]


def init_params(key):
    """Deterministic init of 6 stacked MLPs (PyTorch-style uniform bounds).

    Returns (kernel_params, f32_params):
      * kernel_params: zero-padded to lane-dense shapes, W1 quantized to int8
        with per-output-channel f32 scales.
      * f32_params: original unpadded f32 weights (true baseline reference)."""
    dims = [D_IN, D1, D2, D3, D_OUT]
    pads = [D_IN, D1_P, D2_P, D3_P, D_OUT_P]
    fp, kp = {}, {}
    keys = jax.random.split(key, 2 * (len(dims) - 1))
    for li in range(len(dims) - 1):
        fan_in, fan_out = dims[li], dims[li + 1]
        bound = 1.0 / (fan_in ** 0.5)
        w = jax.random.uniform(keys[2 * li], (NUM_TASKS, fan_in, fan_out),
                               jnp.float32, -bound, bound)
        b = jax.random.uniform(keys[2 * li + 1], (NUM_TASKS, 1, fan_out),
                               jnp.float32, -bound, bound)
        fp[f"w{li + 1}"], fp[f"b{li + 1}"] = w, b
        # Zero-pad to lane-dense shapes (exact: padded rows/cols stay zero).
        kp[f"w{li + 1}"] = jnp.pad(
            w, ((0, 0), (0, pads[li] - fan_in), (0, pads[li + 1] - fan_out)))
        kp[f"b{li + 1}"] = jnp.pad(
            b, ((0, 0), (0, 0), (0, pads[li + 1] - fan_out)))

    # Per-output-channel symmetric int8 quantization of W1 (dominant HBM bytes).
    w1 = kp["w1"]
    absmax = jnp.max(jnp.abs(w1), axis=1, keepdims=True)        # (T, 1, 128)
    scale = jnp.where(absmax > 0, absmax / 127.0, 1.0)
    kp["w1"] = jnp.clip(jnp.round(w1 / scale), -127, 127).astype(jnp.int8)
    kp["w1_scale"] = scale
    return kp, fp


def reference_forward(xs, p):
    """Pure-JAX reference following the exact kernel numerics (int8/bf16 layer 1)."""
    outs = []
    for t in range(NUM_TASKS):
        x = xs[t].astype(jnp.bfloat16)
        w1 = p["w1"][t].astype(jnp.bfloat16)
        h = jnp.dot(x, w1, preferred_element_type=jnp.float32)
        h = jnp.maximum(h * p["w1_scale"][t] + p["b1"][t], 0.0)
        h = jnp.maximum(jnp.dot(h, p["w2"][t],
                                preferred_element_type=jnp.float32) + p["b2"][t], 0.0)
        h = jnp.maximum(jnp.dot(h, p["w3"][t],
                                preferred_element_type=jnp.float32) + p["b3"][t], 0.0)
        outs.append(jnp.dot(h, p["w4"][t],
                            preferred_element_type=jnp.float32) + p["b4"][t])
    return jnp.stack(outs, axis=0)[:, :, :D_OUT]


def baseline_forward_f32(xs, fp):
    """Unquantized f32 baseline (semantics of the original PyTorch module)."""
    outs = []
    for t in range(NUM_TASKS):
        h = xs[t]
        for li in range(1, 5):
            h = jnp.dot(h, fp[f"w{li}"][t],
                        preferred_element_type=jnp.float32) + fp[f"b{li}"][t]
            if li < 4:
                h = jnp.maximum(h, 0.0)
        outs.append(h)
    return jnp.stack(outs, axis=0)


if __name__ == "__main__":
    key = jax.random.PRNGKey(0)
    pkey, xkey = jax.random.split(key)
    kparams, fparams = init_params(pkey)

    B = 2
    # NCHW inputs, one per task (skin type), as in the PyTorch module.
    xkeys = jax.random.split(xkey, NUM_TASKS)
    imgs = [jax.random.normal(k, (B, 3, 64, 64), jnp.float32) for k in xkeys]
    # torch.flatten(x, 1) equivalent (C, H, W order preserved).
    xs = jnp.stack([img.reshape(B, -1) for img in imgs], axis=0)   # (6, B, 12288)

    out = jax.block_until_ready(multi_mlp_forward(xs, kparams))
    assert out.shape == (NUM_TASKS, B, D_OUT)

    # Bit-for-bit-level check against a reference using the same quantized params.
    ref_q = reference_forward(xs, kparams)
    assert jnp.allclose(out, ref_q, atol=2e-3, rtol=1e-3), "mismatch vs quantized reference"

    # Accuracy check against the true (unquantized, f32) module semantics.
    ref_f32 = baseline_forward_f32(xs, fparams)
    assert jnp.allclose(out, ref_f32, atol=5e-2), "int8/bf16 drift vs f32 baseline too large"

    print("KERNEL_OK")
</pallas_src>

<mosaic_0001>
module attributes {stable_mosaic.version = 11 : i64} {
  func.func @_mlp_kernel(%arg0: i32, %arg1: memref<1x2x12288xf32, #tpu.memory_space<vmem>>, %arg2: memref<1x12288x128xi8, #tpu.memory_space<vmem>>, %arg3: memref<6x1x128xf32, #tpu.memory_space<vmem>>, %arg4: memref<6x1x128xf32, #tpu.memory_space<vmem>>, %arg5: memref<6x128x128xf32, #tpu.memory_space<vmem>>, %arg6: memref<6x1x128xf32, #tpu.memory_space<vmem>>, %arg7: memref<6x128x128xf32, #tpu.memory_space<vmem>>, %arg8: memref<6x1x128xf32, #tpu.memory_space<vmem>>, %arg9: memref<6x128x128xf32, #tpu.memory_space<vmem>>, %arg10: memref<6x1x128xf32, #tpu.memory_space<vmem>>, %arg11: memref<1x2x128xf32, #tpu.memory_space<vmem>>) attributes {dimension_semantics = [#tpu.dimension_semantics<parallel>], iteration_bounds = array<i64: 6>, scalar_prefetch = 0 : i64, scratch_operands = 0 : i64, tpu.core_type = #tpu.core_type<tc>, window_params = [{transform_indices = @transform_0, window_bounds = array<i64: 1, 2, 12288>}, {transform_indices = @transform_1, window_bounds = array<i64: 1, 12288, 128>}, {pipeline_mode = #tpu.pipeline_mode<synchronous>, transform_indices = @transform_2, window_bounds = array<i64: 6, 1, 128>}, {pipeline_mode = #tpu.pipeline_mode<synchronous>, transform_indices = @transform_3, window_bounds = array<i64: 6, 1, 128>}, {pipeline_mode = #tpu.pipeline_mode<synchronous>, transform_indices = @transform_4, window_bounds = array<i64: 6, 128, 128>}, {pipeline_mode = #tpu.pipeline_mode<synchronous>, transform_indices = @transform_5, window_bounds = array<i64: 6, 1, 128>}, {pipeline_mode = #tpu.pipeline_mode<synchronous>, transform_indices = @transform_6, window_bounds = array<i64: 6, 128, 128>}, {pipeline_mode = #tpu.pipeline_mode<synchronous>, transform_indices = @transform_7, window_bounds = array<i64: 6, 1, 128>}, {pipeline_mode = #tpu.pipeline_mode<synchronous>, transform_indices = @transform_8, window_bounds = array<i64: 6, 128, 128>}, {pipeline_mode = #tpu.pipeline_mode<synchronous>, transform_indices = @transform_9, window_bounds = array<i64: 6, 1, 128>}, {transform_indices = @transform_10, window_bounds = array<i64: 1, 2, 128>}]} {
    %c0 = arith.constant 0 : index
    %c0_0 = arith.constant 0 : index
    %c0_1 = arith.constant 0 : index
    %0 = vector.load %arg1[%c0, %c0_0, %c0_1] : memref<1x2x12288xf32, #tpu.memory_space<vmem>>, vector<1x2x12288xf32>
    %1 = vector.shape_cast %0 : vector<1x2x12288xf32> to vector<2x12288xf32>
    %2 = arith.truncf %1 : vector<2x12288xf32> to vector<2x12288xbf16>
    %c0_2 = arith.constant 0 : index
    %c0_3 = arith.constant 0 : index
    %c0_4 = arith.constant 0 : index
    %3 = vector.load %arg2[%c0_2, %c0_3, %c0_4] : memref<1x12288x128xi8, #tpu.memory_space<vmem>>, vector<1x12288x128xi8>
    %4 = vector.shape_cast %3 : vector<1x12288x128xi8> to vector<12288x128xi8>
    %5 = arith.sitofp %4 : vector<12288x128xi8> to vector<12288x128xbf16>
    %cst = arith.constant dense<0.000000e+00> : vector<2x128xf32>
    %6 = tpu.matmul %2, %5, %cst {dimension_numbers = #tpu.dot_dimension_numbers<[1], [0], [0], [1], [0, 0, 1, 1], [], []>} : vector<2x12288xbf16>, vector<12288x128xbf16>, vector<2x128xf32> -> vector<2x128xf32>
    %7 = arith.index_cast %arg0 : i32 to index
    %c0_5 = arith.constant 0 : index
    %c0_6 = arith.constant 0 : index
    %8 = vector.load %arg3[%7, %c0_5, %c0_6] : memref<6x1x128xf32, #tpu.memory_space<vmem>>, vector<1x1x128xf32>
    %9 = vector.shape_cast %8 : vector<1x1x128xf32> to vector<1x128xf32>
    %10 = vector.broadcast %9 : vector<1x128xf32> to vector<2x128xf32>
    %11 = arith.mulf %6, %10 : vector<2x128xf32>
    %12 = arith.index_cast %arg0 : i32 to index
    %c0_7 = arith.constant 0 : index
    %c0_8 = arith.constant 0 : index
    %13 = vector.load %arg4[%12, %c0_7, %c0_8] : memref<6x1x128xf32, #tpu.memory_space<vmem>>, vector<1x1x128xf32>
    %14 = vector.shape_cast %13 : vector<1x1x128xf32> to vector<1x128xf32>
    %15 = vector.broadcast %14 : vector<1x128xf32> to vector<2x128xf32>
    %16 = arith.addf %11, %15 : vector<2x128xf32>
    %cst_9 = arith.constant 0.000000e+00 : f32
    %17 = vector.broadcast %cst_9 : f32 to vector<2x128xf32>
    %18 = arith.maximumf %16, %17 : vector<2x128xf32>
    %19 = arith.index_cast %arg0 : i32 to index
    %c0_10 = arith.constant 0 : index
    %c0_11 = arith.constant 0 : index
    %20 = vector.load %arg5[%19, %c0_10, %c0_11] : memref<6x128x128xf32, #tpu.memory_space<vmem>>, vector<1x128x128xf32>
    %21 = vector.shape_cast %20 : vector<1x128x128xf32> to vector<128x128xf32>
    %cst_12 = arith.constant dense<0.000000e+00> : vector<2x128xf32>
    %22 = tpu.matmul %18, %21, %cst_12 {dimension_numbers = #tpu.dot_dimension_numbers<[1], [0], [0], [1], [0, 0, 1, 1], [], []>} : vector<2x128xf32>, vector<128x128xf32>, vector<2x128xf32> -> vector<2x128xf32>
    %23 = arith.index_cast %arg0 : i32 to index
    %c0_13 = arith.constant 0 : index
    %c0_14 = arith.constant 0 : index
    %24 = vector.load %arg6[%23, %c0_13, %c0_14] : memref<6x1x128xf32, #tpu.memory_space<vmem>>, vector<1x1x128xf32>
    %25 = vector.shape_cast %24 : vector<1x1x128xf32> to vector<1x128xf32>
    %26 = vector.broadcast %25 : vector<1x128xf32> to vector<2x128xf32>
    %27 = arith.addf %22, %26 : vector<2x128xf32>
    %cst_15 = arith.constant 0.000000e+00 : f32
    %28 = vector.broadcast %cst_15 : f32 to vector<2x128xf32>
    %29 = arith.maximumf %27, %28 : vector<2x128xf32>
    %30 = arith.index_cast %arg0 : i32 to index
    %c0_16 = arith.constant 0 : index
    %c0_17 = arith.constant 0 : index
    %31 = vector.load %arg7[%30, %c0_16, %c0_17] : memref<6x128x128xf32, #tpu.memory_space<vmem>>, vector<1x128x128xf32>
    %32 = vector.shape_cast %31 : vector<1x128x128xf32> to vector<128x128xf32>
    %cst_18 = arith.constant dense<0.000000e+00> : vector<2x128xf32>
    %33 = tpu.matmul %29, %32, %cst_18 {dimension_numbers = #tpu.dot_dimension_numbers<[1], [0], [0], [1], [0, 0, 1, 1], [], []>} : vector<2x128xf32>, vector<128x128xf32>, vector<2x128xf32> -> vector<2x128xf32>
    %34 = arith.index_cast %arg0 : i32 to index
    %c0_19 = arith.constant 0 : index
    %c0_20 = arith.constant 0 : index
    %35 = vector.load %arg8[%34, %c0_19, %c0_20] : memref<6x1x128xf32, #tpu.memory_space<vmem>>, vector<1x1x128xf32>
    %36 = vector.shape_cast %35 : vector<1x1x128xf32> to vector<1x128xf32>
    %37 = vector.broadcast %36 : vector<1x128xf32> to vector<2x128xf32>
    %38 = arith.addf %33, %37 : vector<2x128xf32>
    %cst_21 = arith.constant 0.000000e+00 : f32
    %39 = vector.broadcast %cst_21 : f32 to vector<2x128xf32>
    %40 = arith.maximumf %38, %39 : vector<2x128xf32>
    %41 = arith.index_cast %arg0 : i32 to index
    %c0_22 = arith.constant 0 : index
    %c0_23 = arith.constant 0 : index
    %42 = vector.load %arg9[%41, %c0_22, %c0_23] : memref<6x128x128xf32, #tpu.memory_space<vmem>>, vector<1x128x128xf32>
    %43 = vector.shape_cast %42 : vector<1x128x128xf32> to vector<128x128xf32>
    %cst_24 = arith.constant dense<0.000000e+00> : vector<2x128xf32>
    %44 = tpu.matmul %40, %43, %cst_24 {dimension_numbers = #tpu.dot_dimension_numbers<[1], [0], [0], [1], [0, 0, 1, 1], [], []>} : vector<2x128xf32>, vector<128x128xf32>, vector<2x128xf32> -> vector<2x128xf32>
    %45 = arith.index_cast %arg0 : i32 to index
    %c0_25 = arith.constant 0 : index
    %c0_26 = arith.constant 0 : index
    %46 = vector.load %arg10[%45, %c0_25, %c0_26] : memref<6x1x128xf32, #tpu.memory_space<vmem>>, vector<1x1x128xf32>
    %47 = vector.shape_cast %46 : vector<1x1x128xf32> to vector<1x128xf32>
    %48 = vector.broadcast %47 : vector<1x128xf32> to vector<2x128xf32>
    %49 = arith.addf %44, %48 : vector<2x128xf32>
    %c0_27 = arith.constant 0 : index
    %c0_28 = arith.constant 0 : index
    %c0_29 = arith.constant 0 : index
    %50 = vector.load %arg11[%c0_27, %c0_28, %c0_29] : memref<1x2x128xf32, #tpu.memory_space<vmem>>, vector<1x2x128xf32>
    %51 = vector.shape_cast %50 : vector<1x2x128xf32> to vector<2x128xf32>
    %52 = vector.shape_cast %49 : vector<2x128xf32> to vector<1x2x128xf32>
    tpu.vector_store %arg11[%c0_27, %c0_28, %c0_29], %52 {strides = array<i32>} : memref<1x2x128xf32, #tpu.memory_space<vmem>>, vector<1x2x128xf32>,
    return
  }
  func.func @transform_0(%arg0: i32) -> (i32, i32, i32) {
    %c0_i32 = arith.constant 0 : i32
    %c0_i32_0 = arith.constant 0 : i32
    %c0_i32_1 = arith.constant 0 : i32
    return %arg0, %c0_i32, %c0_i32_0 : i32, i32, i32
  }
  func.func @transform_1(%arg0: i32) -> (i32, i32, i32) {
    %c0_i32 = arith.constant 0 : i32
    %c0_i32_0 = arith.constant 0 : i32
    %c0_i32_1 = arith.constant 0 : i32
    return %arg0, %c0_i32, %c0_i32_0 : i32, i32, i32
  }
  func.func @transform_2(%arg0: i32) -> (i32, i32, i32) {
    %c0_i32 = arith.constant 0 : i32
    %c0_i32_0 = arith.constant 0 : i32
    %c0_i32_1 = arith.constant 0 : i32
    %c0_i32_2 = arith.constant 0 : i32
    return %c0_i32, %c0_i32_0, %c0_i32_1 : i32, i32, i32
  }
  func.func @transform_3(%arg0: i32) -> (i32, i32, i32) {
    %c0_i32 = arith.constant 0 : i32
    %c0_i32_0 = arith.constant 0 : i32
    %c0_i32_1 = arith.constant 0 : i32
    %c0_i32_2 = arith.constant 0 : i32
    return %c0_i32, %c0_i32_0, %c0_i32_1 : i32, i32, i32
  }
  func.func @transform_4(%arg0: i32) -> (i32, i32, i32) {
    %c0_i32 = arith.constant 0 : i32
    %c0_i32_0 = arith.constant 0 : i32
    %c0_i32_1 = arith.constant 0 : i32
    %c0_i32_2 = arith.constant 0 : i32
    return %c0_i32, %c0_i32_0, %c0_i32_1 : i32, i32, i32
  }
  func.func @transform_5(%arg0: i32) -> (i32, i32, i32) {
    %c0_i32 = arith.constant 0 : i32
    %c0_i32_0 = arith.constant 0 : i32
    %c0_i32_1 = arith.constant 0 : i32
    %c0_i32_2 = arith.constant 0 : i32
    return %c0_i32, %c0_i32_0, %c0_i32_1 : i32, i32, i32
  }
  func.func @transform_6(%arg0: i32) -> (i32, i32, i32) {
    %c0_i32 = arith.constant 0 : i32
    %c0_i32_0 = arith.constant 0 : i32
    %c0_i32_1 = arith.constant 0 : i32
    %c0_i32_2 = arith.constant 0 : i32
    return %c0_i32, %c0_i32_0, %c0_i32_1 : i32, i32, i32
  }
  func.func @transform_7(%arg0: i32) -> (i32, i32, i32) {
    %c0_i32 = arith.constant 0 : i32
    %c0_i32_0 = arith.constant 0 : i32
    %c0_i32_1 = arith.constant 0 : i32
    %c0_i32_2 = arith.constant 0 : i32
    return %c0_i32, %c0_i32_0, %c0_i32_1 : i32, i32, i32
  }
  func.func @transform_8(%arg0: i32) -> (i32, i32, i32) {
    %c0_i32 = arith.constant 0 : i32
    %c0_i32_0 = arith.constant 0 : i32
    %c0_i32_1 = arith.constant 0 : i32
    %c0_i32_2 = arith.constant 0 : i32
    return %c0_i32, %c0_i32_0, %c0_i32_1 : i32, i32, i32
  }
  func.func @transform_9(%arg0: i32) -> (i32, i32, i32) {
    %c0_i32 = arith.constant 0 : i32
    %c0_i32_0 = arith.constant 0 : i32
    %c0_i32_1 = arith.constant 0 : i32
    %c0_i32_2 = arith.constant 0 : i32
    return %c0_i32, %c0_i32_0, %c0_i32_1 : i32, i32, i32
  }
  func.func @transform_10(%arg0: i32) -> (i32, i32, i32) {
    %c0_i32 = arith.constant 0 : i32
    %c0_i32_0 = arith.constant 0 : i32
    %c0_i32_1 = arith.constant 0 : i32
    return %arg0, %c0_i32, %c0_i32_0 : i32, i32, i32
  }
}

</mosaic_0001>

<llo_original>
// kernel: tpu_custom_call.1
$region0: #{tpu_custom_call.1}
  #allocation0 [shape = 'u32[]', space=smem, size = 0x4, offset = 0x4, fixed_abs, tag = 'smem constant byte address 0x4 - core index']
  #allocation1 [shape = 'u32[144,128]{1,0:T(1,128)}', space=vmem, size = 0x12000, scoped, tag = 'internal scratch']
  %s0 = inlined_call_operand.hbm [shape: f32[6,2,12288], index: 0, kind: input, shape index: {}]
  %s1 = inlined_call_operand.hbm [shape: s8[6,12288,128], index: 1, kind: input, shape index: {}]
  %s2 = inlined_call_operand.hbm [shape: f32[6,1,128], index: 2, kind: input, shape index: {}]
  %s3 = inlined_call_operand.hbm [shape: f32[6,1,128], index: 3, kind: input, shape index: {}]
  %s4 = inlined_call_operand.hbm [shape: f32[6,128,128], index: 4, kind: input, shape index: {}]
  %s5 = inlined_call_operand.hbm [shape: f32[6,1,128], index: 5, kind: input, shape index: {}]
  %s6 = inlined_call_operand.hbm [shape: f32[6,128,128], index: 6, kind: input, shape index: {}]
  %s7 = inlined_call_operand.hbm [shape: f32[6,1,128], index: 7, kind: input, shape index: {}]
  %s8 = inlined_call_operand.hbm [shape: f32[6,128,128], index: 8, kind: input, shape index: {}]
  %s9 = inlined_call_operand.hbm [shape: f32[6,1,128], index: 9, kind: input, shape index: {}]
  %s10 = inlined_call_operand.hbm [shape: f32[6,2,128], index: 10, kind: output, shape index: {}]
  %s11 = sld [smem:[#allocation0]]
  $region113: #{tpu_custom_call.1} parent=0
    _
  %s13 = ssub.s32 1, %s11
  %s14 = scalar_select 0, %s13, %s11
  $region1: #{tpu_custom_call.1} parent=0
    #allocation2 [shape = 'u8[196608]{0}', space=vmem, size = 0x30000, scoped, tag = 'input window, operand 0']
    #allocation3 [shape = 's32[2]{0}', space=sflag, size = 0x8, scoped, tag = 'scoped memory for tpu_custom_call.1']
    #allocation4 [shape = 's32[2]{0}', space=sflag, size = 0x8, scoped, tag = 'scoped memory for tpu_custom_call.1']
    #allocation5 [shape = 'u8[3145728]{0}', space=vmem, size = 0x300000, scoped, tag = 'input window, operand 1']
    #allocation6 [shape = 's32[2]{0}', space=sflag, size = 0x8, scoped, tag = 'scoped memory for tpu_custom_call.1']
    #allocation7 [shape = 'u8[3072]{0}', space=vmem, size = 0xc00, scoped, tag = 'input window, operand 2, single buffered']
    #allocation8 [shape = 'u8[3072]{0}', space=vmem, size = 0xc00, scoped, tag = 'input window, operand 3, single buffered']
    #allocation9 [shape = 's32[1]{0}', space=sflag, size = 0x4, scoped, tag = 'scoped memory for tpu_custom_call.1']
    #allocation10 [shape = 'u8[393216]{0}', space=vmem, size = 0x60000, scoped, tag = 'input window, operand 4, single buffered']
    #allocation11 [shape = 'u8[3072]{0}', space=vmem, size = 0xc00, scoped, tag = 'input window, operand 5, single buffered']
    #allocation12 [shape = 's32[1]{0}', space=sflag, size = 0x4, scoped, tag = 'scoped memory for tpu_custom_call.1']
    #allocation13 [shape = 'u8[393216]{0}', space=vmem, size = 0x60000, scoped, tag = 'input window, operand 6, single buffered']
    #allocation14 [shape = 'u8[3072]{0}', space=vmem, size = 0xc00, scoped, tag = 'input window, operand 7, single buffered']
    #allocation15 [shape = 's32[1]{0}', space=sflag, size = 0x4, scoped, tag = 'scoped memory for tpu_custom_call.1']
    #allocation16 [shape = 'u8[393216]{0}', space=vmem, size = 0x60000, scoped, tag = 'input window, operand 8, single buffered']
    #allocation17 [shape = 'u8[3072]{0}', space=vmem, size = 0xc00, scoped, tag = 'input window, operand 9, single buffered']
    #allocation18 [shape = 's32[1]{0}', space=sflag, size = 0x4, scoped, tag = 'scoped memory for tpu_custom_call.1']
    #allocation19 [shape = 'u8[2048]{0}', space=vmem, size = 0x800, scoped, tag = 'output window, operand 0']
    %15 = vsyncpa [#allocation3], 0
    %s16 = scalar_lea.sflag [#allocation3], 1
    %17 = vsyncpa %s16, 0
    %18 = vsyncpa [#allocation6], 0
    %s19 = scalar_lea.sflag [#allocation6], 1
    %20 = vsyncpa %s19, 0
    %21 = vsyncpa [#allocation9], 0
    %22 = vsyncpa [#allocation12], 0
    %23 = vsyncpa [#allocation15], 0
    %24 = vsyncpa [#allocation18], 0
    %25 = vsyncpa [#allocation4], 0
    %s26 = scalar_lea.sflag [#allocation4], 1
    %27 = vsyncpa %s26, 0
    loop: start=0, step=1, limit=8
    $region2: #{tpu_custom_call.1} parent=1 // loop_pre_header
      _
    $region3: #{tpu_custom_call.1} parent=1 // loop_header
      %s29 = sphi 0, %s33
      %p30 = scmp.ge.s32.totalorder %s29, 8
      %s39 = sphi 0, %s41
      %s42 = sphi 0, %s39
      %s43 = sphi 0, %s42
      %s59 = sphi 0, %s43
      %s65 = sphi 0, %s67
      %s68 = sphi 0, %s65
      %s69 = sphi 0, %s68
      %s85 = sphi 0, %s69
      %s89 = sphi 0, %s89
      %s91 = sphi 0, %s89
      %s92 = sphi 0, %s91
      %s106 = sphi 0, %s92
      %s110 = sphi 0, %s110
      %s112 = sphi 0, %s110
      %s113 = sphi 0, %s112
      %s127 = sphi 0, %s113
      %s131 = sphi 0, %s131
      %s133 = sphi 0, %s131
      %s134 = sphi 0, %s133
      %s148 = sphi 0, %s134
      %s152 = sphi 0, %s152
      %s154 = sphi 0, %s152
      %s155 = sphi 0, %s154
      %s169 = sphi 0, %s155
      %s173 = sphi 0, %s173
      %s175 = sphi 0, %s173
      %s176 = sphi 0, %s175
      %s190 = sphi 0, %s176
      %s194 = sphi 0, %s194
      %s196 = sphi 0, %s194
      %s197 = sphi 0, %s196
      %s211 = sphi 0, %s197
      %s215 = sphi 0, %s215
      %s217 = sphi 0, %s215
      %s218 = sphi 0, %s217
      %s232 = sphi 0, %s218
      %s236 = sphi 0, %s236
      %s238 = sphi 0, %s236
      %s239 = sphi 0, %s238
      %s253 = sphi 0, %s239
      %s259 = sphi 0, %s261
      %s262 = sphi 0, %s259
      %s263 = sphi 0, %s262
      %s279 = sphi 0, %s263
    $region4: #{tpu_custom_call.1} parent=1 // loop_header_branch
      %32 = sbr.rel (%p30) target = $region8
    $region5: #{tpu_custom_call.1} parent=1 // loop_body
      %s34 = ssub.s32 %s29, 1
      %s35 = ssub.s32 %s29, 2
      %s36 = sadd.s32 %s29, 1
      %s37 = ssub.s32 %s29, %s36
      %p38 = scmp.eq.s32.totalorder %s37, 0
      %s40 = sadd.s32 %s39, 1
      %s41 = scalar_select %p38, %s39, %s40
      %p44 = pneg %p38
      %p45 = scmp.eq.s32.totalorder %s29, 5
      %p46 = por %p44, %p45
      %p47 = scmp.ne.s32.totalorder %s39, %s42
      %p48 = scmp.eq.s32.totalorder %s29, 0
      %p49 = por %p47, %p48
      %p50 = scmp.ne.s32.totalorder %s39, %s42
      %p51 = scmp.eq.s32.totalorder %s34, 5
      %p52 = por %p50, %p51
      %p53 = scmp.ne.s32.totalorder %s42, %s43
      %p54 = scmp.eq.s32.totalorder %s34, 0
      %p55 = por %p53, %p54
      %p56 = scmp.ne.s32.totalorder %s42, %s43
      %p57 = scmp.eq.s32.totalorder %s35, 5
      %p58 = por %p56, %p57
      %p60 = scmp.ne.s32.totalorder %s43, %s59
      %p61 = scmp.eq.s32.totalorder %s35, 0
      %p62 = por %p60, %p61
      %s63 = ssub.s32 %s29, %s36
      %p64 = scmp.eq.s32.totalorder %s63, 0
      %s66 = sadd.s32 %s65, 1
      %s67 = scalar_select %p64, %s65, %s66
      %p70 = pneg %p64
      %p71 = scmp.eq.s32.totalorder %s29, 5
      %p72 = por %p70, %p71
      %p73 = scmp.ne.s32.totalorder %s65, %s68
      %p74 = scmp.eq.s32.totalorder %s29, 0
      %p75 = por %p73, %p74
      %p76 = scmp.ne.s32.totalorder %s65, %s68
      %p77 = scmp.eq.s32.totalorder %s34, 5
      %p78 = por %p76, %p77
      %p79 = scmp.ne.s32.totalorder %s68, %s69
      %p80 = scmp.eq.s32.totalorder %s34, 0
      %p81 = por %p79, %p80
      %p82 = scmp.ne.s32.totalorder %s68, %s69
      %p83 = scmp.eq.s32.totalorder %s35, 5
      %p84 = por %p82, %p83
      %p86 = scmp.ne.s32.totalorder %s69, %s85
      %p87 = scmp.eq.s32.totalorder %s35, 0
      %p88 = por %p86, %p87
      %s90 = sadd.s32 %s89, 1
      %p93 = scmp.eq.s32.totalorder %s29, 5
      %p94 = scmp.ne.s32.totalorder %s89, %s91
      %p95 = scmp.eq.s32.totalorder %s29, 0
      %p96 = por %p94, %p95
      %p97 = scmp.ne.s32.totalorder %s89, %s91
      %p98 = scmp.eq.s32.totalorder %s34, 5
      %p99 = por %p97, %p98
      %p100 = scmp.ne.s32.totalorder %s91, %s92
      %p101 = scmp.eq.s32.totalorder %s34, 0
      %p102 = por %p100, %p101
      %p103 = scmp.ne.s32.totalorder %s91, %s92
      %p104 = scmp.eq.s32.totalorder %s35, 5
      %p105 = por %p103, %p104
      %p107 = scmp.ne.s32.totalorder %s92, %s106
      %p108 = scmp.eq.s32.totalorder %s35, 0
      %p109 = por %p107, %p108
      %s111 = sadd.s32 %s110, 1
      %p114 = scmp.eq.s32.totalorder %s29, 5
      %p115 = scmp.ne.s32.totalorder %s110, %s112
      %p116 = scmp.eq.s32.totalorder %s29, 0
      %p117 = por %p115, %p116
      %p118 = scmp.ne.s32.totalorder %s110, %s112
      %p119 = scmp.eq.s32.totalorder %s34, 5
      %p120 = por %p118, %p119
      %p121 = scmp.ne.s32.totalorder %s112, %s113
      %p122 = scmp.eq.s32.totalorder %s34, 0
      %p123 = por %p121, %p122
      %p124 = scmp.ne.s32.totalorder %s112, %s113
      %p125 = scmp.eq.s32.totalorder %s35, 5
      %p126 = por %p124, %p125
      %p128 = scmp.ne.s32.totalorder %s113, %s127
      %p129 = scmp.eq.s32.totalorder %s35, 0
      %p130 = por %p128, %p129
      %s132 = sadd.s32 %s131, 1
      %p135 = scmp.eq.s32.totalorder %s29, 5
      %p136 = scmp.ne.s32.totalorder %s131, %s133
      %p137 = scmp.eq.s32.totalorder %s29, 0
      %p138 = por %p136, %p137
      %p139 = scmp.ne.s32.totalorder %s131, %s133
      %p140 = scmp.eq.s32.totalorder %s34, 5
      %p141 = por %p139, %p140
      %p142 = scmp.ne.s32.totalorder %s133, %s134
      %p143 = scmp.eq.s32.totalorder %s34, 0
      %p144 = por %p142, %p143
      %p145 = scmp.ne.s32.totalorder %s133, %s134
      %p146 = scmp.eq.s32.totalorder %s35, 5
      %p147 = por %p145, %p146
      %p149 = scmp.ne.s32.totalorder %s134, %s148
      %p150 = scmp.eq.s32.totalorder %s35, 0
      %p151 = por %p149, %p150
      %s153 = sadd.s32 %s152, 1
      %p156 = scmp.eq.s32.totalorder %s29, 5
      %p157 = scmp.ne.s32.totalorder %s152, %s154
      %p158 = scmp.eq.s32.totalorder %s29, 0
      %p159 = por %p157, %p158
      %p160 = scmp.ne.s32.totalorder %s152, %s154
      %p161 = scmp.eq.s32.totalorder %s34, 5
      %p162 = por %p160, %p161
      %p163 = scmp.ne.s32.totalorder %s154, %s155
      %p164 = scmp.eq.s32.totalorder %s34, 0
      %p165 = por %p163, %p164
      %p166 = scmp.ne.s32.totalorder %s154, %s155
      %p167 = scmp.eq.s32.totalorder %s35, 5
      %p168 = por %p166, %p167
      %p170 = scmp.ne.s32.totalorder %s155, %s169
      %p171 = scmp.eq.s32.totalorder %s35, 0
      %p172 = por %p170, %p171
      %s174 = sadd.s32 %s173, 1
      %p177 = scmp.eq.s32.totalorder %s29, 5
      %p178 = scmp.ne.s32.totalorder %s173, %s175
      %p179 = scmp.eq.s32.totalorder %s29, 0
      %p180 = por %p178, %p179
      %p181 = scmp.ne.s32.totalorder %s173, %s175
      %p182 = scmp.eq.s32.totalorder %s34, 5
      %p183 = por %p181, %p182
      %p184 = scmp.ne.s32.totalorder %s175, %s176
      %p185 = scmp.eq.s32.totalorder %s34, 0
      %p186 = por %p184, %p185
      %p187 = scmp.ne.s32.totalorder %s175, %s176
      %p188 = scmp.eq.s32.totalorder %s35, 5
      %p189 = por %p187, %p188
      %p191 = scmp.ne.s32.totalorder %s176, %s190
      %p192 = scmp.eq.s32.totalorder %s35, 0
      %p193 = por %p191, %p192
      %s195 = sadd.s32 %s194, 1
      %p198 = scmp.eq.s32.totalorder %s29, 5
      %p199 = scmp.ne.s32.totalorder %s194, %s196
      %p200 = scmp.eq.s32.totalorder %s29, 0
      %p201 = por %p199, %p200
      %p202 = scmp.ne.s32.totalorder %s194, %s196
      %p203 = scmp.eq.s32.totalorder %s34, 5
      %p204 = por %p202, %p203
      %p205 = scmp.ne.s32.totalorder %s196, %s197
      %p206 = scmp.eq.s32.totalorder %s34, 0
      %p207 = por %p205, %p206
      %p208 = scmp.ne.s32.totalorder %s196, %s197
      %p209 = scmp.eq.s32.totalorder %s35, 5
      %p210 = por %p208, %p209
      %p212 = scmp.ne.s32.totalorder %s197, %s211
      %p213 = scmp.eq.s32.totalorder %s35, 0
      %p214 = por %p212, %p213
      %s216 = sadd.s32 %s215, 1
      %p219 = scmp.eq.s32.totalorder %s29, 5
      %p220 = scmp.ne.s32.totalorder %s215, %s217
      %p221 = scmp.eq.s32.totalorder %s29, 0
      %p222 = por %p220, %p221
      %p223 = scmp.ne.s32.totalorder %s215, %s217
      %p224 = scmp.eq.s32.totalorder %s34, 5
      %p225 = por %p223, %p224
      %p226 = scmp.ne.s32.totalorder %s217, %s218
      %p227 = scmp.eq.s32.totalorder %s34, 0
      %p228 = por %p226, %p227
      %p229 = scmp.ne.s32.totalorder %s217, %s218
      %p230 = scmp.eq.s32.totalorder %s35, 5
      %p231 = por %p229, %p230
      %p233 = scmp.ne.s32.totalorder %s218, %s232
      %p234 = scmp.eq.s32.totalorder %s35, 0
      %p235 = por %p233, %p234
      %s237 = sadd.s32 %s236, 1
      %p240 = scmp.eq.s32.totalorder %s29, 5
      %p241 = scmp.ne.s32.totalorder %s236, %s238
      %p242 = scmp.eq.s32.totalorder %s29, 0
      %p243 = por %p241, %p242
      %p244 = scmp.ne.s32.totalorder %s236, %s238
      %p245 = scmp.eq.s32.totalorder %s34, 5
      %p246 = por %p244, %p245
      %p247 = scmp.ne.s32.totalorder %s238, %s239
      %p248 = scmp.eq.s32.totalorder %s34, 0
      %p249 = por %p247, %p248
      %p250 = scmp.ne.s32.totalorder %s238, %s239
      %p251 = scmp.eq.s32.totalorder %s35, 5
      %p252 = por %p250, %p251
      %p254 = scmp.ne.s32.totalorder %s239, %s253
      %p255 = scmp.eq.s32.totalorder %s35, 0
      %p256 = por %p254, %p255
      %s257 = ssub.s32 %s29, %s36
      %p258 = scmp.eq.s32.totalorder %s257, 0
      %s260 = sadd.s32 %s259, 1
      %s261 = scalar_select %p258, %s259, %s260
      %p264 = pneg %p258
      %p265 = scmp.eq.s32.totalorder %s29, 5
      %p266 = por %p264, %p265
      %p267 = scmp.ne.s32.totalorder %s259, %s262
      %p268 = scmp.eq.s32.totalorder %s29, 0
      %p269 = por %p267, %p268
      %p270 = scmp.ne.s32.totalorder %s259, %s262
      %p271 = scmp.eq.s32.totalorder %s34, 5
      %p272 = por %p270, %p271
      %p273 = scmp.ne.s32.totalorder %s262, %s263
      %p274 = scmp.eq.s32.totalorder %s34, 0
      %p275 = por %p273, %p274
      %p276 = scmp.ne.s32.totalorder %s262, %s263
      %p277 = scmp.eq.s32.totalorder %s35, 5
      %p278 = por %p276, %p277
      %p280 = scmp.ne.s32.totalorder %s263, %s279
      %p281 = scmp.eq.s32.totalorder %s35, 0
      %p282 = por %p280, %p281
      %p283 = scmp.le.s32.totalorder 1, %s29
      %p284 = scmp.lt.s32.totalorder %s29, 7
      %p285 = pnand %p283, %p284
      %p286 = pneg %p285
      // Predicated region
      $region9: #{tpu_custom_call.1} parent=5 // pred_check
        _
      $region10: #{tpu_custom_call.1} parent=5 // pred_check_branch
        %288 = sbr.rel (%p285) target = $region12
      $region11: #{tpu_custom_call.1} parent=5 // pred_region
        %s289 = ssub.s32 %s29, 1
        // Predicated region
        $region13: #{tpu_custom_call.1} parent=11 // pred_check
          %p290 = pneg %p102
        $region14: #{tpu_custom_call.1} parent=11 // pred_check_branch
          %292 = sbr.rel (%p290) target = $region16
        $region15: #{tpu_custom_call.1} parent=11 // pred_region
          %s294 = ssub.s32 96, 96
          %295 = vsyncadd [#allocation6], %s294
          %s296 = sshll.u32 [#allocation7], 4
          %s297 = int_to_ptr.vmem [resolvable:$true] %s296
          %302 = dma.hbm_to_vmem [thread:$0]  %s2, 96, %s297, [#allocation6], 16, 16, 1
        $region16: #{tpu_custom_call.1} parent=11 // pred_fallthru
          _
        // Predicated region
        $region17: #{tpu_custom_call.1} parent=11 // pred_check
          %p303 = pneg %p123
        $region18: #{tpu_custom_call.1} parent=11 // pred_check_branch
          %305 = sbr.rel (%p303) target = $region20
        $region19: #{tpu_custom_call.1} parent=11 // pred_region
          %s307 = ssub.s32 96, 96
          %308 = vsyncadd [#allocation9], %s307
          %s309 = sshll.u32 [#allocation8], 4
          %s310 = int_to_ptr.vmem [resolvable:$true] %s309
          %315 = dma.hbm_to_vmem [thread:$0]  %s3, 96, %s310, [#allocation9], 16, 16, 1
        $region20: #{tpu_custom_call.1} parent=11 // pred_fallthru
          _
        // Predicated region
        $region21: #{tpu_custom_call.1} parent=11 // pred_check
          %p316 = pneg %p144
        $region22: #{tpu_custom_call.1} parent=11 // pred_check_branch
          %318 = sbr.rel (%p316) target = $region24
        $region23: #{tpu_custom_call.1} parent=11 // pred_region
          %s320 = ssub.s32 12288, 12288
          %321 = vsyncadd [#allocation9], %s320
          %s322 = sshll.u32 [#allocation10], 4
          %s323 = int_to_ptr.vmem [resolvable:$true] %s322
          %328 = dma.hbm_to_vmem [thread:$0]  %s4, 12288, %s323, [#allocation9], 128, 128, 8
        $region24: #{tpu_custom_call.1} parent=11 // pred_fallthru
          _
        // Predicated region
        $region25: #{tpu_custom_call.1} parent=11 // pred_check
          %p329 = pneg %p165
        $region26: #{tpu_custom_call.1} parent=11 // pred_check_branch
          %331 = sbr.rel (%p329) target = $region28
        $region27: #{tpu_custom_call.1} parent=11 // pred_region
          %s333 = ssub.s32 96, 96
          %334 = vsyncadd [#allocation12], %s333
          %s335 = sshll.u32 [#allocation11], 4
          %s336 = int_to_ptr.vmem [resolvable:$true] %s335
          %341 = dma.hbm_to_vmem [thread:$0]  %s5, 96, %s336, [#allocation12], 16, 16, 1
        $region28: #{tpu_custom_call.1} parent=11 // pred_fallthru
          _
        // Predicated region
        $region29: #{tpu_custom_call.1} parent=11 // pred_check
          %p342 = pneg %p186
        $region30: #{tpu_custom_call.1} parent=11 // pred_check_branch
          %344 = sbr.rel (%p342) target = $region32
        $region31: #{tpu_custom_call.1} parent=11 // pred_region
          %s346 = ssub.s32 12288, 12288
          %347 = vsyncadd [#allocation12], %s346
          %s348 = sshll.u32 [#allocation13], 4
          %s349 = int_to_ptr.vmem [resolvable:$true] %s348
          %354 = dma.hbm_to_vmem [thread:$0]  %s6, 12288, %s349, [#allocation12], 128, 128, 8
        $region32: #{tpu_custom_call.1} parent=11 // pred_fallthru
          _
        // Predicated region
        $region33: #{tpu_custom_call.1} parent=11 // pred_check
          %p355 = pneg %p207
        $region34: #{tpu_custom_call.1} parent=11 // pred_check_branch
          %357 = sbr.rel (%p355) target = $region36
        $region35: #{tpu_custom_call.1} parent=11 // pred_region
          %s359 = ssub.s32 96, 96
          %360 = vsyncadd [#allocation15], %s359
          %s361 = sshll.u32 [#allocation14], 4
          %s362 = int_to_ptr.vmem [resolvable:$true] %s361
          %367 = dma.hbm_to_vmem [thread:$0]  %s7, 96, %s362, [#allocation15], 16, 16, 1
        $region36: #{tpu_custom_call.1} parent=11 // pred_fallthru
          _
        // Predicated region
        $region37: #{tpu_custom_call.1} parent=11 // pred_check
          %p368 = pneg %p228
        $region38: #{tpu_custom_call.1} parent=11 // pred_check_branch
          %370 = sbr.rel (%p368) target = $region40
        $region39: #{tpu_custom_call.1} parent=11 // pred_region
          %s372 = ssub.s32 12288, 12288
          %373 = vsyncadd [#allocation15], %s372
          %s374 = sshll.u32 [#allocation16], 4
          %s375 = int_to_ptr.vmem [resolvable:$true] %s374
          %380 = dma.hbm_to_vmem [thread:$0]  %s8, 12288, %s375, [#allocation15], 128, 128, 8
        $region40: #{tpu_custom_call.1} parent=11 // pred_fallthru
          _
        // Predicated region
        $region41: #{tpu_custom_call.1} parent=11 // pred_check
          %p381 = pneg %p249
        $region42: #{tpu_custom_call.1} parent=11 // pred_check_branch
          %383 = sbr.rel (%p381) target = $region44
        $region43: #{tpu_custom_call.1} parent=11 // pred_region
          %s385 = ssub.s32 96, 96
          %386 = vsyncadd [#allocation18], %s385
          %s387 = sshll.u32 [#allocation17], 4
          %s388 = int_to_ptr.vmem [resolvable:$true] %s387
          %393 = dma.hbm_to_vmem [thread:$0]  %s9, 96, %s388, [#allocation18], 16, 16, 1
        $region44: #{tpu_custom_call.1} parent=11 // pred_fallthru
          _
      $region12: #{tpu_custom_call.1} parent=5 // pred_fallthru
        _
      %p394 = scmp.lt.s32.totalorder %s29, 6
      // Predicated region
      $region45: #{tpu_custom_call.1} parent=5 // pred_check
        %p395 = pneg %p394
      $region46: #{tpu_custom_call.1} parent=5 // pred_check_branch
        %397 = sbr.rel (%p395) target = $region48
      $region47: #{tpu_custom_call.1} parent=5 // pred_region
        // Predicated region
        $region49: #{tpu_custom_call.1} parent=47 // pred_check
          %p398 = pneg %p49
        $region50: #{tpu_custom_call.1} parent=47 // pred_check_branch
          %400 = sbr.rel (%p398) target = $region52
        $region51: #{tpu_custom_call.1} parent=47 // pred_region
          %s401 = sand.u32 %s39, 1
          %s402 = scalar_lea.sflag [#allocation3], %s401
          %s403 = sand.u32 %s39, 1
          %s404 = smul.addr %s403, 192
          %s405 = scalar_lea.vmem [#allocation2], %s404
          %s407 = ssub.s32 3072, 3072
          %408 = vsyncadd %s402, %s407
          %s409 = smul.addr %s29, 96
          %s410 = smul.addr %s409, 32
          %s411 = scalar_lea.hbm %s0, %s410
          %s413 = sshll.u32 %s405, 4
          %s414 = int_to_ptr.vmem [resolvable:$true] %s413
          %416 = dma.hbm_to_vmem [thread:$0]  %s411, 3072, %s414, %s402
        $region52: #{tpu_custom_call.1} parent=47 // pred_fallthru
          _
        // Predicated region
        $region53: #{tpu_custom_call.1} parent=47 // pred_check
          %p417 = pneg %p75
        $region54: #{tpu_custom_call.1} parent=47 // pred_check_branch
          %419 = sbr.rel (%p417) target = $region56
        $region55: #{tpu_custom_call.1} parent=47 // pred_region
          %s420 = sand.u32 %s29, 1
          %s421 = scalar_lea.sflag [#allocation6], %s420
          %s422 = sand.u32 %s65, 1
          %s423 = smul.addr %s422, 3072
          %s424 = scalar_lea.vmem [#allocation5], %s423
          %s426 = ssub.s32 49152, 49152
          %427 = vsyncadd %s421, %s426
          %s428 = smul.addr %s29, 384
          %s429 = smul.addr %s428, 128
          %s430 = scalar_lea.hbm %s1, %s429
          %s431 = sshll.u32 %s424, 4
          %s432 = int_to_ptr.vmem [resolvable:$true] %s431
          %437 = dma.hbm_to_vmem [thread:$0]  %s430, 49152, %s432, %s421, 128, 128, 8
        $region56: #{tpu_custom_call.1} parent=47 // pred_fallthru
          _
      $region48: #{tpu_custom_call.1} parent=5 // pred_fallthru
        _
      %p438 = scmp.le.s32.totalorder 1, %s29
      %p439 = scmp.lt.s32.totalorder %s29, 7
      %p440 = pnand %p438, %p439
      %p441 = pneg %p440
      // Predicated region
      $region57: #{tpu_custom_call.1} parent=5 // pred_check
        _
      $region58: #{tpu_custom_call.1} parent=5 // pred_check_branch
        %443 = sbr.rel (%p440) target = $region60
      $region59: #{tpu_custom_call.1} parent=5 // pred_region
        %s444 = ssub.s32 %s29, 1
        %s445 = sand.u32 %s42, 1
        %s446 = scalar_lea.sflag [#allocation3], %s445
        %s447 = sand.u32 %s42, 1
        %s448 = smul.addr %s447, 192
        %s449 = scalar_lea.vmem [#allocation2], %s448
        // Predicated region
        $region61: #{tpu_custom_call.1} parent=59 // pred_check
          %p450 = pneg %p55
        $region62: #{tpu_custom_call.1} parent=59 // pred_check_branch
          %452 = sbr.rel (%p450) target = $region64
        $region63: #{tpu_custom_call.1} parent=59 // pred_region
          %453 = dma.done %s446, 3072
        $region64: #{tpu_custom_call.1} parent=59 // pred_fallthru
          _
        %s454 = sand.u32 %s34, 1
        %s455 = scalar_lea.sflag [#allocation6], %s454
        %s456 = sand.u32 %s68, 1
        %s457 = smul.addr %s456, 3072
        %s458 = scalar_lea.vmem [#allocation5], %s457
        // Predicated region
        $region65: #{tpu_custom_call.1} parent=59 // pred_check
          %p459 = pneg %p81
        $region66: #{tpu_custom_call.1} parent=59 // pred_check_branch
          %461 = sbr.rel (%p459) target = $region68
        $region67: #{tpu_custom_call.1} parent=59 // pred_region
          %462 = dma.done %s455, 49152
        $region68: #{tpu_custom_call.1} parent=59 // pred_fallthru
          _
        // Predicated region
        $region69: #{tpu_custom_call.1} parent=59 // pred_check
          %p463 = pneg %p102
        $region70: #{tpu_custom_call.1} parent=59 // pred_check_branch
          %465 = sbr.rel (%p463) target = $region72
        $region71: #{tpu_custom_call.1} parent=59 // pred_region
          %466 = dma.done [#allocation6], 96
        $region72: #{tpu_custom_call.1} parent=59 // pred_fallthru
          _
        // Predicated region
        $region73: #{tpu_custom_call.1} parent=59 // pred_check
          %p467 = pneg %p123
        $region74: #{tpu_custom_call.1} parent=59 // pred_check_branch
          %469 = sbr.rel (%p467) target = $region76
        $region75: #{tpu_custom_call.1} parent=59 // pred_region
          %470 = dma.done [#allocation9], 96
        $region76: #{tpu_custom_call.1} parent=59 // pred_fallthru
          _
        // Predicated region
        $region77: #{tpu_custom_call.1} parent=59 // pred_check
          %p471 = pneg %p144
        $region78: #{tpu_custom_call.1} parent=59 // pred_check_branch
          %473 = sbr.rel (%p471) target = $region80
        $region79: #{tpu_custom_call.1} parent=59 // pred_region
          %474 = dma.done [#allocation9], 12288
        $region80: #{tpu_custom_call.1} parent=59 // pred_fallthru
          _
        // Predicated region
        $region81: #{tpu_custom_call.1} parent=59 // pred_check
          %p475 = pneg %p165
        $region82: #{tpu_custom_call.1} parent=59 // pred_check_branch
          %477 = sbr.rel (%p475) target = $region84
        $region83: #{tpu_custom_call.1} parent=59 // pred_region
          %478 = dma.done [#allocation12], 96
        $region84: #{tpu_custom_call.1} parent=59 // pred_fallthru
          _
        // Predicated region
        $region85: #{tpu_custom_call.1} parent=59 // pred_check
          %p479 = pneg %p186
        $region86: #{tpu_custom_call.1} parent=59 // pred_check_branch
          %481 = sbr.rel (%p479) target = $region88
        $region87: #{tpu_custom_call.1} parent=59 // pred_region
          %482 = dma.done [#allocation12], 12288
        $region88: #{tpu_custom_call.1} parent=59 // pred_fallthru
          _
        // Predicated region
        $region89: #{tpu_custom_call.1} parent=59 // pred_check
          %p483 = pneg %p207
        $region90: #{tpu_custom_call.1} parent=59 // pred_check_branch
          %485 = sbr.rel (%p483) target = $region92
        $region91: #{tpu_custom_call.1} parent=59 // pred_region
          %486 = dma.done [#allocation15], 96
        $region92: #{tpu_custom_call.1} parent=59 // pred_fallthru
          _
        // Predicated region
        $region93: #{tpu_custom_call.1} parent=59 // pred_check
          %p487 = pneg %p228
        $region94: #{tpu_custom_call.1} parent=59 // pred_check_branch
          %489 = sbr.rel (%p487) target = $region96
        $region95: #{tpu_custom_call.1} parent=59 // pred_region
          %490 = dma.done [#allocation15], 12288
        $region96: #{tpu_custom_call.1} parent=59 // pred_fallthru
          _
        // Predicated region
        $region97: #{tpu_custom_call.1} parent=59 // pred_check
          %p491 = pneg %p249
        $region98: #{tpu_custom_call.1} parent=59 // pred_check_branch
          %493 = sbr.rel (%p491) target = $region100
        $region99: #{tpu_custom_call.1} parent=59 // pred_region
          %494 = dma.done [#allocation18], 96
        $region100: #{tpu_custom_call.1} parent=59 // pred_fallthru
          _
        %s495 = sand.u32 %s42, 1
        %s496 = scalar_lea.sflag [#allocation3], %s495
        %s497 = sand.u32 %s42, 1
        %s498 = smul.addr %s497, 192
        %s499 = scalar_lea.vmem [#allocation2], %s498
        %p500 = pneg %p55
        %p501 = pneg %p52
        %s502 = sand.u32 %s34, 1
        %s503 = scalar_lea.sflag [#allocation6], %s502
        %s504 = sand.u32 %s68, 1
        %s505 = smul.addr %s504, 3072
        %s506 = scalar_lea.vmem [#allocation5], %s505
        %p507 = pneg %p81
        %p508 = pneg %p78
        %p509 = pneg %p102
        %p510 = pneg %p99
        %p511 = pneg %p123
        %p512 = pneg %p120
        %p513 = pneg %p144
        %p514 = pneg %p141
        %p515 = pneg %p165
        %p516 = pneg %p162
        %p517 = pneg %p186
        %p518 = pneg %p183
        %p519 = pneg %p207
        %p520 = pneg %p204
        %p521 = pneg %p228
        %p522 = pneg %p225
        %p523 = pneg %p249
        %p524 = pneg %p246
        %p525 = pneg %p275
        %p526 = pneg %p272
        %s527 = sand.u32 %s262, 1
        %s528 = scalar_lea.sflag [#allocation4], %s527
        %s529 = sand.u32 %s262, 1
        %s530 = smul.addr %s529, 2
        %s531 = scalar_lea.vmem [#allocation19], %s530
        %v533 = vld [vmem:[%s449] sm:$0xff]
        %v534 = vld [vmem:[%s449 + $0x8] sm:$0xff]
        %v535 = vld [vmem:[%s449 + $0x10] sm:$0xff]
        %v536 = vld [vmem:[%s449 + $0x18] sm:$0xff]
        %v537 = vld [vmem:[%s449 + $0x20] sm:$0xff]
        %v538 = vld [vmem:[%s449 + $0x28] sm:$0xff]
        %v539 = vld [vmem:[%s449 + $0x30] sm:$0xff]
        %v540 = vld [vmem:[%s449 + $0x38] sm:$0xff]
        %v541 = vld [vmem:[%s449 + $0x40] sm:$0xff]
        %v542 = vld [vmem:[%s449 + $0x48] sm:$0xff]
        %v543 = vld [vmem:[%s449 + $0x50] sm:$0xff]
        %v544 = vld [vmem:[%s449 + $0x58] sm:$0xff]
        %v545 = vld [vmem:[%s449 + $0x60] sm:$0xff]
        %v546 = vld [vmem:[%s449 + $0x68] sm:$0xff]
        %v547 = vld [vmem:[%s449 + $0x70] sm:$0xff]
        %v548 = vld [vmem:[%s449 + $0x78] sm:$0xff]
        %v549 = vld [vmem:[%s449 + $0x80] sm:$0xff]
        %v550 = vld [vmem:[%s449 + $0x88] sm:$0xff]
        %v551 = vld [vmem:[%s449 + $0x90] sm:$0xff]
        %v552 = vld [vmem:[%s449 + $0x98] sm:$0xff]
        %v553 = vld [vmem:[%s449 + $0xa0] sm:$0xff]
        %v554 = vld [vmem:[%s449 + $0xa8] sm:$0xff]
        %v555 = vld [vmem:[%s449 + $0xb0] sm:$0xff]
        %v556 = vld [vmem:[%s449 + $0xb8] sm:$0xff]
        %v581 = vcombine.high %v533, %v533
        %v583 = vunpack.c.l.s4 1983009808
        %v584 = vunpack.c.0.s8 %v583
        %v585 = vlaneseq
        %v586 = vshrl.u32 %v585, 7
        %v587 = vsub.s32 %v584, %v586
        %v588 = vrot.slane %v533, %v587
        %v590 = vunpack.c.l.s4 1983009808
        %v591 = vunpack.c.0.s8 %v590
        %v592 = vlaneseq
        %v593 = vshrl.u32 %v592, 7
        %v594 = vsub.s32 %v591, %v593
        %v595 = vrot.slane %v581, %v594
        %v596 = vcombine.high %v588, %v588
        %v597 = vcombine.high %v595, %v595
        %v598 = vcombine.high %v534, %v534
        %v600 = vunpack.c.l.s4 1983009808
        %v601 = vunpack.c.0.s8 %v600
        %v602 = vlaneseq
        %v603 = vshrl.u32 %v602, 7
        %v604 = vsub.s32 %v601, %v603
        %v605 = vrot.slane %v534, %v604
        %v607 = vunpack.c.l.s4 1983009808
        %v608 = vunpack.c.0.s8 %v607
        %v609 = vlaneseq
        %v610 = vshrl.u32 %v609, 7
        %v611 = vsub.s32 %v608, %v610
        %v612 = vrot.slane %v598, %v611
        %v613 = vcombine.high %v605, %v605
        %v614 = vcombine.high %v612, %v612
        %v615 = vcombine.high %v535, %v535
        %v617 = vunpack.c.l.s4 1983009808
        %v618 = vunpack.c.0.s8 %v617
        %v619 = vlaneseq
        %v620 = vshrl.u32 %v619, 7
        %v621 = vsub.s32 %v618, %v620
        %v622 = vrot.slane %v535, %v621
        %v624 = vunpack.c.l.s4 1983009808
        %v625 = vunpack.c.0.s8 %v624
        %v626 = vlaneseq
        %v627 = vshrl.u32 %v626, 7
        %v628 = vsub.s32 %v625, %v627
        %v629 = vrot.slane %v615, %v628
        %v630 = vcombine.high %v622, %v622
        %v631 = vcombine.high %v629, %v629
        %v632 = vcombine.high %v536, %v536
        %v634 = vunpack.c.l.s4 1983009808
        %v635 = vunpack.c.0.s8 %v634
        %v636 = vlaneseq
        %v637 = vshrl.u32 %v636, 7
        %v638 = vsub.s32 %v635, %v637
        %v639 = vrot.slane %v536, %v638
        %v641 = vunpack.c.l.s4 1983009808
        %v642 = vunpack.c.0.s8 %v641
        %v643 = vlaneseq
        %v644 = vshrl.u32 %v643, 7
        %v645 = vsub.s32 %v642, %v644
        %v646 = vrot.slane %v632, %v645
        %v647 = vcombine.high %v639, %v639
        %v648 = vcombine.high %v646, %v646
        %v649 = vcombine.high %v537, %v537
        %v651 = vunpack.c.l.s4 1983009808
        %v652 = vunpack.c.0.s8 %v651
        %v653 = vlaneseq
        %v654 = vshrl.u32 %v653, 7
        %v655 = vsub.s32 %v652, %v654
        %v656 = vrot.slane %v537, %v655
        %v658 = vunpack.c.l.s4 1983009808
        %v659 = vunpack.c.0.s8 %v658
        %v660 = vlaneseq
        %v661 = vshrl.u32 %v660, 7
        %v662 = vsub.s32 %v659, %v661
        %v663 = vrot.slane %v649, %v662
        %v664 = vcombine.high %v656, %v656
        %v665 = vcombine.high %v663, %v663
        %v666 = vcombine.high %v538, %v538
        %v668 = vunpack.c.l.s4 1983009808
        %v669 = vunpack.c.0.s8 %v668
        %v670 = vlaneseq
        %v671 = vshrl.u32 %v670, 7
        %v672 = vsub.s32 %v669, %v671
        %v673 = vrot.slane %v538, %v672
        %v675 = vunpack.c.l.s4 1983009808
        %v676 = vunpack.c.0.s8 %v675
        %v677 = vlaneseq
        %v678 = vshrl.u32 %v677, 7
        %v679 = vsub.s32 %v676, %v678
        %v680 = vrot.slane %v666, %v679
        %v681 = vcombine.high %v673, %v673
        %v682 = vcombine.high %v680, %v680
        %v683 = vcombine.high %v539, %v539
        %v685 = vunpack.c.l.s4 1983009808
        %v686 = vunpack.c.0.s8 %v685
        %v687 = vlaneseq
        %v688 = vshrl.u32 %v687, 7
        %v689 = vsub.s32 %v686, %v688
        %v690 = vrot.slane %v539, %v689
        %v692 = vunpack.c.l.s4 1983009808
        %v693 = vunpack.c.0.s8 %v692
        %v694 = vlaneseq
        %v695 = vshrl.u32 %v694, 7
        %v696 = vsub.s32 %v693, %v695
        %v697 = vrot.slane %v683, %v696
        %v698 = vcombine.high %v690, %v690
        %v699 = vcombine.high %v697, %v697
        %v700 = vcombine.high %v540, %v540
        %v702 = vunpack.c.l.s4 1983009808
        %v703 = vunpack.c.0.s8 %v702
        %v704 = vlaneseq
        %v705 = vshrl.u32 %v704, 7
        %v706 = vsub.s32 %v703, %v705
        %v707 = vrot.slane %v540, %v706
        %v709 = vunpack.c.l.s4 1983009808
        %v710 = vunpack.c.0.s8 %v709
        %v711 = vlaneseq
        %v712 = vshrl.u32 %v711, 7
        %v713 = vsub.s32 %v710, %v712
        %v714 = vrot.slane %v700, %v713
        %v715 = vcombine.high %v707, %v707
        %v716 = vcombine.high %v714, %v714
        %v717 = vcombine.high %v541, %v541
        %v719 = vunpack.c.l.s4 1983009808
        %v720 = vunpack.c.0.s8 %v719
        %v721 = vlaneseq
        %v722 = vshrl.u32 %v721, 7
        %v723 = vsub.s32 %v720, %v722
        %v724 = vrot.slane %v541, %v723
        %v726 = vunpack.c.l.s4 1983009808
        %v727 = vunpack.c.0.s8 %v726
        %v728 = vlaneseq
        %v729 = vshrl.u32 %v728, 7
        %v730 = vsub.s32 %v727, %v729
        %v731 = vrot.slane %v717, %v730
        %v732 = vcombine.high %v724, %v724
        %v733 = vcombine.high %v731, %v731
        %v734 = vcombine.high %v542, %v542
        %v736 = vunpack.c.l.s4 1983009808
        %v737 = vunpack.c.0.s8 %v736
        %v738 = vlaneseq
        %v739 = vshrl.u32 %v738, 7
        %v740 = vsub.s32 %v737, %v739
        %v741 = vrot.slane %v542, %v740
        %v743 = vunpack.c.l.s4 1983009808
        %v744 = vunpack.c.0.s8 %v743
        %v745 = vlaneseq
        %v746 = vshrl.u32 %v745, 7
        %v747 = vsub.s32 %v744, %v746
        %v748 = vrot.slane %v734, %v747
        %v749 = vcombine.high %v741, %v741
        %v750 = vcombine.high %v748, %v748
        %v751 = vcombine.high %v543, %v543
        %v753 = vunpack.c.l.s4 1983009808
        %v754 = vunpack.c.0.s8 %v753
        %v755 = vlaneseq
        %v756 = vshrl.u32 %v755, 7
        %v757 = vsub.s32 %v754, %v756
        %v758 = vrot.slane %v543, %v757
        %v760 = vunpack.c.l.s4 1983009808
        %v761 = vunpack.c.0.s8 %v760
        %v762 = vlaneseq
        %v763 = vshrl.u32 %v762, 7
        %v764 = vsub.s32 %v761, %v763
        %v765 = vrot.slane %v751, %v764
        %v766 = vcombine.high %v758, %v758
        %v767 = vcombine.high %v765, %v765
        %v768 = vcombine.high %v544, %v544
        %v770 = vunpack.c.l.s4 1983009808
        %v771 = vunpack.c.0.s8 %v770
        %v772 = vlaneseq
        %v773 = vshrl.u32 %v772, 7
        %v774 = vsub.s32 %v771, %v773
        %v775 = vrot.slane %v544, %v774
        %v777 = vunpack.c.l.s4 1983009808
        %v778 = vunpack.c.0.s8 %v777
        %v779 = vlaneseq
        %v780 = vshrl.u32 %v779, 7
        %v781 = vsub.s32 %v778, %v780
        %v782 = vrot.slane %v768, %v781
        %v783 = vcombine.high %v775, %v775
        %v784 = vcombine.high %v782, %v782
        %v785 = vcombine.high %v545, %v545
        %v787 = vunpack.c.l.s4 1983009808
        %v788 = vunpack.c.0.s8 %v787
        %v789 = vlaneseq
        %v790 = vshrl.u32 %v789, 7
        %v791 = vsub.s32 %v788, %v790
        %v792 = vrot.slane %v545, %v791
        %v794 = vunpack.c.l.s4 1983009808
        %v795 = vunpack.c.0.s8 %v794
        %v796 = vlaneseq
        %v797 = vshrl.u32 %v796, 7
        %v798 = vsub.s32 %v795, %v797
        %v799 = vrot.slane %v785, %v798
        %v800 = vcombine.high %v792, %v792
        %v801 = vcombine.high %v799, %v799
        %v802 = vcombine.high %v546, %v546
        %v804 = vunpack.c.l.s4 1983009808
        %v805 = vunpack.c.0.s8 %v804
        %v806 = vlaneseq
        %v807 = vshrl.u32 %v806, 7
        %v808 = vsub.s32 %v805, %v807
        %v809 = vrot.slane %v546, %v808
        %v811 = vunpack.c.l.s4 1983009808
        %v812 = vunpack.c.0.s8 %v811
        %v813 = vlaneseq
        %v814 = vshrl.u32 %v813, 7
        %v815 = vsub.s32 %v812, %v814
        %v816 = vrot.slane %v802, %v815
        %v817 = vcombine.high %v809, %v809
        %v818 = vcombine.high %v816, %v816
        %v819 = vcombine.high %v547, %v547
        %v821 = vunpack.c.l.s4 1983009808
        %v822 = vunpack.c.0.s8 %v821
        %v823 = vlaneseq
        %v824 = vshrl.u32 %v823, 7
        %v825 = vsub.s32 %v822, %v824
        %v826 = vrot.slane %v547, %v825
        %v828 = vunpack.c.l.s4 1983009808
        %v829 = vunpack.c.0.s8 %v828
        %v830 = vlaneseq
        %v831 = vshrl.u32 %v830, 7
        %v832 = vsub.s32 %v829, %v831
        %v833 = vrot.slane %v819, %v832
        %v834 = vcombine.high %v826, %v826
        %v835 = vcombine.high %v833, %v833
        %v836 = vcombine.high %v548, %v548
        %v838 = vunpack.c.l.s4 1983009808
        %v839 = vunpack.c.0.s8 %v838
        %v840 = vlaneseq
        %v841 = vshrl.u32 %v840, 7
        %v842 = vsub.s32 %v839, %v841
        %v843 = vrot.slane %v548, %v842
        %v845 = vunpack.c.l.s4 1983009808
        %v846 = vunpack.c.0.s8 %v845
        %v847 = vlaneseq
        %v848 = vshrl.u32 %v847, 7
        %v849 = vsub.s32 %v846, %v848
        %v850 = vrot.slane %v836, %v849
        %v851 = vcombine.high %v843, %v843
        %v852 = vcombine.high %v850, %v850
        %v853 = vcombine.high %v549, %v549
        %v855 = vunpack.c.l.s4 1983009808
        %v856 = vunpack.c.0.s8 %v855
        %v857 = vlaneseq
        %v858 = vshrl.u32 %v857, 7
        %v859 = vsub.s32 %v856, %v858
        %v860 = vrot.slane %v549, %v859
        %v862 = vunpack.c.l.s4 1983009808
        %v863 = vunpack.c.0.s8 %v862
        %v864 = vlaneseq
        %v865 = vshrl.u32 %v864, 7
        %v866 = vsub.s32 %v863, %v865
        %v867 = vrot.slane %v853, %v866
        %v868 = vcombine.high %v860, %v860
        %v869 = vcombine.high %v867, %v867
        %v870 = vcombine.high %v550, %v550
        %v872 = vunpack.c.l.s4 1983009808
        %v873 = vunpack.c.0.s8 %v872
        %v874 = vlaneseq
        %v875 = vshrl.u32 %v874, 7
        %v876 = vsub.s32 %v873, %v875
        %v877 = vrot.slane %v550, %v876
        %v879 = vunpack.c.l.s4 1983009808
        %v880 = vunpack.c.0.s8 %v879
        %v881 = vlaneseq
        %v882 = vshrl.u32 %v881, 7
        %v883 = vsub.s32 %v880, %v882
        %v884 = vrot.slane %v870, %v883
        %v885 = vcombine.high %v877, %v877
        %v886 = vcombine.high %v884, %v884
        %v887 = vcombine.high %v551, %v551
        %v889 = vunpack.c.l.s4 1983009808
        %v890 = vunpack.c.0.s8 %v889
        %v891 = vlaneseq
        %v892 = vshrl.u32 %v891, 7
        %v893 = vsub.s32 %v890, %v892
        %v894 = vrot.slane %v551, %v893
        %v896 = vunpack.c.l.s4 1983009808
        %v897 = vunpack.c.0.s8 %v896
        %v898 = vlaneseq
        %v899 = vshrl.u32 %v898, 7
        %v900 = vsub.s32 %v897, %v899
        %v901 = vrot.slane %v887, %v900
        %v902 = vcombine.high %v894, %v894
        %v903 = vcombine.high %v901, %v901
        %v904 = vcombine.high %v552, %v552
        %v906 = vunpack.c.l.s4 1983009808
        %v907 = vunpack.c.0.s8 %v906
        %v908 = vlaneseq
        %v909 = vshrl.u32 %v908, 7
        %v910 = vsub.s32 %v907, %v909
        %v911 = vrot.slane %v552, %v910
        %v913 = vunpack.c.l.s4 1983009808
        %v914 = vunpack.c.0.s8 %v913
        %v915 = vlaneseq
        %v916 = vshrl.u32 %v915, 7
        %v917 = vsub.s32 %v914, %v916
        %v918 = vrot.slane %v904, %v917
        %v919 = vcombine.high %v911, %v911
        %v920 = vcombine.high %v918, %v918
        %v921 = vcombine.high %v553, %v553
        %v923 = vunpack.c.l.s4 1983009808
        %v924 = vunpack.c.0.s8 %v923
        %v925 = vlaneseq
        %v926 = vshrl.u32 %v925, 7
        %v927 = vsub.s32 %v924, %v926
        %v928 = vrot.slane %v553, %v927
        %v930 = vunpack.c.l.s4 1983009808
        %v931 = vunpack.c.0.s8 %v930
        %v932 = vlaneseq
        %v933 = vshrl.u32 %v932, 7
        %v934 = vsub.s32 %v931, %v933
        %v935 = vrot.slane %v921, %v934
        %v936 = vcombine.high %v928, %v928
        %v937 = vcombine.high %v935, %v935
        %v938 = vcombine.high %v554, %v554
        %v940 = vunpack.c.l.s4 1983009808
        %v941 = vunpack.c.0.s8 %v940
        %v942 = vlaneseq
        %v943 = vshrl.u32 %v942, 7
        %v944 = vsub.s32 %v941, %v943
        %v945 = vrot.slane %v554, %v944
        %v947 = vunpack.c.l.s4 1983009808
        %v948 = vunpack.c.0.s8 %v947
        %v949 = vlaneseq
        %v950 = vshrl.u32 %v949, 7
        %v951 = vsub.s32 %v948, %v950
        %v952 = vrot.slane %v938, %v951
        %v953 = vcombine.high %v945, %v945
        %v954 = vcombine.high %v952, %v952
        %v955 = vcombine.high %v555, %v555
        %v957 = vunpack.c.l.s4 1983009808
        %v958 = vunpack.c.0.s8 %v957
        %v959 = vlaneseq
        %v960 = vshrl.u32 %v959, 7
        %v961 = vsub.s32 %v958, %v960
        %v962 = vrot.slane %v555, %v961
        %v964 = vunpack.c.l.s4 1983009808
        %v965 = vunpack.c.0.s8 %v964
        %v966 = vlaneseq
        %v967 = vshrl.u32 %v966, 7
        %v968 = vsub.s32 %v965, %v967
        %v969 = vrot.slane %v955, %v968
        %v970 = vcombine.high %v962, %v962
        %v971 = vcombine.high %v969, %v969
        %v972 = vcombine.high %v556, %v556
        %v974 = vunpack.c.l.s4 1983009808
        %v975 = vunpack.c.0.s8 %v974
        %v976 = vlaneseq
        %v977 = vshrl.u32 %v976, 7
        %v978 = vsub.s32 %v975, %v977
        %v979 = vrot.slane %v556, %v978
        %v981 = vunpack.c.l.s4 1983009808
        %v982 = vunpack.c.0.s8 %v981
        %v983 = vlaneseq
        %v984 = vshrl.u32 %v983, 7
        %v985 = vsub.s32 %v982, %v984
        %v986 = vrot.slane %v972, %v985
        %v987 = vcombine.high %v979, %v979
        %v988 = vcombine.high %v986, %v986
        %v1085 = vpack.c.bf16 %v588, %v588
        %v1086 = vpack.c.bf16 %v596, %v596
        %v1087 = vpack.c.bf16 %v595, %v595
        %v1088 = vpack.c.bf16 %v597, %v597
        %v1089 = vpack.c.bf16 %v605, %v605
        %v1090 = vpack.c.bf16 %v613, %v613
        %v1091 = vpack.c.bf16 %v612, %v612
        %v1092 = vpack.c.bf16 %v614, %v614
        %v1093 = vpack.c.bf16 %v622, %v622
        %v1094 = vpack.c.bf16 %v630, %v630
        %v1095 = vpack.c.bf16 %v629, %v629
        %v1096 = vpack.c.bf16 %v631, %v631
        %v1097 = vpack.c.bf16 %v639, %v639
        %v1098 = vpack.c.bf16 %v647, %v647
        %v1099 = vpack.c.bf16 %v646, %v646
        %v1100 = vpack.c.bf16 %v648, %v648
        %v1101 = vpack.c.bf16 %v656, %v656
        %v1102 = vpack.c.bf16 %v664, %v664
        %v1103 = vpack.c.bf16 %v663, %v663
        %v1104 = vpack.c.bf16 %v665, %v665
        %v1105 = vpack.c.bf16 %v673, %v673
        %v1106 = vpack.c.bf16 %v681, %v681
        %v1107 = vpack.c.bf16 %v680, %v680
        %v1108 = vpack.c.bf16 %v682, %v682
        %v1109 = vpack.c.bf16 %v690, %v690
        %v1110 = vpack.c.bf16 %v698, %v698
        %v1111 = vpack.c.bf16 %v697, %v697
        %v1112 = vpack.c.bf16 %v699, %v699
        %v1113 = vpack.c.bf16 %v707, %v707
        %v1114 = vpack.c.bf16 %v715, %v715
        %v1115 = vpack.c.bf16 %v714, %v714
        %v1116 = vpack.c.bf16 %v716, %v716
        %v1117 = vpack.c.bf16 %v724, %v724
        %v1118 = vpack.c.bf16 %v732, %v732
        %v1119 = vpack.c.bf16 %v731, %v731
        %v1120 = vpack.c.bf16 %v733, %v733
        %v1121 = vpack.c.bf16 %v741, %v741
        %v1122 = vpack.c.bf16 %v749, %v749
        %v1123 = vpack.c.bf16 %v748, %v748
        %v1124 = vpack.c.bf16 %v750, %v750
        %v1125 = vpack.c.bf16 %v758, %v758
        %v1126 = vpack.c.bf16 %v766, %v766
        %v1127 = vpack.c.bf16 %v765, %v765
        %v1128 = vpack.c.bf16 %v767, %v767
        %v1129 = vpack.c.bf16 %v775, %v775
        %v1130 = vpack.c.bf16 %v783, %v783
        %v1131 = vpack.c.bf16 %v782, %v782
        %v1132 = vpack.c.bf16 %v784, %v784
        %v1133 = vpack.c.bf16 %v792, %v792
        %v1134 = vpack.c.bf16 %v800, %v800
        %v1135 = vpack.c.bf16 %v799, %v799
        %v1136 = vpack.c.bf16 %v801, %v801
        %v1137 = vpack.c.bf16 %v809, %v809
        %v1138 = vpack.c.bf16 %v817, %v817
        %v1139 = vpack.c.bf16 %v816, %v816
        %v1140 = vpack.c.bf16 %v818, %v818
        %v1141 = vpack.c.bf16 %v826, %v826
        %v1142 = vpack.c.bf16 %v834, %v834
        %v1143 = vpack.c.bf16 %v833, %v833
        %v1144 = vpack.c.bf16 %v835, %v835
        %v1145 = vpack.c.bf16 %v843, %v843
        %v1146 = vpack.c.bf16 %v851, %v851
        %v1147 = vpack.c.bf16 %v850, %v850
        %v1148 = vpack.c.bf16 %v852, %v852
        %v1149 = vpack.c.bf16 %v860, %v860
        %v1150 = vpack.c.bf16 %v868, %v868
        %v1151 = vpack.c.bf16 %v867, %v867
        %v1152 = vpack.c.bf16 %v869, %v869
        %v1153 = vpack.c.bf16 %v877, %v877
        %v1154 = vpack.c.bf16 %v885, %v885
        %v1155 = vpack.c.bf16 %v884, %v884
        %v1156 = vpack.c.bf16 %v886, %v886
        %v1157 = vpack.c.bf16 %v894, %v894
        %v1158 = vpack.c.bf16 %v902, %v902
        %v1159 = vpack.c.bf16 %v901, %v901
        %v1160 = vpack.c.bf16 %v903, %v903
        %v1161 = vpack.c.bf16 %v911, %v911
        %v1162 = vpack.c.bf16 %v919, %v919
        %v1163 = vpack.c.bf16 %v918, %v918
        %v1164 = vpack.c.bf16 %v920, %v920
        %v1165 = vpack.c.bf16 %v928, %v928
        %v1166 = vpack.c.bf16 %v936, %v936
        %v1167 = vpack.c.bf16 %v935, %v935
        %v1168 = vpack.c.bf16 %v937, %v937
        %v1169 = vpack.c.bf16 %v945, %v945
        %v1170 = vpack.c.bf16 %v953, %v953
        %v1171 = vpack.c.bf16 %v952, %v952
        %v1172 = vpack.c.bf16 %v954, %v954
        %v1173 = vpack.c.bf16 %v962, %v962
        %v1174 = vpack.c.bf16 %v970, %v970
        %v1175 = vpack.c.bf16 %v969, %v969
        %v1176 = vpack.c.bf16 %v971, %v971
        %v1177 = vpack.c.bf16 %v979, %v979
        %v1178 = vpack.c.bf16 %v987, %v987
        %v1179 = vpack.c.bf16 %v986, %v986
        %v1180 = vpack.c.bf16 %v988, %v988
        %v1181 = vld [vmem:[%s458] sm:$0xff]
        %v1182 = vld [vmem:[%s458 + $0x8] sm:$0xff]
        %v1183 = vld [vmem:[%s458 + $0x10] sm:$0xff]
        %v1184 = vld [vmem:[%s458 + $0x18] sm:$0xff]
        %v1185 = vld [vmem:[%s458 + $0x20] sm:$0xff]
        %v1186 = vld [vmem:[%s458 + $0x28] sm:$0xff]
        %v1187 = vld [vmem:[%s458 + $0x30] sm:$0xff]
        %v1188 = vld [vmem:[%s458 + $0x38] sm:$0xff]
        %v1189 = vld [vmem:[%s458 + $0x40] sm:$0xff]
        %v1190 = vld [vmem:[%s458 + $0x48] sm:$0xff]
        %v1191 = vld [vmem:[%s458 + $0x50] sm:$0xff]
        %v1192 = vld [vmem:[%s458 + $0x58] sm:$0xff]
        %v1193 = vld [vmem:[%s458 + $0x60] sm:$0xff]
        %v1194 = vld [vmem:[%s458 + $0x68] sm:$0xff]
        %v1195 = vld [vmem:[%s458 + $0x70] sm:$0xff]
        %v1196 = vld [vmem:[%s458 + $0x78] sm:$0xff]
        %v1197 = vld [vmem:[%s458 + $0x80] sm:$0xff]
        %v1198 = vld [vmem:[%s458 + $0x88] sm:$0xff]
        %v1199 = vld [vmem:[%s458 + $0x90] sm:$0xff]
        %v1200 = vld [vmem:[%s458 + $0x98] sm:$0xff]
        %v1201 = vld [vmem:[%s458 + $0xa0] sm:$0xff]
        %v1202 = vld [vmem:[%s458 + $0xa8] sm:$0xff]
        %v1203 = vld [vmem:[%s458 + $0xb0] sm:$0xff]
        %v1204 = vld [vmem:[%s458 + $0xb8] sm:$0xff]
        %v1205 = vld [vmem:[%s458 + $0xc0] sm:$0xff]
        %v1206 = vld [vmem:[%s458 + $0xc8] sm:$0xff]
        %v1207 = vld [vmem:[%s458 + $0xd0] sm:$0xff]
        %v1208 = vld [vmem:[%s458 + $0xd8] sm:$0xff]
        %v1209 = vld [vmem:[%s458 + $0xe0] sm:$0xff]
        %v1210 = vld [vmem:[%s458 + $0xe8] sm:$0xff]
        %v1211 = vld [vmem:[%s458 + $0xf0] sm:$0xff]
        %v1212 = vld [vmem:[%s458 + $0xf8] sm:$0xff]
        %v1213 = vld [vmem:[%s458 + $0x100] sm:$0xff]
        %v1214 = vld [vmem:[%s458 + $0x108] sm:$0xff]
        %v1215 = vld [vmem:[%s458 + $0x110] sm:$0xff]
        %v1216 = vld [vmem:[%s458 + $0x118] sm:$0xff]
        %v1217 = vld [vmem:[%s458 + $0x120] sm:$0xff]
        %v1218 = vld [vmem:[%s458 + $0x128] sm:$0xff]
        %v1219 = vld [vmem:[%s458 + $0x130] sm:$0xff]
        %v1220 = vld [vmem:[%s458 + $0x138] sm:$0xff]
        %v1221 = vld [vmem:[%s458 + $0x140] sm:$0xff]
        %v1222 = vld [vmem:[%s458 + $0x148] sm:$0xff]
        %v1223 = vld [vmem:[%s458 + $0x150] sm:$0xff]
        %v1224 = vld [vmem:[%s458 + $0x158] sm:$0xff]
        %v1225 = vld [vmem:[%s458 + $0x160] sm:$0xff]
        %v1226 = vld [vmem:[%s458 + $0x168] sm:$0xff]
        %v1227 = vld [vmem:[%s458 + $0x170] sm:$0xff]
        %v1228 = vld [vmem:[%s458 + $0x178] sm:$0xff]
        %v1229 = vld [vmem:[%s458 + $0x180] sm:$0xff]
        %v1230 = vld [vmem:[%s458 + $0x188] sm:$0xff]
        %v1231 = vld [vmem:[%s458 + $0x190] sm:$0xff]
        %v1232 = vld [vmem:[%s458 + $0x198] sm:$0xff]
        %v1233 = vld [vmem:[%s458 + $0x1a0] sm:$0xff]
        %v1234 = vld [vmem:[%s458 + $0x1a8] sm:$0xff]
        %v1235 = vld [vmem:[%s458 + $0x1b0] sm:$0xff]
        %v1236 = vld [vmem:[%s458 + $0x1b8] sm:$0xff]
        %v1237 = vld [vmem:[%s458 + $0x1c0] sm:$0xff]
        %v1238 = vld [vmem:[%s458 + $0x1c8] sm:$0xff]
        %v1239 = vld [vmem:[%s458 + $0x1d0] sm:$0xff]
        %v1240 = vld [vmem:[%s458 + $0x1d8] sm:$0xff]
        %v1241 = vld [vmem:[%s458 + $0x1e0] sm:$0xff]
        %v1242 = vld [vmem:[%s458 + $0x1e8] sm:$0xff]
        %v1243 = vld [vmem:[%s458 + $0x1f0] sm:$0xff]
        %v1244 = vld [vmem:[%s458 + $0x1f8] sm:$0xff]
        %v1245 = vld [vmem:[%s458 + $0x200] sm:$0xff]
        %v1246 = vld [vmem:[%s458 + $0x208] sm:$0xff]
        %v1247 = vld [vmem:[%s458 + $0x210] sm:$0xff]
        %v1248 = vld [vmem:[%s458 + $0x218] sm:$0xff]
        %v1249 = vld [vmem:[%s458 + $0x220] sm:$0xff]
        %v1250 = vld [vmem:[%s458 + $0x228] sm:$0xff]
        %v1251 = vld [vmem:[%s458 + $0x230] sm:$0xff]
        %v1252 = vld [vmem:[%s458 + $0x238] sm:$0xff]
        %v1253 = vld [vmem:[%s458 + $0x240] sm:$0xff]
        %v1254 = vld [vmem:[%s458 + $0x248] sm:$0xff]
        %v1255 = vld [vmem:[%s458 + $0x250] sm:$0xff]
        %v1256 = vld [vmem:[%s458 + $0x258] sm:$0xff]
        %v1257 = vld [vmem:[%s458 + $0x260] sm:$0xff]
        %v1258 = vld [vmem:[%s458 + $0x268] sm:$0xff]
        %v1259 = vld [vmem:[%s458 + $0x270] sm:$0xff]
        %v1260 = vld [vmem:[%s458 + $0x278] sm:$0xff]
        %v1261 = vld [vmem:[%s458 + $0x280] sm:$0xff]
        %v1262 = vld [vmem:[%s458 + $0x288] sm:$0xff]
        %v1263 = vld [vmem:[%s458 + $0x290] sm:$0xff]
        %v1264 = vld [vmem:[%s458 + $0x298] sm:$0xff]
        %v1265 = vld [vmem:[%s458 + $0x2a0] sm:$0xff]
        %v1266 = vld [vmem:[%s458 + $0x2a8] sm:$0xff]
        %v1267 = vld [vmem:[%s458 + $0x2b0] sm:$0xff]
        %v1268 = vld [vmem:[%s458 + $0x2b8] sm:$0xff]
        %v1269 = vld [vmem:[%s458 + $0x2c0] sm:$0xff]
        %v1270 = vld [vmem:[%s458 + $0x2c8] sm:$0xff]
        %v1271 = vld [vmem:[%s458 + $0x2d0] sm:$0xff]
        %v1272 = vld [vmem:[%s458 + $0x2d8] sm:$0xff]
        %v1273 = vld [vmem:[%s458 + $0x2e0] sm:$0xff]
        %v1274 = vld [vmem:[%s458 + $0x2e8] sm:$0xff]
        %v1275 = vld [vmem:[%s458 + $0x2f0] sm:$0xff]
        %v1276 = vld [vmem:[%s458 + $0x2f8] sm:$0xff]
        %v1277 = vld [vmem:[%s458 + $0x300] sm:$0xff]
        %v1278 = vld [vmem:[%s458 + $0x308] sm:$0xff]
        %v1279 = vld [vmem:[%s458 + $0x310] sm:$0xff]
        %v1280 = vld [vmem:[%s458 + $0x318] sm:$0xff]
        %v1281 = vld [vmem:[%s458 + $0x320] sm:$0xff]
        %v1282 = vld [vmem:[%s458 + $0x328] sm:$0xff]
        %v1283 = vld [vmem:[%s458 + $0x330] sm:$0xff]
        %v1284 = vld [vmem:[%s458 + $0x338] sm:$0xff]
        %v1285 = vld [vmem:[%s458 + $0x340] sm:$0xff]
        %v1286 = vld [vmem:[%s458 + $0x348] sm:$0xff]
        %v1287 = vld [vmem:[%s458 + $0x350] sm:$0xff]
        %v1288 = vld [vmem:[%s458 + $0x358] sm:$0xff]
        %v1289 = vld [vmem:[%s458 + $0x360] sm:$0xff]
        %v1290 = vld [vmem:[%s458 + $0x368] sm:$0xff]
        %v1291 = vld [vmem:[%s458 + $0x370] sm:$0xff]
        %v1292 = vld [vmem:[%s458 + $0x378] sm:$0xff]
        %v1293 = vld [vmem:[%s458 + $0x380] sm:$0xff]
        %v1294 = vld [vmem:[%s458 + $0x388] sm:$0xff]
        %v1295 = vld [vmem:[%s458 + $0x390] sm:$0xff]
        %v1296 = vld [vmem:[%s458 + $0x398] sm:$0xff]
        %v1297 = vld [vmem:[%s458 + $0x3a0] sm:$0xff]
        %v1298 = vld [vmem:[%s458 + $0x3a8] sm:$0xff]
        %v1299 = vld [vmem:[%s458 + $0x3b0] sm:$0xff]
        %v1300 = vld [vmem:[%s458 + $0x3b8] sm:$0xff]
        %v1301 = vld [vmem:[%s458 + $0x3c0] sm:$0xff]
        %v1302 = vld [vmem:[%s458 + $0x3c8] sm:$0xff]
        %v1303 = vld [vmem:[%s458 + $0x3d0] sm:$0xff]
        %v1304 = vld [vmem:[%s458 + $0x3d8] sm:$0xff]
        %v1305 = vld [vmem:[%s458 + $0x3e0] sm:$0xff]
        %v1306 = vld [vmem:[%s458 + $0x3e8] sm:$0xff]
        %v1307 = vld [vmem:[%s458 + $0x3f0] sm:$0xff]
        %v1308 = vld [vmem:[%s458 + $0x3f8] sm:$0xff]
        %v1309 = vld [vmem:[%s458 + $0x400] sm:$0xff]
        %v1310 = vld [vmem:[%s458 + $0x408] sm:$0xff]
        %v1311 = vld [vmem:[%s458 + $0x410] sm:$0xff]
        %v1312 = vld [vmem:[%s458 + $0x418] sm:$0xff]
        %v1313 = vld [vmem:[%s458 + $0x420] sm:$0xff]
        %v1314 = vld [vmem:[%s458 + $0x428] sm:$0xff]
        %v1315 = vld [vmem:[%s458 + $0x430] sm:$0xff]
        %v1316 = vld [vmem:[%s458 + $0x438] sm:$0xff]
        %v1317 = vld [vmem:[%s458 + $0x440] sm:$0xff]
        %v1318 = vld [vmem:[%s458 + $0x448] sm:$0xff]
        %v1319 = vld [vmem:[%s458 + $0x450] sm:$0xff]
        %v1320 = vld [vmem:[%s458 + $0x458] sm:$0xff]
        %v1321 = vld [vmem:[%s458 + $0x460] sm:$0xff]
        %v1322 = vld [vmem:[%s458 + $0x468] sm:$0xff]
        %v1323 = vld [vmem:[%s458 + $0x470] sm:$0xff]
        %v1324 = vld [vmem:[%s458 + $0x478] sm:$0xff]
        %v1325 = vld [vmem:[%s458 + $0x480] sm:$0xff]
        %v1326 = vld [vmem:[%s458 + $0x488] sm:$0xff]
        %v1327 = vld [vmem:[%s458 + $0x490] sm:$0xff]
        %v1328 = vld [vmem:[%s458 + $0x498] sm:$0xff]
        %v1329 = vld [vmem:[%s458 + $0x4a0] sm:$0xff]
        %v1330 = vld [vmem:[%s458 + $0x4a8] sm:$0xff]
        %v1331 = vld [vmem:[%s458 + $0x4b0] sm:$0xff]
        %v1332 = vld [vmem:[%s458 + $0x4b8] sm:$0xff]
        %v1333 = vld [vmem:[%s458 + $0x4c0] sm:$0xff]
        %v1334 = vld [vmem:[%s458 + $0x4c8] sm:$0xff]
        %v1335 = vld [vmem:[%s458 + $0x4d0] sm:$0xff]
        %v1336 = vld [vmem:[%s458 + $0x4d8] sm:$0xff]
        %v1337 = vld [vmem:[%s458 + $0x4e0] sm:$0xff]
        %v1338 = vld [vmem:[%s458 + $0x4e8] sm:$0xff]
        %v1339 = vld [vmem:[%s458 + $0x4f0] sm:$0xff]
        %v1340 = vld [vmem:[%s458 + $0x4f8] sm:$0xff]
        %v1341 = vld [vmem:[%s458 + $0x500] sm:$0xff]
        %v1342 = vld [vmem:[%s458 + $0x508] sm:$0xff]
        %v1343 = vld [vmem:[%s458 + $0x510] sm:$0xff]
        %v1344 = vld [vmem:[%s458 + $0x518] sm:$0xff]
        %v1345 = vld [vmem:[%s458 + $0x520] sm:$0xff]
        %v1346 = vld [vmem:[%s458 + $0x528] sm:$0xff]
        %v1347 = vld [vmem:[%s458 + $0x530] sm:$0xff]
        %v1348 = vld [vmem:[%s458 + $0x538] sm:$0xff]
        %v1349 = vld [vmem:[%s458 + $0x540] sm:$0xff]
        %v1350 = vld [vmem:[%s458 + $0x548] sm:$0xff]
        %v1351 = vld [vmem:[%s458 + $0x550] sm:$0xff]
        %v1352 = vld [vmem:[%s458 + $0x558] sm:$0xff]
        %v1353 = vld [vmem:[%s458 + $0x560] sm:$0xff]
        %v1354 = vld [vmem:[%s458 + $0x568] sm:$0xff]
        %v1355 = vld [vmem:[%s458 + $0x570] sm:$0xff]
        %v1356 = vld [vmem:[%s458 + $0x578] sm:$0xff]
        %v1357 = vld [vmem:[%s458 + $0x580] sm:$0xff]
        %v1358 = vld [vmem:[%s458 + $0x588] sm:$0xff]
        %v1359 = vld [vmem:[%s458 + $0x590] sm:$0xff]
        %v1360 = vld [vmem:[%s458 + $0x598] sm:$0xff]
        %v1361 = vld [vmem:[%s458 + $0x5a0] sm:$0xff]
        %v1362 = vld [vmem:[%s458 + $0x5a8] sm:$0xff]
        %v1363 = vld [vmem:[%s458 + $0x5b0] sm:$0xff]
        %v1364 = vld [vmem:[%s458 + $0x5b8] sm:$0xff]
        %v1365 = vld [vmem:[%s458 + $0x5c0] sm:$0xff]
        %v1366 = vld [vmem:[%s458 + $0x5c8] sm:$0xff]
        %v1367 = vld [vmem:[%s458 + $0x5d0] sm:$0xff]
        %v1368 = vld [vmem:[%s458 + $0x5d8] sm:$0xff]
        %v1369 = vld [vmem:[%s458 + $0x5e0] sm:$0xff]
        %v1370 = vld [vmem:[%s458 + $0x5e8] sm:$0xff]
        %v1371 = vld [vmem:[%s458 + $0x5f0] sm:$0xff]
        %v1372 = vld [vmem:[%s458 + $0x5f8] sm:$0xff]
        %v1373 = vld [vmem:[%s458 + $0x600] sm:$0xff]
        %v1374 = vld [vmem:[%s458 + $0x608] sm:$0xff]
        %v1375 = vld [vmem:[%s458 + $0x610] sm:$0xff]
        %v1376 = vld [vmem:[%s458 + $0x618] sm:$0xff]
        %v1377 = vld [vmem:[%s458 + $0x620] sm:$0xff]
        %v1378 = vld [vmem:[%s458 + $0x628] sm:$0xff]
        %v1379 = vld [vmem:[%s458 + $0x630] sm:$0xff]
        %v1380 = vld [vmem:[%s458 + $0x638] sm:$0xff]
        %v1381 = vld [vmem:[%s458 + $0x640] sm:$0xff]
        %v1382 = vld [vmem:[%s458 + $0x648] sm:$0xff]
        %v1383 = vld [vmem:[%s458 + $0x650] sm:$0xff]
        %v1384 = vld [vmem:[%s458 + $0x658] sm:$0xff]
        %v1385 = vld [vmem:[%s458 + $0x660] sm:$0xff]
        %v1386 = vld [vmem:[%s458 + $0x668] sm:$0xff]
        %v1387 = vld [vmem:[%s458 + $0x670] sm:$0xff]
        %v1388 = vld [vmem:[%s458 + $0x678] sm:$0xff]
        %v1389 = vld [vmem:[%s458 + $0x680] sm:$0xff]
        %v1390 = vld [vmem:[%s458 + $0x688] sm:$0xff]
        %v1391 = vld [vmem:[%s458 + $0x690] sm:$0xff]
        %v1392 = vld [vmem:[%s458 + $0x698] sm:$0xff]
        %v1393 = vld [vmem:[%s458 + $0x6a0] sm:$0xff]
        %v1394 = vld [vmem:[%s458 + $0x6a8] sm:$0xff]
        %v1395 = vld [vmem:[%s458 + $0x6b0] sm:$0xff]
        %v1396 = vld [vmem:[%s458 + $0x6b8] sm:$0xff]
        %v1397 = vld [vmem:[%s458 + $0x6c0] sm:$0xff]
        %v1398 = vld [vmem:[%s458 + $0x6c8] sm:$0xff]
        %v1399 = vld [vmem:[%s458 + $0x6d0] sm:$0xff]
        %v1400 = vld [vmem:[%s458 + $0x6d8] sm:$0xff]
        %v1401 = vld [vmem:[%s458 + $0x6e0] sm:$0xff]
        %v1402 = vld [vmem:[%s458 + $0x6e8] sm:$0xff]
        %v1403 = vld [vmem:[%s458 + $0x6f0] sm:$0xff]
        %v1404 = vld [vmem:[%s458 + $0x6f8] sm:$0xff]
        %v1405 = vld [vmem:[%s458 + $0x700] sm:$0xff]
        %v1406 = vld [vmem:[%s458 + $0x708] sm:$0xff]
        %v1407 = vld [vmem:[%s458 + $0x710] sm:$0xff]
        %v1408 = vld [vmem:[%s458 + $0x718] sm:$0xff]
        %v1409 = vld [vmem:[%s458 + $0x720] sm:$0xff]
        %v1410 = vld [vmem:[%s458 + $0x728] sm:$0xff]
        %v1411 = vld [vmem:[%s458 + $0x730] sm:$0xff]
        %v1412 = vld [vmem:[%s458 + $0x738] sm:$0xff]
        %v1413 = vld [vmem:[%s458 + $0x740] sm:$0xff]
        %v1414 = vld [vmem:[%s458 + $0x748] sm:$0xff]
        %v1415 = vld [vmem:[%s458 + $0x750] sm:$0xff]
        %v1416 = vld [vmem:[%s458 + $0x758] sm:$0xff]
        %v1417 = vld [vmem:[%s458 + $0x760] sm:$0xff]
        %v1418 = vld [vmem:[%s458 + $0x768] sm:$0xff]
        %v1419 = vld [vmem:[%s458 + $0x770] sm:$0xff]
        %v1420 = vld [vmem:[%s458 + $0x778] sm:$0xff]
        %v1421 = vld [vmem:[%s458 + $0x780] sm:$0xff]
        %v1422 = vld [vmem:[%s458 + $0x788] sm:$0xff]
        %v1423 = vld [vmem:[%s458 + $0x790] sm:$0xff]
        %v1424 = vld [vmem:[%s458 + $0x798] sm:$0xff]
        %v1425 = vld [vmem:[%s458 + $0x7a0] sm:$0xff]
        %v1426 = vld [vmem:[%s458 + $0x7a8] sm:$0xff]
        %v1427 = vld [vmem:[%s458 + $0x7b0] sm:$0xff]
        %v1428 = vld [vmem:[%s458 + $0x7b8] sm:$0xff]
        %v1429 = vld [vmem:[%s458 + $0x7c0] sm:$0xff]
        %v1430 = vld [vmem:[%s458 + $0x7c8] sm:$0xff]
        %v1431 = vld [vmem:[%s458 + $0x7d0] sm:$0xff]
        %v1432 = vld [vmem:[%s458 + $0x7d8] sm:$0xff]
        %v1433 = vld [vmem:[%s458 + $0x7e0] sm:$0xff]
        %v1434 = vld [vmem:[%s458 + $0x7e8] sm:$0xff]
        %v1435 = vld [vmem:[%s458 + $0x7f0] sm:$0xff]
        %v1436 = vld [vmem:[%s458 + $0x7f8] sm:$0xff]
        %v1437 = vld [vmem:[%s458 + $0x800] sm:$0xff]
        %v1438 = vld [vmem:[%s458 + $0x808] sm:$0xff]
        %v1439 = vld [vmem:[%s458 + $0x810] sm:$0xff]
        %v1440 = vld [vmem:[%s458 + $0x818] sm:$0xff]
        %v1441 = vld [vmem:[%s458 + $0x820] sm:$0xff]
        %v1442 = vld [vmem:[%s458 + $0x828] sm:$0xff]
        %v1443 = vld [vmem:[%s458 + $0x830] sm:$0xff]
        %v1444 = vld [vmem:[%s458 + $0x838] sm:$0xff]
        %v1445 = vld [vmem:[%s458 + $0x840] sm:$0xff]
        %v1446 = vld [vmem:[%s458 + $0x848] sm:$0xff]
        %v1447 = vld [vmem:[%s458 + $0x850] sm:$0xff]
        %v1448 = vld [vmem:[%s458 + $0x858] sm:$0xff]
        %v1449 = vld [vmem:[%s458 + $0x860] sm:$0xff]
        %v1450 = vld [vmem:[%s458 + $0x868] sm:$0xff]
        %v1451 = vld [vmem:[%s458 + $0x870] sm:$0xff]
        %v1452 = vld [vmem:[%s458 + $0x878] sm:$0xff]
        %v1453 = vld [vmem:[%s458 + $0x880] sm:$0xff]
        %v1454 = vld [vmem:[%s458 + $0x888] sm:$0xff]
        %v1455 = vld [vmem:[%s458 + $0x890] sm:$0xff]
        %v1456 = vld [vmem:[%s458 + $0x898] sm:$0xff]
        %v1457 = vld [vmem:[%s458 + $0x8a0] sm:$0xff]
        %v1458 = vld [vmem:[%s458 + $0x8a8] sm:$0xff]
        %v1459 = vld [vmem:[%s458 + $0x8b0] sm:$0xff]
        %v1460 = vld [vmem:[%s458 + $0x8b8] sm:$0xff]
        %v1461 = vld [vmem:[%s458 + $0x8c0] sm:$0xff]
        %v1462 = vld [vmem:[%s458 + $0x8c8] sm:$0xff]
        %v1463 = vld [vmem:[%s458 + $0x8d0] sm:$0xff]
        %v1464 = vld [vmem:[%s458 + $0x8d8] sm:$0xff]
        %v1465 = vld [vmem:[%s458 + $0x8e0] sm:$0xff]
        %v1466 = vld [vmem:[%s458 + $0x8e8] sm:$0xff]
        %v1467 = vld [vmem:[%s458 + $0x8f0] sm:$0xff]
        %v1468 = vld [vmem:[%s458 + $0x8f8] sm:$0xff]
        %v1469 = vld [vmem:[%s458 + $0x900] sm:$0xff]
        %v1470 = vld [vmem:[%s458 + $0x908] sm:$0xff]
        %v1471 = vld [vmem:[%s458 + $0x910] sm:$0xff]
        %v1472 = vld [vmem:[%s458 + $0x918] sm:$0xff]
        %v1473 = vld [vmem:[%s458 + $0x920] sm:$0xff]
        %v1474 = vld [vmem:[%s458 + $0x928] sm:$0xff]
        %v1475 = vld [vmem:[%s458 + $0x930] sm:$0xff]
        %v1476 = vld [vmem:[%s458 + $0x938] sm:$0xff]
        %v1477 = vld [vmem:[%s458 + $0x940] sm:$0xff]
        %v1478 = vld [vmem:[%s458 + $0x948] sm:$0xff]
        %v1479 = vld [vmem:[%s458 + $0x950] sm:$0xff]
        %v1480 = vld [vmem:[%s458 + $0x958] sm:$0xff]
        %v1481 = vld [vmem:[%s458 + $0x960] sm:$0xff]
        %v1482 = vld [vmem:[%s458 + $0x968] sm:$0xff]
        %v1483 = vld [vmem:[%s458 + $0x970] sm:$0xff]
        %v1484 = vld [vmem:[%s458 + $0x978] sm:$0xff]
        %v1485 = vld [vmem:[%s458 + $0x980] sm:$0xff]
        %v1486 = vld [vmem:[%s458 + $0x988] sm:$0xff]
        %v1487 = vld [vmem:[%s458 + $0x990] sm:$0xff]
        %v1488 = vld [vmem:[%s458 + $0x998] sm:$0xff]
        %v1489 = vld [vmem:[%s458 + $0x9a0] sm:$0xff]
        %v1490 = vld [vmem:[%s458 + $0x9a8] sm:$0xff]
        %v1491 = vld [vmem:[%s458 + $0x9b0] sm:$0xff]
        %v1492 = vld [vmem:[%s458 + $0x9b8] sm:$0xff]
        %v1493 = vld [vmem:[%s458 + $0x9c0] sm:$0xff]
        %v1494 = vld [vmem:[%s458 + $0x9c8] sm:$0xff]
        %v1495 = vld [vmem:[%s458 + $0x9d0] sm:$0xff]
        %v1496 = vld [vmem:[%s458 + $0x9d8] sm:$0xff]
        %v1497 = vld [vmem:[%s458 + $0x9e0] sm:$0xff]
        %v1498 = vld [vmem:[%s458 + $0x9e8] sm:$0xff]
        %v1499 = vld [vmem:[%s458 + $0x9f0] sm:$0xff]
        %v1500 = vld [vmem:[%s458 + $0x9f8] sm:$0xff]
        %v1501 = vld [vmem:[%s458 + $0xa00] sm:$0xff]
        %v1502 = vld [vmem:[%s458 + $0xa08] sm:$0xff]
        %v1503 = vld [vmem:[%s458 + $0xa10] sm:$0xff]
        %v1504 = vld [vmem:[%s458 + $0xa18] sm:$0xff]
        %v1505 = vld [vmem:[%s458 + $0xa20] sm:$0xff]
        %v1506 = vld [vmem:[%s458 + $0xa28] sm:$0xff]
        %v1507 = vld [vmem:[%s458 + $0xa30] sm:$0xff]
        %v1508 = vld [vmem:[%s458 + $0xa38] sm:$0xff]
        %v1509 = vld [vmem:[%s458 + $0xa40] sm:$0xff]
        %v1510 = vld [vmem:[%s458 + $0xa48] sm:$0xff]
        %v1511 = vld [vmem:[%s458 + $0xa50] sm:$0xff]
        %v1512 = vld [vmem:[%s458 + $0xa58] sm:$0xff]
        %v1513 = vld [vmem:[%s458 + $0xa60] sm:$0xff]
        %v1514 = vld [vmem:[%s458 + $0xa68] sm:$0xff]
        %v1515 = vld [vmem:[%s458 + $0xa70] sm:$0xff]
        %v1516 = vld [vmem:[%s458 + $0xa78] sm:$0xff]
        %v1517 = vld [vmem:[%s458 + $0xa80] sm:$0xff]
        %v1518 = vld [vmem:[%s458 + $0xa88] sm:$0xff]
        %v1519 = vld [vmem:[%s458 + $0xa90] sm:$0xff]
        %v1520 = vld [vmem:[%s458 + $0xa98] sm:$0xff]
        %v1521 = vld [vmem:[%s458 + $0xaa0] sm:$0xff]
        %v1522 = vld [vmem:[%s458 + $0xaa8] sm:$0xff]
        %v1523 = vld [vmem:[%s458 + $0xab0] sm:$0xff]
        %v1524 = vld [vmem:[%s458 + $0xab8] sm:$0xff]
        %v1525 = vld [vmem:[%s458 + $0xac0] sm:$0xff]
        %v1526 = vld [vmem:[%s458 + $0xac8] sm:$0xff]
        %v1527 = vld [vmem:[%s458 + $0xad0] sm:$0xff]
        %v1528 = vld [vmem:[%s458 + $0xad8] sm:$0xff]
        %v1529 = vld [vmem:[%s458 + $0xae0] sm:$0xff]
        %v1530 = vld [vmem:[%s458 + $0xae8] sm:$0xff]
        %v1531 = vld [vmem:[%s458 + $0xaf0] sm:$0xff]
        %v1532 = vld [vmem:[%s458 + $0xaf8] sm:$0xff]
        %v1533 = vld [vmem:[%s458 + $0xb00] sm:$0xff]
        %v1534 = vld [vmem:[%s458 + $0xb08] sm:$0xff]
        %v1535 = vld [vmem:[%s458 + $0xb10] sm:$0xff]
        %v1536 = vld [vmem:[%s458 + $0xb18] sm:$0xff]
        %v1537 = vld [vmem:[%s458 + $0xb20] sm:$0xff]
        %v1538 = vld [vmem:[%s458 + $0xb28] sm:$0xff]
        %v1539 = vld [vmem:[%s458 + $0xb30] sm:$0xff]
        %v1540 = vld [vmem:[%s458 + $0xb38] sm:$0xff]
        %v1541 = vld [vmem:[%s458 + $0xb40] sm:$0xff]
        %v1542 = vld [vmem:[%s458 + $0xb48] sm:$0xff]
        %v1543 = vld [vmem:[%s458 + $0xb50] sm:$0xff]
        %v1544 = vld [vmem:[%s458 + $0xb58] sm:$0xff]
        %v1545 = vld [vmem:[%s458 + $0xb60] sm:$0xff]
        %v1546 = vld [vmem:[%s458 + $0xb68] sm:$0xff]
        %v1547 = vld [vmem:[%s458 + $0xb70] sm:$0xff]
        %v1548 = vld [vmem:[%s458 + $0xb78] sm:$0xff]
        %v1549 = vld [vmem:[%s458 + $0xb80] sm:$0xff]
        %v1550 = vld [vmem:[%s458 + $0xb88] sm:$0xff]
        %v1551 = vld [vmem:[%s458 + $0xb90] sm:$0xff]
        %v1552 = vld [vmem:[%s458 + $0xb98] sm:$0xff]
        %v1553 = vld [vmem:[%s458 + $0xba0] sm:$0xff]
        %v1554 = vld [vmem:[%s458 + $0xba8] sm:$0xff]
        %v1555 = vld [vmem:[%s458 + $0xbb0] sm:$0xff]
        %v1556 = vld [vmem:[%s458 + $0xbb8] sm:$0xff]
        %v1557 = vld [vmem:[%s458 + $0xbc0] sm:$0xff]
        %v1558 = vld [vmem:[%s458 + $0xbc8] sm:$0xff]
        %v1559 = vld [vmem:[%s458 + $0xbd0] sm:$0xff]
        %v1560 = vld [vmem:[%s458 + $0xbd8] sm:$0xff]
        %v1561 = vld [vmem:[%s458 + $0xbe0] sm:$0xff]
        %v1562 = vld [vmem:[%s458 + $0xbe8] sm:$0xff]
        %v1563 = vld [vmem:[%s458 + $0xbf0] sm:$0xff]
        %v1564 = vld [vmem:[%s458 + $0xbf8] sm:$0xff]
        %v1565 = vunpack.c.l.s8.bf16 %v1181
        %v1566 = vunpack.c.h.s8.bf16 %v1181
        %v1567 = vunpack.c.l.s8.bf16 %v1182
        %v1568 = vunpack.c.h.s8.bf16 %v1182
        %v1569 = vunpack.c.l.s8.bf16 %v1183
        %v1570 = vunpack.c.h.s8.bf16 %v1183
        %v1571 = vunpack.c.l.s8.bf16 %v1184
        %v1572 = vunpack.c.h.s8.bf16 %v1184
        %v1573 = vunpack.c.l.s8.bf16 %v1185
        %v1574 = vunpack.c.h.s8.bf16 %v1185
        %v1575 = vunpack.c.l.s8.bf16 %v1186
        %v1576 = vunpack.c.h.s8.bf16 %v1186
        %v1577 = vunpack.c.l.s8.bf16 %v1187
        %v1578 = vunpack.c.h.s8.bf16 %v1187
        %v1579 = vunpack.c.l.s8.bf16 %v1188
        %v1580 = vunpack.c.h.s8.bf16 %v1188
        %v1581 = vunpack.c.l.s8.bf16 %v1189
        %v1582 = vunpack.c.h.s8.bf16 %v1189
        %v1583 = vunpack.c.l.s8.bf16 %v1190
        %v1584 = vunpack.c.h.s8.bf16 %v1190
        %v1585 = vunpack.c.l.s8.bf16 %v1191
        %v1586 = vunpack.c.h.s8.bf16 %v1191
        %v1587 = vunpack.c.l.s8.bf16 %v1192
        %v1588 = vunpack.c.h.s8.bf16 %v1192
        %v1589 = vunpack.c.l.s8.bf16 %v1193
        %v1590 = vunpack.c.h.s8.bf16 %v1193
        %v1591 = vunpack.c.l.s8.bf16 %v1194
        %v1592 = vunpack.c.h.s8.bf16 %v1194
        %v1593 = vunpack.c.l.s8.bf16 %v1195
        %v1594 = vunpack.c.h.s8.bf16 %v1195
        %v1595 = vunpack.c.l.s8.bf16 %v1196
        %v1596 = vunpack.c.h.s8.bf16 %v1196
        %v1597 = vunpack.c.l.s8.bf16 %v1197
        %v1598 = vunpack.c.h.s8.bf16 %v1197
        %v1599 = vunpack.c.l.s8.bf16 %v1198
        %v1600 = vunpack.c.h.s8.bf16 %v1198
        %v1601 = vunpack.c.l.s8.bf16 %v1199
        %v1602 = vunpack.c.h.s8.bf16 %v1199
        %v1603 = vunpack.c.l.s8.bf16 %v1200
        %v1604 = vunpack.c.h.s8.bf16 %v1200
        %v1605 = vunpack.c.l.s8.bf16 %v1201
        %v1606 = vunpack.c.h.s8.bf16 %v1201
        %v1607 = vunpack.c.l.s8.bf16 %v1202
        %v1608 = vunpack.c.h.s8.bf16 %v1202
        %v1609 = vunpack.c.l.s8.bf16 %v1203
        %v1610 = vunpack.c.h.s8.bf16 %v1203
        %v1611 = vunpack.c.l.s8.bf16 %v1204
        %v1612 = vunpack.c.h.s8.bf16 %v1204
        %v1613 = vunpack.c.l.s8.bf16 %v1205
        %v1614 = vunpack.c.h.s8.bf16 %v1205
        %v1615 = vunpack.c.l.s8.bf16 %v1206
        %v1616 = vunpack.c.h.s8.bf16 %v1206
        %v1617 = vunpack.c.l.s8.bf16 %v1207
        %v1618 = vunpack.c.h.s8.bf16 %v1207
        %v1619 = vunpack.c.l.s8.bf16 %v1208
        %v1620 = vunpack.c.h.s8.bf16 %v1208
        %v1621 = vunpack.c.l.s8.bf16 %v1209
        %v1622 = vunpack.c.h.s8.bf16 %v1209
        %v1623 = vunpack.c.l.s8.bf16 %v1210
        %v1624 = vunpack.c.h.s8.bf16 %v1210
        %v1625 = vunpack.c.l.s8.bf16 %v1211
        %v1626 = vunpack.c.h.s8.bf16 %v1211
        %v1627 = vunpack.c.l.s8.bf16 %v1212
        %v1628 = vunpack.c.h.s8.bf16 %v1212
        %v1629 = vunpack.c.l.s8.bf16 %v1213
        %v1630 = vunpack.c.h.s8.bf16 %v1213
        %v1631 = vunpack.c.l.s8.bf16 %v1214
        %v1632 = vunpack.c.h.s8.bf16 %v1214
        %v1633 = vunpack.c.l.s8.bf16 %v1215
        %v1634 = vunpack.c.h.s8.bf16 %v1215
        %v1635 = vunpack.c.l.s8.bf16 %v1216
        %v1636 = vunpack.c.h.s8.bf16 %v1216
        %v1637 = vunpack.c.l.s8.bf16 %v1217
        %v1638 = vunpack.c.h.s8.bf16 %v1217
        %v1639 = vunpack.c.l.s8.bf16 %v1218
        %v1640 = vunpack.c.h.s8.bf16 %v1218
        %v1641 = vunpack.c.l.s8.bf16 %v1219
        %v1642 = vunpack.c.h.s8.bf16 %v1219
        %v1643 = vunpack.c.l.s8.bf16 %v1220
        %v1644 = vunpack.c.h.s8.bf16 %v1220
        %v1645 = vunpack.c.l.s8.bf16 %v1221
        %v1646 = vunpack.c.h.s8.bf16 %v1221
        %v1647 = vunpack.c.l.s8.bf16 %v1222
        %v1648 = vunpack.c.h.s8.bf16 %v1222
        %v1649 = vunpack.c.l.s8.bf16 %v1223
        %v1650 = vunpack.c.h.s8.bf16 %v1223
        %v1651 = vunpack.c.l.s8.bf16 %v1224
        %v1652 = vunpack.c.h.s8.bf16 %v1224
        %v1653 = vunpack.c.l.s8.bf16 %v1225
        %v1654 = vunpack.c.h.s8.bf16 %v1225
        %v1655 = vunpack.c.l.s8.bf16 %v1226
        %v1656 = vunpack.c.h.s8.bf16 %v1226
        %v1657 = vunpack.c.l.s8.bf16 %v1227
        %v1658 = vunpack.c.h.s8.bf16 %v1227
        %v1659 = vunpack.c.l.s8.bf16 %v1228
        %v1660 = vunpack.c.h.s8.bf16 %v1228
        %v1661 = vunpack.c.l.s8.bf16 %v1229
        %v1662 = vunpack.c.h.s8.bf16 %v1229
        %v1663 = vunpack.c.l.s8.bf16 %v1230
        %v1664 = vunpack.c.h.s8.bf16 %v1230
        %v1665 = vunpack.c.l.s8.bf16 %v1231
        %v1666 = vunpack.c.h.s8.bf16 %v1231
        %v1667 = vunpack.c.l.s8.bf16 %v1232
        %v1668 = vunpack.c.h.s8.bf16 %v1232
        %v1669 = vunpack.c.l.s8.bf16 %v1233
        %v1670 = vunpack.c.h.s8.bf16 %v1233
        %v1671 = vunpack.c.l.s8.bf16 %v1234
        %v1672 = vunpack.c.h.s8.bf16 %v1234
        %v1673 = vunpack.c.l.s8.bf16 %v1235
        %v1674 = vunpack.c.h.s8.bf16 %v1235
        %v1675 = vunpack.c.l.s8.bf16 %v1236
        %v1676 = vunpack.c.h.s8.bf16 %v1236
        %v1677 = vunpack.c.l.s8.bf16 %v1237
        %v1678 = vunpack.c.h.s8.bf16 %v1237
        %v1679 = vunpack.c.l.s8.bf16 %v1238
        %v1680 = vunpack.c.h.s8.bf16 %v1238
        %v1681 = vunpack.c.l.s8.bf16 %v1239
        %v1682 = vunpack.c.h.s8.bf16 %v1239
        %v1683 = vunpack.c.l.s8.bf16 %v1240
        %v1684 = vunpack.c.h.s8.bf16 %v1240
        %v1685 = vunpack.c.l.s8.bf16 %v1241
        %v1686 = vunpack.c.h.s8.bf16 %v1241
        %v1687 = vunpack.c.l.s8.bf16 %v1242
        %v1688 = vunpack.c.h.s8.bf16 %v1242
        %v1689 = vunpack.c.l.s8.bf16 %v1243
        %v1690 = vunpack.c.h.s8.bf16 %v1243
        %v1691 = vunpack.c.l.s8.bf16 %v1244
        %v1692 = vunpack.c.h.s8.bf16 %v1244
        %v1693 = vunpack.c.l.s8.bf16 %v1245
        %v1694 = vunpack.c.h.s8.bf16 %v1245
        %v1695 = vunpack.c.l.s8.bf16 %v1246
        %v1696 = vunpack.c.h.s8.bf16 %v1246
        %v1697 = vunpack.c.l.s8.bf16 %v1247
        %v1698 = vunpack.c.h.s8.bf16 %v1247
        %v1699 = vunpack.c.l.s8.bf16 %v1248
        %v1700 = vunpack.c.h.s8.bf16 %v1248
        %v1701 = vunpack.c.l.s8.bf16 %v1249
        %v1702 = vunpack.c.h.s8.bf16 %v1249
        %v1703 = vunpack.c.l.s8.bf16 %v1250
        %v1704 = vunpack.c.h.s8.bf16 %v1250
        %v1705 = vunpack.c.l.s8.bf16 %v1251
        %v1706 = vunpack.c.h.s8.bf16 %v1251
        %v1707 = vunpack.c.l.s8.bf16 %v1252
        %v1708 = vunpack.c.h.s8.bf16 %v1252
        %v1709 = vunpack.c.l.s8.bf16 %v1253
        %v1710 = vunpack.c.h.s8.bf16 %v1253
        %v1711 = vunpack.c.l.s8.bf16 %v1254
        %v1712 = vunpack.c.h.s8.bf16 %v1254
        %v1713 = vunpack.c.l.s8.bf16 %v1255
        %v1714 = vunpack.c.h.s8.bf16 %v1255
        %v1715 = vunpack.c.l.s8.bf16 %v1256
        %v1716 = vunpack.c.h.s8.bf16 %v1256
        %v1717 = vunpack.c.l.s8.bf16 %v1257
        %v1718 = vunpack.c.h.s8.bf16 %v1257
        %v1719 = vunpack.c.l.s8.bf16 %v1258
        %v1720 = vunpack.c.h.s8.bf16 %v1258
        %v1721 = vunpack.c.l.s8.bf16 %v1259
        %v1722 = vunpack.c.h.s8.bf16 %v1259
        %v1723 = vunpack.c.l.s8.bf16 %v1260
        %v1724 = vunpack.c.h.s8.bf16 %v1260
        %v1725 = vunpack.c.l.s8.bf16 %v1261
        %v1726 = vunpack.c.h.s8.bf16 %v1261
        %v1727 = vunpack.c.l.s8.bf16 %v1262
        %v1728 = vunpack.c.h.s8.bf16 %v1262
        %v1729 = vunpack.c.l.s8.bf16 %v1263
        %v1730 = vunpack.c.h.s8.bf16 %v1263
        %v1731 = vunpack.c.l.s8.bf16 %v1264
        %v1732 = vunpack.c.h.s8.bf16 %v1264
        %v1733 = vunpack.c.l.s8.bf16 %v1265
        %v1734 = vunpack.c.h.s8.bf16 %v1265
        %v1735 = vunpack.c.l.s8.bf16 %v1266
        %v1736 = vunpack.c.h.s8.bf16 %v1266
        %v1737 = vunpack.c.l.s8.bf16 %v1267
        %v1738 = vunpack.c.h.s8.bf16 %v1267
        %v1739 = vunpack.c.l.s8.bf16 %v1268
        %v1740 = vunpack.c.h.s8.bf16 %v1268
        %v1741 = vunpack.c.l.s8.bf16 %v1269
        %v1742 = vunpack.c.h.s8.bf16 %v1269
        %v1743 = vunpack.c.l.s8.bf16 %v1270
        %v1744 = vunpack.c.h.s8.bf16 %v1270
        %v1745 = vunpack.c.l.s8.bf16 %v1271
        %v1746 = vunpack.c.h.s8.bf16 %v1271
        %v1747 = vunpack.c.l.s8.bf16 %v1272
        %v1748 = vunpack.c.h.s8.bf16 %v1272
        %v1749 = vunpack.c.l.s8.bf16 %v1273
        %v1750 = vunpack.c.h.s8.bf16 %v1273
        %v1751 = vunpack.c.l.s8.bf16 %v1274
        %v1752 = vunpack.c.h.s8.bf16 %v1274
        %v1753 = vunpack.c.l.s8.bf16 %v1275
        %v1754 = vunpack.c.h.s8.bf16 %v1275
        %v1755 = vunpack.c.l.s8.bf16 %v1276
        %v1756 = vunpack.c.h.s8.bf16 %v1276
        %v1757 = vunpack.c.l.s8.bf16 %v1277
        %v1758 = vunpack.c.h.s8.bf16 %v1277
        %v1759 = vunpack.c.l.s8.bf16 %v1278
        %v1760 = vunpack.c.h.s8.bf16 %v1278
        %v1761 = vunpack.c.l.s8.bf16 %v1279
        %v1762 = vunpack.c.h.s8.bf16 %v1279
        %v1763 = vunpack.c.l.s8.bf16 %v1280
        %v1764 = vunpack.c.h.s8.bf16 %v1280
        %v1765 = vunpack.c.l.s8.bf16 %v1281
        %v1766 = vunpack.c.h.s8.bf16 %v1281
        %v1767 = vunpack.c.l.s8.bf16 %v1282
        %v1768 = vunpack.c.h.s8.bf16 %v1282
        %v1769 = vunpack.c.l.s8.bf16 %v1283
        %v1770 = vunpack.c.h.s8.bf16 %v1283
        %v1771 = vunpack.c.l.s8.bf16 %v1284
        %v1772 = vunpack.c.h.s8.bf16 %v1284
        %v1773 = vunpack.c.l.s8.bf16 %v1285
        %v1774 = vunpack.c.h.s8.bf16 %v1285
        %v1775 = vunpack.c.l.s8.bf16 %v1286
        %v1776 = vunpack.c.h.s8.bf16 %v1286
        %v1777 = vunpack.c.l.s8.bf16 %v1287
        %v1778 = vunpack.c.h.s8.bf16 %v1287
        %v1779 = vunpack.c.l.s8.bf16 %v1288
        %v1780 = vunpack.c.h.s8.bf16 %v1288
        %v1781 = vunpack.c.l.s8.bf16 %v1289
        %v1782 = vunpack.c.h.s8.bf16 %v1289
        %v1783 = vunpack.c.l.s8.bf16 %v1290
        %v1784 = vunpack.c.h.s8.bf16 %v1290
        %v1785 = vunpack.c.l.s8.bf16 %v1291
        %v1786 = vunpack.c.h.s8.bf16 %v1291
        %v1787 = vunpack.c.l.s8.bf16 %v1292
        %v1788 = vunpack.c.h.s8.bf16 %v1292
        %v1789 = vunpack.c.l.s8.bf16 %v1293
        %v1790 = vunpack.c.h.s8.bf16 %v1293
        %v1791 = vunpack.c.l.s8.bf16 %v1294
        %v1792 = vunpack.c.h.s8.bf16 %v1294
        %v1793 = vunpack.c.l.s8.bf16 %v1295
        %v1794 = vunpack.c.h.s8.bf16 %v1295
        %v1795 = vunpack.c.l.s8.bf16 %v1296
        %v1796 = vunpack.c.h.s8.bf16 %v1296
        %v1797 = vunpack.c.l.s8.bf16 %v1297
        %v1798 = vunpack.c.h.s8.bf16 %v1297
        %v1799 = vunpack.c.l.s8.bf16 %v1298
        %v1800 = vunpack.c.h.s8.bf16 %v1298
        %v1801 = vunpack.c.l.s8.bf16 %v1299
        %v1802 = vunpack.c.h.s8.bf16 %v1299
        %v1803 = vunpack.c.l.s8.bf16 %v1300
        %v1804 = vunpack.c.h.s8.bf16 %v1300
        %v1805 = vunpack.c.l.s8.bf16 %v1301
        %v1806 = vunpack.c.h.s8.bf16 %v1301
        %v1807 = vunpack.c.l.s8.bf16 %v1302
        %v1808 = vunpack.c.h.s8.bf16 %v1302
        %v1809 = vunpack.c.l.s8.bf16 %v1303
        %v1810 = vunpack.c.h.s8.bf16 %v1303
        %v1811 = vunpack.c.l.s8.bf16 %v1304
        %v1812 = vunpack.c.h.s8.bf16 %v1304
        %v1813 = vunpack.c.l.s8.bf16 %v1305
        %v1814 = vunpack.c.h.s8.bf16 %v1305
        %v1815 = vunpack.c.l.s8.bf16 %v1306
        %v1816 = vunpack.c.h.s8.bf16 %v1306
        %v1817 = vunpack.c.l.s8.bf16 %v1307
        %v1818 = vunpack.c.h.s8.bf16 %v1307
        %v1819 = vunpack.c.l.s8.bf16 %v1308
        %v1820 = vunpack.c.h.s8.bf16 %v1308
        %v1821 = vunpack.c.l.s8.bf16 %v1309
        %v1822 = vunpack.c.h.s8.bf16 %v1309
        %v1823 = vunpack.c.l.s8.bf16 %v1310
        %v1824 = vunpack.c.h.s8.bf16 %v1310
        %v1825 = vunpack.c.l.s8.bf16 %v1311
        %v1826 = vunpack.c.h.s8.bf16 %v1311
        %v1827 = vunpack.c.l.s8.bf16 %v1312
        %v1828 = vunpack.c.h.s8.bf16 %v1312
        %v1829 = vunpack.c.l.s8.bf16 %v1313
        %v1830 = vunpack.c.h.s8.bf16 %v1313
        %v1831 = vunpack.c.l.s8.bf16 %v1314
        %v1832 = vunpack.c.h.s8.bf16 %v1314
        %v1833 = vunpack.c.l.s8.bf16 %v1315
        %v1834 = vunpack.c.h.s8.bf16 %v1315
        %v1835 = vunpack.c.l.s8.bf16 %v1316
        %v1836 = vunpack.c.h.s8.bf16 %v1316
        %v1837 = vunpack.c.l.s8.bf16 %v1317
        %v1838 = vunpack.c.h.s8.bf16 %v1317
        %v1839 = vunpack.c.l.s8.bf16 %v1318
        %v1840 = vunpack.c.h.s8.bf16 %v1318
        %v1841 = vunpack.c.l.s8.bf16 %v1319
        %v1842 = vunpack.c.h.s8.bf16 %v1319
        %v1843 = vunpack.c.l.s8.bf16 %v1320
        %v1844 = vunpack.c.h.s8.bf16 %v1320
        %v1845 = vunpack.c.l.s8.bf16 %v1321
        %v1846 = vunpack.c.h.s8.bf16 %v1321
        %v1847 = vunpack.c.l.s8.bf16 %v1322
        %v1848 = vunpack.c.h.s8.bf16 %v1322
        %v1849 = vunpack.c.l.s8.bf16 %v1323
        %v1850 = vunpack.c.h.s8.bf16 %v1323
        %v1851 = vunpack.c.l.s8.bf16 %v1324
        %v1852 = vunpack.c.h.s8.bf16 %v1324
        %v1853 = vunpack.c.l.s8.bf16 %v1325
        %v1854 = vunpack.c.h.s8.bf16 %v1325
        %v1855 = vunpack.c.l.s8.bf16 %v1326
        %v1856 = vunpack.c.h.s8.bf16 %v1326
        %v1857 = vunpack.c.l.s8.bf16 %v1327
        %v1858 = vunpack.c.h.s8.bf16 %v1327
        %v1859 = vunpack.c.l.s8.bf16 %v1328
        %v1860 = vunpack.c.h.s8.bf16 %v1328
        %v1861 = vunpack.c.l.s8.bf16 %v1329
        %v1862 = vunpack.c.h.s8.bf16 %v1329
        %v1863 = vunpack.c.l.s8.bf16 %v1330
        %v1864 = vunpack.c.h.s8.bf16 %v1330
        %v1865 = vunpack.c.l.s8.bf16 %v1331
        %v1866 = vunpack.c.h.s8.bf16 %v1331
        %v1867 = vunpack.c.l.s8.bf16 %v1332
        %v1868 = vunpack.c.h.s8.bf16 %v1332
        %v1869 = vunpack.c.l.s8.bf16 %v1333
        %v1870 = vunpack.c.h.s8.bf16 %v1333
        %v1871 = vunpack.c.l.s8.bf16 %v1334
        %v1872 = vunpack.c.h.s8.bf16 %v1334
        %v1873 = vunpack.c.l.s8.bf16 %v1335
        %v1874 = vunpack.c.h.s8.bf16 %v1335
        %v1875 = vunpack.c.l.s8.bf16 %v1336
        %v1876 = vunpack.c.h.s8.bf16 %v1336
        %v1877 = vunpack.c.l.s8.bf16 %v1337
        %v1878 = vunpack.c.h.s8.bf16 %v1337
        %v1879 = vunpack.c.l.s8.bf16 %v1338
        %v1880 = vunpack.c.h.s8.bf16 %v1338
        %v1881 = vunpack.c.l.s8.bf16 %v1339
        %v1882 = vunpack.c.h.s8.bf16 %v1339
        %v1883 = vunpack.c.l.s8.bf16 %v1340
        %v1884 = vunpack.c.h.s8.bf16 %v1340
        %v1885 = vunpack.c.l.s8.bf16 %v1341
        %v1886 = vunpack.c.h.s8.bf16 %v1341
        %v1887 = vunpack.c.l.s8.bf16 %v1342
        %v1888 = vunpack.c.h.s8.bf16 %v1342
        %v1889 = vunpack.c.l.s8.bf16 %v1343
        %v1890 = vunpack.c.h.s8.bf16 %v1343
        %v1891 = vunpack.c.l.s8.bf16 %v1344
        %v1892 = vunpack.c.h.s8.bf16 %v1344
        %v1893 = vunpack.c.l.s8.bf16 %v1345
        %v1894 = vunpack.c.h.s8.bf16 %v1345
        %v1895 = vunpack.c.l.s8.bf16 %v1346
        %v1896 = vunpack.c.h.s8.bf16 %v1346
        %v1897 = vunpack.c.l.s8.bf16 %v1347
        %v1898 = vunpack.c.h.s8.bf16 %v1347
        %v1899 = vunpack.c.l.s8.bf16 %v1348
        %v1900 = vunpack.c.h.s8.bf16 %v1348
        %v1901 = vunpack.c.l.s8.bf16 %v1349
        %v1902 = vunpack.c.h.s8.bf16 %v1349
        %v1903 = vunpack.c.l.s8.bf16 %v1350
        %v1904 = vunpack.c.h.s8.bf16 %v1350
        %v1905 = vunpack.c.l.s8.bf16 %v1351
        %v1906 = vunpack.c.h.s8.bf16 %v1351
        %v1907 = vunpack.c.l.s8.bf16 %v1352
        %v1908 = vunpack.c.h.s8.bf16 %v1352
        %v1909 = vunpack.c.l.s8.bf16 %v1353
        %v1910 = vunpack.c.h.s8.bf16 %v1353
        %v1911 = vunpack.c.l.s8.bf16 %v1354
        %v1912 = vunpack.c.h.s8.bf16 %v1354
        %v1913 = vunpack.c.l.s8.bf16 %v1355
        %v1914 = vunpack.c.h.s8.bf16 %v1355
        %v1915 = vunpack.c.l.s8.bf16 %v1356
        %v1916 = vunpack.c.h.s8.bf16 %v1356
        %v1917 = vunpack.c.l.s8.bf16 %v1357
        %v1918 = vunpack.c.h.s8.bf16 %v1357
        %v1919 = vunpack.c.l.s8.bf16 %v1358
        %v1920 = vunpack.c.h.s8.bf16 %v1358
        %v1921 = vunpack.c.l.s8.bf16 %v1359
        %v1922 = vunpack.c.h.s8.bf16 %v1359
        %v1923 = vunpack.c.l.s8.bf16 %v1360
        %v1924 = vunpack.c.h.s8.bf16 %v1360
        %v1925 = vunpack.c.l.s8.bf16 %v1361
        %v1926 = vunpack.c.h.s8.bf16 %v1361
        %v1927 = vunpack.c.l.s8.bf16 %v1362
        %v1928 = vunpack.c.h.s8.bf16 %v1362
        %v1929 = vunpack.c.l.s8.bf16 %v1363
        %v1930 = vunpack.c.h.s8.bf16 %v1363
        %v1931 = vunpack.c.l.s8.bf16 %v1364
        %v1932 = vunpack.c.h.s8.bf16 %v1364
        %v1933 = vunpack.c.l.s8.bf16 %v1365
        %v1934 = vunpack.c.h.s8.bf16 %v1365
        %v1935 = vunpack.c.l.s8.bf16 %v1366
        %v1936 = vunpack.c.h.s8.bf16 %v1366
        %v1937 = vunpack.c.l.s8.bf16 %v1367
        %v1938 = vunpack.c.h.s8.bf16 %v1367
        %v1939 = vunpack.c.l.s8.bf16 %v1368
        %v1940 = vunpack.c.h.s8.bf16 %v1368
        %v1941 = vunpack.c.l.s8.bf16 %v1369
        %v1942 = vunpack.c.h.s8.bf16 %v1369
        %v1943 = vunpack.c.l.s8.bf16 %v1370
        %v1944 = vunpack.c.h.s8.bf16 %v1370
        %v1945 = vunpack.c.l.s8.bf16 %v1371
        %v1946 = vunpack.c.h.s8.bf16 %v1371
        %v1947 = vunpack.c.l.s8.bf16 %v1372
        %v1948 = vunpack.c.h.s8.bf16 %v1372
        %v1949 = vunpack.c.l.s8.bf16 %v1373
        %v1950 = vunpack.c.h.s8.bf16 %v1373
        %v1951 = vunpack.c.l.s8.bf16 %v1374
        %v1952 = vunpack.c.h.s8.bf16 %v1374
        %v1953 = vunpack.c.l.s8.bf16 %v1375
        %v1954 = vunpack.c.h.s8.bf16 %v1375
        %v1955 = vunpack.c.l.s8.bf16 %v1376
        %v1956 = vunpack.c.h.s8.bf16 %v1376
        %v1957 = vunpack.c.l.s8.bf16 %v1377
        %v1958 = vunpack.c.h.s8.bf16 %v1377
        %v1959 = vunpack.c.l.s8.bf16 %v1378
        %v1960 = vunpack.c.h.s8.bf16 %v1378
        %v1961 = vunpack.c.l.s8.bf16 %v1379
        %v1962 = vunpack.c.h.s8.bf16 %v1379
        %v1963 = vunpack.c.l.s8.bf16 %v1380
        %v1964 = vunpack.c.h.s8.bf16 %v1380
        %v1965 = vunpack.c.l.s8.bf16 %v1381
        %v1966 = vunpack.c.h.s8.bf16 %v1381
        %v1967 = vunpack.c.l.s8.bf16 %v1382
        %v1968 = vunpack.c.h.s8.bf16 %v1382
        %v1969 = vunpack.c.l.s8.bf16 %v1383
        %v1970 = vunpack.c.h.s8.bf16 %v1383
        %v1971 = vunpack.c.l.s8.bf16 %v1384
        %v1972 = vunpack.c.h.s8.bf16 %v1384
        %v1973 = vunpack.c.l.s8.bf16 %v1385
        %v1974 = vunpack.c.h.s8.bf16 %v1385
        %v1975 = vunpack.c.l.s8.bf16 %v1386
        %v1976 = vunpack.c.h.s8.bf16 %v1386
        %v1977 = vunpack.c.l.s8.bf16 %v1387
        %v1978 = vunpack.c.h.s8.bf16 %v1387
        %v1979 = vunpack.c.l.s8.bf16 %v1388
        %v1980 = vunpack.c.h.s8.bf16 %v1388
        %v1981 = vunpack.c.l.s8.bf16 %v1389
        %v1982 = vunpack.c.h.s8.bf16 %v1389
        %v1983 = vunpack.c.l.s8.bf16 %v1390
        %v1984 = vunpack.c.h.s8.bf16 %v1390
        %v1985 = vunpack.c.l.s8.bf16 %v1391
        %v1986 = vunpack.c.h.s8.bf16 %v1391
        %v1987 = vunpack.c.l.s8.bf16 %v1392
        %v1988 = vunpack.c.h.s8.bf16 %v1392
        %v1989 = vunpack.c.l.s8.bf16 %v1393
        %v1990 = vunpack.c.h.s8.bf16 %v1393
        %v1991 = vunpack.c.l.s8.bf16 %v1394
        %v1992 = vunpack.c.h.s8.bf16 %v1394
        %v1993 = vunpack.c.l.s8.bf16 %v1395
        %v1994 = vunpack.c.h.s8.bf16 %v1395
        %v1995 = vunpack.c.l.s8.bf16 %v1396
        %v1996 = vunpack.c.h.s8.bf16 %v1396
        %v1997 = vunpack.c.l.s8.bf16 %v1397
        %v1998 = vunpack.c.h.s8.bf16 %v1397
        %v1999 = vunpack.c.l.s8.bf16 %v1398
        %v2000 = vunpack.c.h.s8.bf16 %v1398
        %v2001 = vunpack.c.l.s8.bf16 %v1399
        %v2002 = vunpack.c.h.s8.bf16 %v1399
        %v2003 = vunpack.c.l.s8.bf16 %v1400
        %v2004 = vunpack.c.h.s8.bf16 %v1400
        %v2005 = vunpack.c.l.s8.bf16 %v1401
        %v2006 = vunpack.c.h.s8.bf16 %v1401
        %v2007 = vunpack.c.l.s8.bf16 %v1402
        %v2008 = vunpack.c.h.s8.bf16 %v1402
        %v2009 = vunpack.c.l.s8.bf16 %v1403
        %v2010 = vunpack.c.h.s8.bf16 %v1403
        %v2011 = vunpack.c.l.s8.bf16 %v1404
        %v2012 = vunpack.c.h.s8.bf16 %v1404
        %v2013 = vunpack.c.l.s8.bf16 %v1405
        %v2014 = vunpack.c.h.s8.bf16 %v1405
        %v2015 = vunpack.c.l.s8.bf16 %v1406
        %v2016 = vunpack.c.h.s8.bf16 %v1406
        %v2017 = vunpack.c.l.s8.bf16 %v1407
        %v2018 = vunpack.c.h.s8.bf16 %v1407
        %v2019 = vunpack.c.l.s8.bf16 %v1408
        %v2020 = vunpack.c.h.s8.bf16 %v1408
        %v2021 = vunpack.c.l.s8.bf16 %v1409
        %v2022 = vunpack.c.h.s8.bf16 %v1409
        %v2023 = vunpack.c.l.s8.bf16 %v1410
        %v2024 = vunpack.c.h.s8.bf16 %v1410
        %v2025 = vunpack.c.l.s8.bf16 %v1411
        %v2026 = vunpack.c.h.s8.bf16 %v1411
        %v2027 = vunpack.c.l.s8.bf16 %v1412
        %v2028 = vunpack.c.h.s8.bf16 %v1412
        %v2029 = vunpack.c.l.s8.bf16 %v1413
        %v2030 = vunpack.c.h.s8.bf16 %v1413
        %v2031 = vunpack.c.l.s8.bf16 %v1414
        %v2032 = vunpack.c.h.s8.bf16 %v1414
        %v2033 = vunpack.c.l.s8.bf16 %v1415
        %v2034 = vunpack.c.h.s8.bf16 %v1415
        %v2035 = vunpack.c.l.s8.bf16 %v1416
        %v2036 = vunpack.c.h.s8.bf16 %v1416
        %v2037 = vunpack.c.l.s8.bf16 %v1417
        %v2038 = vunpack.c.h.s8.bf16 %v1417
        %v2039 = vunpack.c.l.s8.bf16 %v1418
        %v2040 = vunpack.c.h.s8.bf16 %v1418
        %v2041 = vunpack.c.l.s8.bf16 %v1419
        %v2042 = vunpack.c.h.s8.bf16 %v1419
        %v2043 = vunpack.c.l.s8.bf16 %v1420
        %v2044 = vunpack.c.h.s8.bf16 %v1420
        %v2045 = vunpack.c.l.s8.bf16 %v1421
        %v2046 = vunpack.c.h.s8.bf16 %v1421
        %v2047 = vunpack.c.l.s8.bf16 %v1422
        %v2048 = vunpack.c.h.s8.bf16 %v1422
        %v2049 = vunpack.c.l.s8.bf16 %v1423
        %v2050 = vunpack.c.h.s8.bf16 %v1423
        %v2051 = vunpack.c.l.s8.bf16 %v1424
        %v2052 = vunpack.c.h.s8.bf16 %v1424
        %v2053 = vunpack.c.l.s8.bf16 %v1425
        %v2054 = vunpack.c.h.s8.bf16 %v1425
        %v2055 = vunpack.c.l.s8.bf16 %v1426
        %v2056 = vunpack.c.h.s8.bf16 %v1426
        %v2057 = vunpack.c.l.s8.bf16 %v1427
        %v2058 = vunpack.c.h.s8.bf16 %v1427
        %v2059 = vunpack.c.l.s8.bf16 %v1428
        %v2060 = vunpack.c.h.s8.bf16 %v1428
        %v2061 = vunpack.c.l.s8.bf16 %v1429
        %v2062 = vunpack.c.h.s8.bf16 %v1429
        %v2063 = vunpack.c.l.s8.bf16 %v1430
        %v2064 = vunpack.c.h.s8.bf16 %v1430
        %v2065 = vunpack.c.l.s8.bf16 %v1431
        %v2066 = vunpack.c.h.s8.bf16 %v1431
        %v2067 = vunpack.c.l.s8.bf16 %v1432
        %v2068 = vunpack.c.h.s8.bf16 %v1432
        %v2069 = vunpack.c.l.s8.bf16 %v1433
        %v2070 = vunpack.c.h.s8.bf16 %v1433
        %v2071 = vunpack.c.l.s8.bf16 %v1434
        %v2072 = vunpack.c.h.s8.bf16 %v1434
        %v2073 = vunpack.c.l.s8.bf16 %v1435
        %v2074 = vunpack.c.h.s8.bf16 %v1435
        %v2075 = vunpack.c.l.s8.bf16 %v1436
        %v2076 = vunpack.c.h.s8.bf16 %v1436
        %v2077 = vunpack.c.l.s8.bf16 %v1437
        %v2078 = vunpack.c.h.s8.bf16 %v1437
        %v2079 = vunpack.c.l.s8.bf16 %v1438
        %v2080 = vunpack.c.h.s8.bf16 %v1438
        %v2081 = vunpack.c.l.s8.bf16 %v1439
        %v2082 = vunpack.c.h.s8.bf16 %v1439
        %v2083 = vunpack.c.l.s8.bf16 %v1440
        %v2084 = vunpack.c.h.s8.bf16 %v1440
        %v2085 = vunpack.c.l.s8.bf16 %v1441
        %v2086 = vunpack.c.h.s8.bf16 %v1441
        %v2087 = vunpack.c.l.s8.bf16 %v1442
        %v2088 = vunpack.c.h.s8.bf16 %v1442
        %v2089 = vunpack.c.l.s8.bf16 %v1443
        %v2090 = vunpack.c.h.s8.bf16 %v1443
        %v2091 = vunpack.c.l.s8.bf16 %v1444
        %v2092 = vunpack.c.h.s8.bf16 %v1444
        %v2093 = vunpack.c.l.s8.bf16 %v1445
        %v2094 = vunpack.c.h.s8.bf16 %v1445
        %v2095 = vunpack.c.l.s8.bf16 %v1446
        %v2096 = vunpack.c.h.s8.bf16 %v1446
        %v2097 = vunpack.c.l.s8.bf16 %v1447
        %v2098 = vunpack.c.h.s8.bf16 %v1447
        %v2099 = vunpack.c.l.s8.bf16 %v1448
        %v2100 = vunpack.c.h.s8.bf16 %v1448
        %v2101 = vunpack.c.l.s8.bf16 %v1449
        %v2102 = vunpack.c.h.s8.bf16 %v1449
        %v2103 = vunpack.c.l.s8.bf16 %v1450
        %v2104 = vunpack.c.h.s8.bf16 %v1450
        %v2105 = vunpack.c.l.s8.bf16 %v1451
        %v2106 = vunpack.c.h.s8.bf16 %v1451
        %v2107 = vunpack.c.l.s8.bf16 %v1452
        %v2108 = vunpack.c.h.s8.bf16 %v1452
        %v2109 = vunpack.c.l.s8.bf16 %v1453
        %v2110 = vunpack.c.h.s8.bf16 %v1453
        %v2111 = vunpack.c.l.s8.bf16 %v1454
        %v2112 = vunpack.c.h.s8.bf16 %v1454
        %v2113 = vunpack.c.l.s8.bf16 %v1455
        %v2114 = vunpack.c.h.s8.bf16 %v1455
        %v2115 = vunpack.c.l.s8.bf16 %v1456
        %v2116 = vunpack.c.h.s8.bf16 %v1456
        %v2117 = vunpack.c.l.s8.bf16 %v1457
        %v2118 = vunpack.c.h.s8.bf16 %v1457
        %v2119 = vunpack.c.l.s8.bf16 %v1458
        %v2120 = vunpack.c.h.s8.bf16 %v1458
        %v2121 = vunpack.c.l.s8.bf16 %v1459
        %v2122 = vunpack.c.h.s8.bf16 %v1459
        %v2123 = vunpack.c.l.s8.bf16 %v1460
        %v2124 = vunpack.c.h.s8.bf16 %v1460
        %v2125 = vunpack.c.l.s8.bf16 %v1461
        %v2126 = vunpack.c.h.s8.bf16 %v1461
        %v2127 = vunpack.c.l.s8.bf16 %v1462
        %v2128 = vunpack.c.h.s8.bf16 %v1462
        %v2129 = vunpack.c.l.s8.bf16 %v1463
        %v2130 = vunpack.c.h.s8.bf16 %v1463
        %v2131 = vunpack.c.l.s8.bf16 %v1464
        %v2132 = vunpack.c.h.s8.bf16 %v1464
        %v2133 = vunpack.c.l.s8.bf16 %v1465
        %v2134 = vunpack.c.h.s8.bf16 %v1465
        %v2135 = vunpack.c.l.s8.bf16 %v1466
        %v2136 = vunpack.c.h.s8.bf16 %v1466
        %v2137 = vunpack.c.l.s8.bf16 %v1467
        %v2138 = vunpack.c.h.s8.bf16 %v1467
        %v2139 = vunpack.c.l.s8.bf16 %v1468
        %v2140 = vunpack.c.h.s8.bf16 %v1468
        %v2141 = vunpack.c.l.s8.bf16 %v1469
        %v2142 = vunpack.c.h.s8.bf16 %v1469
        %v2143 = vunpack.c.l.s8.bf16 %v1470
        %v2144 = vunpack.c.h.s8.bf16 %v1470
        %v2145 = vunpack.c.l.s8.bf16 %v1471
        %v2146 = vunpack.c.h.s8.bf16 %v1471
        %v2147 = vunpack.c.l.s8.bf16 %v1472
        %v2148 = vunpack.c.h.s8.bf16 %v1472
        %v2149 = vunpack.c.l.s8.bf16 %v1473
        %v2150 = vunpack.c.h.s8.bf16 %v1473
        %v2151 = vunpack.c.l.s8.bf16 %v1474
        %v2152 = vunpack.c.h.s8.bf16 %v1474
        %v2153 = vunpack.c.l.s8.bf16 %v1475
        %v2154 = vunpack.c.h.s8.bf16 %v1475
        %v2155 = vunpack.c.l.s8.bf16 %v1476
        %v2156 = vunpack.c.h.s8.bf16 %v1476
        %v2157 = vunpack.c.l.s8.bf16 %v1477
        %v2158 = vunpack.c.h.s8.bf16 %v1477
        %v2159 = vunpack.c.l.s8.bf16 %v1478
        %v2160 = vunpack.c.h.s8.bf16 %v1478
        %v2161 = vunpack.c.l.s8.bf16 %v1479
        %v2162 = vunpack.c.h.s8.bf16 %v1479
        %v2163 = vunpack.c.l.s8.bf16 %v1480
        %v2164 = vunpack.c.h.s8.bf16 %v1480
        %v2165 = vunpack.c.l.s8.bf16 %v1481
        %v2166 = vunpack.c.h.s8.bf16 %v1481
        %v2167 = vunpack.c.l.s8.bf16 %v1482
        %v2168 = vunpack.c.h.s8.bf16 %v1482
        %v2169 = vunpack.c.l.s8.bf16 %v1483
        %v2170 = vunpack.c.h.s8.bf16 %v1483
        %v2171 = vunpack.c.l.s8.bf16 %v1484
        %v2172 = vunpack.c.h.s8.bf16 %v1484
        %v2173 = vunpack.c.l.s8.bf16 %v1485
        %v2174 = vunpack.c.h.s8.bf16 %v1485
        %v2175 = vunpack.c.l.s8.bf16 %v1486
        %v2176 = vunpack.c.h.s8.bf16 %v1486
        %v2177 = vunpack.c.l.s8.bf16 %v1487
        %v2178 = vunpack.c.h.s8.bf16 %v1487
        %v2179 = vunpack.c.l.s8.bf16 %v1488
        %v2180 = vunpack.c.h.s8.bf16 %v1488
        %v2181 = vunpack.c.l.s8.bf16 %v1489
        %v2182 = vunpack.c.h.s8.bf16 %v1489
        %v2183 = vunpack.c.l.s8.bf16 %v1490
        %v2184 = vunpack.c.h.s8.bf16 %v1490
        %v2185 = vunpack.c.l.s8.bf16 %v1491
        %v2186 = vunpack.c.h.s8.bf16 %v1491
        %v2187 = vunpack.c.l.s8.bf16 %v1492
        %v2188 = vunpack.c.h.s8.bf16 %v1492
        %v2189 = vunpack.c.l.s8.bf16 %v1493
        %v2190 = vunpack.c.h.s8.bf16 %v1493
        %v2191 = vunpack.c.l.s8.bf16 %v1494
        %v2192 = vunpack.c.h.s8.bf16 %v1494
        %v2193 = vunpack.c.l.s8.bf16 %v1495
        %v2194 = vunpack.c.h.s8.bf16 %v1495
        %v2195 = vunpack.c.l.s8.bf16 %v1496
        %v2196 = vunpack.c.h.s8.bf16 %v1496
        %v2197 = vunpack.c.l.s8.bf16 %v1497
        %v2198 = vunpack.c.h.s8.bf16 %v1497
        %v2199 = vunpack.c.l.s8.bf16 %v1498
        %v2200 = vunpack.c.h.s8.bf16 %v1498
        %v2201 = vunpack.c.l.s8.bf16 %v1499
        %v2202 = vunpack.c.h.s8.bf16 %v1499
        %v2203 = vunpack.c.l.s8.bf16 %v1500
        %v2204 = vunpack.c.h.s8.bf16 %v1500
        %v2205 = vunpack.c.l.s8.bf16 %v1501
        %v2206 = vunpack.c.h.s8.bf16 %v1501
        %v2207 = vunpack.c.l.s8.bf16 %v1502
        %v2208 = vunpack.c.h.s8.bf16 %v1502
        %v2209 = vunpack.c.l.s8.bf16 %v1503
        %v2210 = vunpack.c.h.s8.bf16 %v1503
        %v2211 = vunpack.c.l.s8.bf16 %v1504
        %v2212 = vunpack.c.h.s8.bf16 %v1504
        %v2213 = vunpack.c.l.s8.bf16 %v1505
        %v2214 = vunpack.c.h.s8.bf16 %v1505
        %v2215 = vunpack.c.l.s8.bf16 %v1506
        %v2216 = vunpack.c.h.s8.bf16 %v1506
        %v2217 = vunpack.c.l.s8.bf16 %v1507
        %v2218 = vunpack.c.h.s8.bf16 %v1507
        %v2219 = vunpack.c.l.s8.bf16 %v1508
        %v2220 = vunpack.c.h.s8.bf16 %v1508
        %v2221 = vunpack.c.l.s8.bf16 %v1509
        %v2222 = vunpack.c.h.s8.bf16 %v1509
        %v2223 = vunpack.c.l.s8.bf16 %v1510
        %v2224 = vunpack.c.h.s8.bf16 %v1510
        %v2225 = vunpack.c.l.s8.bf16 %v1511
        %v2226 = vunpack.c.h.s8.bf16 %v1511
        %v2227 = vunpack.c.l.s8.bf16 %v1512
        %v2228 = vunpack.c.h.s8.bf16 %v1512
        %v2229 = vunpack.c.l.s8.bf16 %v1513
        %v2230 = vunpack.c.h.s8.bf16 %v1513
        %v2231 = vunpack.c.l.s8.bf16 %v1514
        %v2232 = vunpack.c.h.s8.bf16 %v1514
        %v2233 = vunpack.c.l.s8.bf16 %v1515
        %v2234 = vunpack.c.h.s8.bf16 %v1515
        %v2235 = vunpack.c.l.s8.bf16 %v1516
        %v2236 = vunpack.c.h.s8.bf16 %v1516
        %v2237 = vunpack.c.l.s8.bf16 %v1517
        %v2238 = vunpack.c.h.s8.bf16 %v1517
        %v2239 = vunpack.c.l.s8.bf16 %v1518
        %v2240 = vunpack.c.h.s8.bf16 %v1518
        %v2241 = vunpack.c.l.s8.bf16 %v1519
        %v2242 = vunpack.c.h.s8.bf16 %v1519
        %v2243 = vunpack.c.l.s8.bf16 %v1520
        %v2244 = vunpack.c.h.s8.bf16 %v1520
        %v2245 = vunpack.c.l.s8.bf16 %v1521
        %v2246 = vunpack.c.h.s8.bf16 %v1521
        %v2247 = vunpack.c.l.s8.bf16 %v1522
        %v2248 = vunpack.c.h.s8.bf16 %v1522
        %v2249 = vunpack.c.l.s8.bf16 %v1523
        %v2250 = vunpack.c.h.s8.bf16 %v1523
        %v2251 = vunpack.c.l.s8.bf16 %v1524
        %v2252 = vunpack.c.h.s8.bf16 %v1524
        %v2253 = vunpack.c.l.s8.bf16 %v1525
        %v2254 = vunpack.c.h.s8.bf16 %v1525
        %v2255 = vunpack.c.l.s8.bf16 %v1526
        %v2256 = vunpack.c.h.s8.bf16 %v1526
        %v2257 = vunpack.c.l.s8.bf16 %v1527
        %v2258 = vunpack.c.h.s8.bf16 %v1527
        %v2259 = vunpack.c.l.s8.bf16 %v1528
        %v2260 = vunpack.c.h.s8.bf16 %v1528
        %v2261 = vunpack.c.l.s8.bf16 %v1529
        %v2262 = vunpack.c.h.s8.bf16 %v1529
        %v2263 = vunpack.c.l.s8.bf16 %v1530
        %v2264 = vunpack.c.h.s8.bf16 %v1530
        %v2265 = vunpack.c.l.s8.bf16 %v1531
        %v2266 = vunpack.c.h.s8.bf16 %v1531
        %v2267 = vunpack.c.l.s8.bf16 %v1532
        %v2268 = vunpack.c.h.s8.bf16 %v1532
        %v2269 = vunpack.c.l.s8.bf16 %v1533
        %v2270 = vunpack.c.h.s8.bf16 %v1533
        %v2271 = vunpack.c.l.s8.bf16 %v1534
        %v2272 = vunpack.c.h.s8.bf16 %v1534
        %v2273 = vunpack.c.l.s8.bf16 %v1535
        %v2274 = vunpack.c.h.s8.bf16 %v1535
        %v2275 = vunpack.c.l.s8.bf16 %v1536
        %v2276 = vunpack.c.h.s8.bf16 %v1536
        %v2277 = vunpack.c.l.s8.bf16 %v1537
        %v2278 = vunpack.c.h.s8.bf16 %v1537
        %v2279 = vunpack.c.l.s8.bf16 %v1538
        %v2280 = vunpack.c.h.s8.bf16 %v1538
        %v2281 = vunpack.c.l.s8.bf16 %v1539
        %v2282 = vunpack.c.h.s8.bf16 %v1539
        %v2283 = vunpack.c.l.s8.bf16 %v1540
        %v2284 = vunpack.c.h.s8.bf16 %v1540
        %v2285 = vunpack.c.l.s8.bf16 %v1541
        %v2286 = vunpack.c.h.s8.bf16 %v1541
        %v2287 = vunpack.c.l.s8.bf16 %v1542
        %v2288 = vunpack.c.h.s8.bf16 %v1542
        %v2289 = vunpack.c.l.s8.bf16 %v1543
        %v2290 = vunpack.c.h.s8.bf16 %v1543
        %v2291 = vunpack.c.l.s8.bf16 %v1544
        %v2292 = vunpack.c.h.s8.bf16 %v1544
        %v2293 = vunpack.c.l.s8.bf16 %v1545
        %v2294 = vunpack.c.h.s8.bf16 %v1545
        %v2295 = vunpack.c.l.s8.bf16 %v1546
        %v2296 = vunpack.c.h.s8.bf16 %v1546
        %v2297 = vunpack.c.l.s8.bf16 %v1547
        %v2298 = vunpack.c.h.s8.bf16 %v1547
        %v2299 = vunpack.c.l.s8.bf16 %v1548
        %v2300 = vunpack.c.h.s8.bf16 %v1548
        %v2301 = vunpack.c.l.s8.bf16 %v1549
        %v2302 = vunpack.c.h.s8.bf16 %v1549
        %v2303 = vunpack.c.l.s8.bf16 %v1550
        %v2304 = vunpack.c.h.s8.bf16 %v1550
        %v2305 = vunpack.c.l.s8.bf16 %v1551
        %v2306 = vunpack.c.h.s8.bf16 %v1551
        %v2307 = vunpack.c.l.s8.bf16 %v1552
        %v2308 = vunpack.c.h.s8.bf16 %v1552
        %v2309 = vunpack.c.l.s8.bf16 %v1553
        %v2310 = vunpack.c.h.s8.bf16 %v1553
        %v2311 = vunpack.c.l.s8.bf16 %v1554
        %v2312 = vunpack.c.h.s8.bf16 %v1554
        %v2313 = vunpack.c.l.s8.bf16 %v1555
        %v2314 = vunpack.c.h.s8.bf16 %v1555
        %v2315 = vunpack.c.l.s8.bf16 %v1556
        %v2316 = vunpack.c.h.s8.bf16 %v1556
        %v2317 = vunpack.c.l.s8.bf16 %v1557
        %v2318 = vunpack.c.h.s8.bf16 %v1557
        %v2319 = vunpack.c.l.s8.bf16 %v1558
        %v2320 = vunpack.c.h.s8.bf16 %v1558
        %v2321 = vunpack.c.l.s8.bf16 %v1559
        %v2322 = vunpack.c.h.s8.bf16 %v1559
        %v2323 = vunpack.c.l.s8.bf16 %v1560
        %v2324 = vunpack.c.h.s8.bf16 %v1560
        %v2325 = vunpack.c.l.s8.bf16 %v1561
        %v2326 = vunpack.c.h.s8.bf16 %v1561
        %v2327 = vunpack.c.l.s8.bf16 %v1562
        %v2328 = vunpack.c.h.s8.bf16 %v1562
        %v2329 = vunpack.c.l.s8.bf16 %v1563
        %v2330 = vunpack.c.h.s8.bf16 %v1563
        %v2331 = vunpack.c.l.s8.bf16 %v1564
        %v2332 = vunpack.c.h.s8.bf16 %v1564
        %2333 = vmatprep.subr.bf16.mxu0 0
        %2334 = vmatpush1.bf16.msra.mxu0 %v1572
        %2335 = vmatprep.subr.bf16.mxu0 0
        %2336 = vmatpush1.bf16.msra.mxu0 %v1571
        %2337 = vmatprep.subr.bf16.mxu0 0
        %2338 = vmatpush1.bf16.msra.mxu0 %v1570
        %2339 = vmatprep.subr.bf16.mxu0 0
        %2340 = vmatpush1.bf16.msra.mxu0 %v1569
        %2341 = vmatprep.subr.bf16.mxu0 0
        %2342 = vmatpush1.bf16.msra.mxu0 %v1568
        %2343 = vmatprep.subr.bf16.mxu0 0
        %2344 = vmatpush1.bf16.msra.mxu0 %v1567
        %2345 = vmatprep.subr.bf16.mxu0 0
        %2346 = vmatpush1.bf16.msra.mxu0 %v1566
        %2347 = vmatprep.subr.bf16.mxu0 0
        %2348 = vmatpush1.bf16.msra.mxu0 %v1565
        %2349 = vmatprep.subr.bf16.mxu0 0
        %2350 = vmatpush2.bf16.msra.mxu0 %v1580
        %2351 = vmatprep.subr.bf16.mxu0 0
        %2352 = vmatpush2.bf16.msra.mxu0 %v1579
        %2353 = vmatprep.subr.bf16.mxu0 0
        %2354 = vmatpush2.bf16.msra.mxu0 %v1578
        %2355 = vmatprep.subr.bf16.mxu0 0
        %2356 = vmatpush2.bf16.msra.mxu0 %v1577
        %2357 = vmatprep.subr.bf16.mxu0 0
        %2358 = vmatpush2.bf16.msra.mxu0 %v1576
        %2359 = vmatprep.subr.bf16.mxu0 0
        %2360 = vmatpush2.bf16.msra.mxu0 %v1575
        %2361 = vmatprep.subr.bf16.mxu0 0
        %2362 = vmatpush2.bf16.msra.mxu0 %v1574
        %2363 = vmatprep.subr.bf16.mxu0 0
        %2364 = vmatpush2.bf16.msra.mxu0 %v1573
        %2365 = vmatprep.mubr.bf16.mxu0 %v1086
        %2366 = vmatmul.mubr.bf16.gmra.mxu0 %v1085
        %v2367 = vpop.f32.mrf.mxu0
        %v2368 = vadd.f32 0.0, %v2367
        %v2369 = vpop.f32.mrf.mxu0
        %v2370 = vpop.f32.mrf.mxu0
        %v2371 = vpop.f32.mrf.mxu0
        %2372 = vdwg.mxu0
        %2373 = vmatprep.subr.bf16.mxu0 0
        %2374 = vmatpush1.bf16.msra.mxu0 %v1588
        %2375 = vmatprep.subr.bf16.mxu0 0
        %2376 = vmatpush1.bf16.msra.mxu0 %v1587
        %2377 = vmatprep.subr.bf16.mxu0 0
        %2378 = vmatpush1.bf16.msra.mxu0 %v1586
        %2379 = vmatprep.subr.bf16.mxu0 0
        %2380 = vmatpush1.bf16.msra.mxu0 %v1585
        %2381 = vmatprep.subr.bf16.mxu0 0
        %2382 = vmatpush1.bf16.msra.mxu0 %v1584
        %2383 = vmatprep.subr.bf16.mxu0 0
        %2384 = vmatpush1.bf16.msra.mxu0 %v1583
        %2385 = vmatprep.subr.bf16.mxu0 0
        %2386 = vmatpush1.bf16.msra.mxu0 %v1582
        %2387 = vmatprep.subr.bf16.mxu0 0
        %2388 = vmatpush1.bf16.msra.mxu0 %v1581
        %2389 = vmatprep.subr.bf16.mxu0 0
        %2390 = vmatpush2.bf16.msra.mxu0 %v1596
        %2391 = vmatprep.subr.bf16.mxu0 0
        %2392 = vmatpush2.bf16.msra.mxu0 %v1595
        %2393 = vmatprep.subr.bf16.mxu0 0
        %2394 = vmatpush2.bf16.msra.mxu0 %v1594
        %2395 = vmatprep.subr.bf16.mxu0 0
        %2396 = vmatpush2.bf16.msra.mxu0 %v1593
        %2397 = vmatprep.subr.bf16.mxu0 0
        %2398 = vmatpush2.bf16.msra.mxu0 %v1592
        %2399 = vmatprep.subr.bf16.mxu0 0
        %2400 = vmatpush2.bf16.msra.mxu0 %v1591
        %2401 = vmatprep.subr.bf16.mxu0 0
        %2402 = vmatpush2.bf16.msra.mxu0 %v1590
        %2403 = vmatprep.subr.bf16.mxu0 0
        %2404 = vmatpush2.bf16.msra.mxu0 %v1589
        %2405 = vmatprep.mubr.bf16.mxu0 %v1088
        %2406 = vmatmul.mubr.bf16.gmra.mxu0 %v1087
        %v2407 = vpop.f32.mrf.mxu0
        %v2408 = vadd.f32 %v2368, %v2407
        %v2409 = vpop.f32.mrf.mxu0
        %v2410 = vpop.f32.mrf.mxu0
        %v2411 = vpop.f32.mrf.mxu0
        %2412 = vdwg.mxu0
        %2413 = vmatprep.subr.bf16.mxu0 0
        %2414 = vmatpush1.bf16.msra.mxu0 %v1604
        %2415 = vmatprep.subr.bf16.mxu0 0
        %2416 = vmatpush1.bf16.msra.mxu0 %v1603
        %2417 = vmatprep.subr.bf16.mxu0 0
        %2418 = vmatpush1.bf16.msra.mxu0 %v1602
        %2419 = vmatprep.subr.bf16.mxu0 0
        %2420 = vmatpush1.bf16.msra.mxu0 %v1601
        %2421 = vmatprep.subr.bf16.mxu0 0
        %2422 = vmatpush1.bf16.msra.mxu0 %v1600
        %2423 = vmatprep.subr.bf16.mxu0 0
        %2424 = vmatpush1.bf16.msra.mxu0 %v1599
        %2425 = vmatprep.subr.bf16.mxu0 0
        %2426 = vmatpush1.bf16.msra.mxu0 %v1598
        %2427 = vmatprep.subr.bf16.mxu0 0
        %2428 = vmatpush1.bf16.msra.mxu0 %v1597
        %2429 = vmatprep.subr.bf16.mxu0 0
        %2430 = vmatpush2.bf16.msra.mxu0 %v1612
        %2431 = vmatprep.subr.bf16.mxu0 0
        %2432 = vmatpush2.bf16.msra.mxu0 %v1611
        %2433 = vmatprep.subr.bf16.mxu0 0
        %2434 = vmatpush2.bf16.msra.mxu0 %v1610
        %2435 = vmatprep.subr.bf16.mxu0 0
        %2436 = vmatpush2.bf16.msra.mxu0 %v1609
        %2437 = vmatprep.subr.bf16.mxu0 0
        %2438 = vmatpush2.bf16.msra.mxu0 %v1608
        %2439 = vmatprep.subr.bf16.mxu0 0
        %2440 = vmatpush2.bf16.msra.mxu0 %v1607
        %2441 = vmatprep.subr.bf16.mxu0 0
        %2442 = vmatpush2.bf16.msra.mxu0 %v1606
        %2443 = vmatprep.subr.bf16.mxu0 0
        %2444 = vmatpush2.bf16.msra.mxu0 %v1605
        %2445 = vmatprep.mubr.bf16.mxu0 %v1090
        %2446 = vmatmul.mubr.bf16.gmra.mxu0 %v1089
        %v2447 = vpop.f32.mrf.mxu0
        %v2448 = vadd.f32 %v2408, %v2447
        %v2449 = vpop.f32.mrf.mxu0
        %v2450 = vpop.f32.mrf.mxu0
        %v2451 = vpop.f32.mrf.mxu0
        %2452 = vdwg.mxu0
        %2453 = vmatprep.subr.bf16.mxu0 0
        %2454 = vmatpush1.bf16.msra.mxu0 %v1620
        %2455 = vmatprep.subr.bf16.mxu0 0
        %2456 = vmatpush1.bf16.msra.mxu0 %v1619
        %2457 = vmatprep.subr.bf16.mxu0 0
        %2458 = vmatpush1.bf16.msra.mxu0 %v1618
        %2459 = vmatprep.subr.bf16.mxu0 0
        %2460 = vmatpush1.bf16.msra.mxu0 %v1617
        %2461 = vmatprep.subr.bf16.mxu0 0
        %2462 = vmatpush1.bf16.msra.mxu0 %v1616
        %2463 = vmatprep.subr.bf16.mxu0 0
        %2464 = vmatpush1.bf16.msra.mxu0 %v1615
        %2465 = vmatprep.subr.bf16.mxu0 0
        %2466 = vmatpush1.bf16.msra.mxu0 %v1614
        %2467 = vmatprep.subr.bf16.mxu0 0
        %2468 = vmatpush1.bf16.msra.mxu0 %v1613
        %2469 = vmatprep.subr.bf16.mxu0 0
        %2470 = vmatpush2.bf16.msra.mxu0 %v1628
        %2471 = vmatprep.subr.bf16.mxu0 0
        %2472 = vmatpush2.bf16.msra.mxu0 %v1627
        %2473 = vmatprep.subr.bf16.mxu0 0
        %2474 = vmatpush2.bf16.msra.mxu0 %v1626
        %2475 = vmatprep.subr.bf16.mxu0 0
        %2476 = vmatpush2.bf16.msra.mxu0 %v1625
        %2477 = vmatprep.subr.bf16.mxu0 0
        %2478 = vmatpush2.bf16.msra.mxu0 %v1624
        %2479 = vmatprep.subr.bf16.mxu0 0
        %2480 = vmatpush2.bf16.msra.mxu0 %v1623
        %2481 = vmatprep.subr.bf16.mxu0 0
        %2482 = vmatpush2.bf16.msra.mxu0 %v1622
        %2483 = vmatprep.subr.bf16.mxu0 0
        %2484 = vmatpush2.bf16.msra.mxu0 %v1621
        %2485 = vmatprep.mubr.bf16.mxu0 %v1092
        %2486 = vmatmul.mubr.bf16.gmra.mxu0 %v1091
        %v2487 = vpop.f32.mrf.mxu0
        %v2488 = vadd.f32 %v2448, %v2487
        %v2489 = vpop.f32.mrf.mxu0
        %v2490 = vpop.f32.mrf.mxu0
        %v2491 = vpop.f32.mrf.mxu0
        %2492 = vdwg.mxu0
        %2493 = vmatprep.subr.bf16.mxu0 0
        %2494 = vmatpush1.bf16.msra.mxu0 %v1636
        %2495 = vmatprep.subr.bf16.mxu0 0
        %2496 = vmatpush1.bf16.msra.mxu0 %v1635
        %2497 = vmatprep.subr.bf16.mxu0 0
        %2498 = vmatpush1.bf16.msra.mxu0 %v1634
        %2499 = vmatprep.subr.bf16.mxu0 0
        %2500 = vmatpush1.bf16.msra.mxu0 %v1633
        %2501 = vmatprep.subr.bf16.mxu0 0
        %2502 = vmatpush1.bf16.msra.mxu0 %v1632
        %2503 = vmatprep.subr.bf16.mxu0 0
        %2504 = vmatpush1.bf16.msra.mxu0 %v1631
        %2505 = vmatprep.subr.bf16.mxu0 0
        %2506 = vmatpush1.bf16.msra.mxu0 %v1630
        %2507 = vmatprep.subr.bf16.mxu0 0
        %2508 = vmatpush1.bf16.msra.mxu0 %v1629
        %2509 = vmatprep.subr.bf16.mxu0 0
        %2510 = vmatpush2.bf16.msra.mxu0 %v1644
        %2511 = vmatprep.subr.bf16.mxu0 0
        %2512 = vmatpush2.bf16.msra.mxu0 %v1643
        %2513 = vmatprep.subr.bf16.mxu0 0
        %2514 = vmatpush2.bf16.msra.mxu0 %v1642
        %2515 = vmatprep.subr.bf16.mxu0 0
        %2516 = vmatpush2.bf16.msra.mxu0 %v1641
        %2517 = vmatprep.subr.bf16.mxu0 0
        %2518 = vmatpush2.bf16.msra.mxu0 %v1640
        %2519 = vmatprep.subr.bf16.mxu0 0
        %2520 = vmatpush2.bf16.msra.mxu0 %v1639
        %2521 = vmatprep.subr.bf16.mxu0 0
        %2522 = vmatpush2.bf16.msra.mxu0 %v1638
        %2523 = vmatprep.subr.bf16.mxu0 0
        %2524 = vmatpush2.bf16.msra.mxu0 %v1637
        %2525 = vmatprep.mubr.bf16.mxu0 %v1094
        %2526 = vmatmul.mubr.bf16.gmra.mxu0 %v1093
        %v2527 = vpop.f32.mrf.mxu0
        %v2528 = vadd.f32 %v2488, %v2527
        %v2529 = vpop.f32.mrf.mxu0
        %v2530 = vpop.f32.mrf.mxu0
        %v2531 = vpop.f32.mrf.mxu0
        %2532 = vdwg.mxu0
        %2533 = vmatprep.subr.bf16.mxu0 0
        %2534 = vmatpush1.bf16.msra.mxu0 %v1652
        %2535 = vmatprep.subr.bf16.mxu0 0
        %2536 = vmatpush1.bf16.msra.mxu0 %v1651
        %2537 = vmatprep.subr.bf16.mxu0 0
        %2538 = vmatpush1.bf16.msra.mxu0 %v1650
        %2539 = vmatprep.subr.bf16.mxu0 0
        %2540 = vmatpush1.bf16.msra.mxu0 %v1649
        %2541 = vmatprep.subr.bf16.mxu0 0
        %2542 = vmatpush1.bf16.msra.mxu0 %v1648
        %2543 = vmatprep.subr.bf16.mxu0 0
        %2544 = vmatpush1.bf16.msra.mxu0 %v1647
        %2545 = vmatprep.subr.bf16.mxu0 0
        %2546 = vmatpush1.bf16.msra.mxu0 %v1646
        %2547 = vmatprep.subr.bf16.mxu0 0
        %2548 = vmatpush1.bf16.msra.mxu0 %v1645
        %2549 = vmatprep.subr.bf16.mxu0 0
        %2550 = vmatpush2.bf16.msra.mxu0 %v1660
        %2551 = vmatprep.subr.bf16.mxu0 0
        %2552 = vmatpush2.bf16.msra.mxu0 %v1659
        %2553 = vmatprep.subr.bf16.mxu0 0
        %2554 = vmatpush2.bf16.msra.mxu0 %v1658
        %2555 = vmatprep.subr.bf16.mxu0 0
        %2556 = vmatpush2.bf16.msra.mxu0 %v1657
        %2557 = vmatprep.subr.bf16.mxu0 0
        %2558 = vmatpush2.bf16.msra.mxu0 %v1656
        %2559 = vmatprep.subr.bf16.mxu0 0
        %2560 = vmatpush2.bf16.msra.mxu0 %v1655
        %2561 = vmatprep.subr.bf16.mxu0 0
        %2562 = vmatpush2.bf16.msra.mxu0 %v1654
        %2563 = vmatprep.subr.bf16.mxu0 0
        %2564 = vmatpush2.bf16.msra.mxu0 %v1653
        %2565 = vmatprep.mubr.bf16.mxu0 %v1096
        %2566 = vmatmul.mubr.bf16.gmra.mxu0 %v1095
        %v2567 = vpop.f32.mrf.mxu0
        %v2568 = vadd.f32 %v2528, %v2567
        %v2569 = vpop.f32.mrf.mxu0
        %v2570 = vpop.f32.mrf.mxu0
        %v2571 = vpop.f32.mrf.mxu0
        %2572 = vdwg.mxu0
        %2573 = vmatprep.subr.bf16.mxu0 0
        %2574 = vmatpush1.bf16.msra.mxu0 %v1668
        %2575 = vmatprep.subr.bf16.mxu0 0
        %2576 = vmatpush1.bf16.msra.mxu0 %v1667
        %2577 = vmatprep.subr.bf16.mxu0 0
        %2578 = vmatpush1.bf16.msra.mxu0 %v1666
        %2579 = vmatprep.subr.bf16.mxu0 0
        %2580 = vmatpush1.bf16.msra.mxu0 %v1665
        %2581 = vmatprep.subr.bf16.mxu0 0
        %2582 = vmatpush1.bf16.msra.mxu0 %v1664
        %2583 = vmatprep.subr.bf16.mxu0 0
        %2584 = vmatpush1.bf16.msra.mxu0 %v1663
        %2585 = vmatprep.subr.bf16.mxu0 0
        %2586 = vmatpush1.bf16.msra.mxu0 %v1662
        %2587 = vmatprep.subr.bf16.mxu0 0
        %2588 = vmatpush1.bf16.msra.mxu0 %v1661
        %2589 = vmatprep.subr.bf16.mxu0 0
        %2590 = vmatpush2.bf16.msra.mxu0 %v1676
        %2591 = vmatprep.subr.bf16.mxu0 0
        %2592 = vmatpush2.bf16.msra.mxu0 %v1675
        %2593 = vmatprep.subr.bf16.mxu0 0
        %2594 = vmatpush2.bf16.msra.mxu0 %v1674
        %2595 = vmatprep.subr.bf16.mxu0 0
        %2596 = vmatpush2.bf16.msra.mxu0 %v1673
        %2597 = vmatprep.subr.bf16.mxu0 0
        %2598 = vmatpush2.bf16.msra.mxu0 %v1672
        %2599 = vmatprep.subr.bf16.mxu0 0
        %2600 = vmatpush2.bf16.msra.mxu0 %v1671
        %2601 = vmatprep.subr.bf16.mxu0 0
        %2602 = vmatpush2.bf16.msra.mxu0 %v1670
        %2603 = vmatprep.subr.bf16.mxu0 0
        %2604 = vmatpush2.bf16.msra.mxu0 %v1669
        %2605 = vmatprep.mubr.bf16.mxu0 %v1098
        %2606 = vmatmul.mubr.bf16.gmra.mxu0 %v1097
        %v2607 = vpop.f32.mrf.mxu0
        %v2608 = vadd.f32 %v2568, %v2607
        %v2609 = vpop.f32.mrf.mxu0
        %v2610 = vpop.f32.mrf.mxu0
        %v2611 = vpop.f32.mrf.mxu0
        %2612 = vdwg.mxu0
        %2613 = vmatprep.subr.bf16.mxu0 0
        %2614 = vmatpush1.bf16.msra.mxu0 %v1684
        %2615 = vmatprep.subr.bf16.mxu0 0
        %2616 = vmatpush1.bf16.msra.mxu0 %v1683
        %2617 = vmatprep.subr.bf16.mxu0 0
        %2618 = vmatpush1.bf16.msra.mxu0 %v1682
        %2619 = vmatprep.subr.bf16.mxu0 0
        %2620 = vmatpush1.bf16.msra.mxu0 %v1681
        %2621 = vmatprep.subr.bf16.mxu0 0
        %2622 = vmatpush1.bf16.msra.mxu0 %v1680
        %2623 = vmatprep.subr.bf16.mxu0 0
        %2624 = vmatpush1.bf16.msra.mxu0 %v1679
        %2625 = vmatprep.subr.bf16.mxu0 0
        %2626 = vmatpush1.bf16.msra.mxu0 %v1678
        %2627 = vmatprep.subr.bf16.mxu0 0
        %2628 = vmatpush1.bf16.msra.mxu0 %v1677
        %2629 = vmatprep.subr.bf16.mxu0 0
        %2630 = vmatpush2.bf16.msra.mxu0 %v1692
        %2631 = vmatprep.subr.bf16.mxu0 0
        %2632 = vmatpush2.bf16.msra.mxu0 %v1691
        %2633 = vmatprep.subr.bf16.mxu0 0
        %2634 = vmatpush2.bf16.msra.mxu0 %v1690
        %2635 = vmatprep.subr.bf16.mxu0 0
        %2636 = vmatpush2.bf16.msra.mxu0 %v1689
        %2637 = vmatprep.subr.bf16.mxu0 0
        %2638 = vmatpush2.bf16.msra.mxu0 %v1688
        %2639 = vmatprep.subr.bf16.mxu0 0
        %2640 = vmatpush2.bf16.msra.mxu0 %v1687
        %2641 = vmatprep.subr.bf16.mxu0 0
        %2642 = vmatpush2.bf16.msra.mxu0 %v1686
        %2643 = vmatprep.subr.bf16.mxu0 0
        %2644 = vmatpush2.bf16.msra.mxu0 %v1685
        %2645 = vmatprep.mubr.bf16.mxu0 %v1100
        %2646 = vmatmul.mubr.bf16.gmra.mxu0 %v1099
        %v2647 = vpop.f32.mrf.mxu0
        %v2648 = vadd.f32 %v2608, %v2647
        %v2649 = vpop.f32.mrf.mxu0
        %v2650 = vpop.f32.mrf.mxu0
        %v2651 = vpop.f32.mrf.mxu0
        %2652 = vdwg.mxu0
        %2653 = vmatprep.subr.bf16.mxu0 0
        %2654 = vmatpush1.bf16.msra.mxu0 %v1700
        %2655 = vmatprep.subr.bf16.mxu0 0
        %2656 = vmatpush1.bf16.msra.mxu0 %v1699
        %2657 = vmatprep.subr.bf16.mxu0 0
        %2658 = vmatpush1.bf16.msra.mxu0 %v1698
        %2659 = vmatprep.subr.bf16.mxu0 0
        %2660 = vmatpush1.bf16.msra.mxu0 %v1697
        %2661 = vmatprep.subr.bf16.mxu0 0
        %2662 = vmatpush1.bf16.msra.mxu0 %v1696
        %2663 = vmatprep.subr.bf16.mxu0 0
        %2664 = vmatpush1.bf16.msra.mxu0 %v1695
        %2665 = vmatprep.subr.bf16.mxu0 0
        %2666 = vmatpush1.bf16.msra.mxu0 %v1694
        %2667 = vmatprep.subr.bf16.mxu0 0
        %2668 = vmatpush1.bf16.msra.mxu0 %v1693
        %2669 = vmatprep.subr.bf16.mxu0 0
        %2670 = vmatpush2.bf16.msra.mxu0 %v1708
        %2671 = vmatprep.subr.bf16.mxu0 0
        %2672 = vmatpush2.bf16.msra.mxu0 %v1707
        %2673 = vmatprep.subr.bf16.mxu0 0
        %2674 = vmatpush2.bf16.msra.mxu0 %v1706
        %2675 = vmatprep.subr.bf16.mxu0 0
        %2676 = vmatpush2.bf16.msra.mxu0 %v1705
        %2677 = vmatprep.subr.bf16.mxu0 0
        %2678 = vmatpush2.bf16.msra.mxu0 %v1704
        %2679 = vmatprep.subr.bf16.mxu0 0
        %2680 = vmatpush2.bf16.msra.mxu0 %v1703
        %2681 = vmatprep.subr.bf16.mxu0 0
        %2682 = vmatpush2.bf16.msra.mxu0 %v1702
        %2683 = vmatprep.subr.bf16.mxu0 0
        %2684 = vmatpush2.bf16.msra.mxu0 %v1701
        %2685 = vmatprep.mubr.bf16.mxu0 %v1102
        %2686 = vmatmul.mubr.bf16.gmra.mxu0 %v1101
        %v2687 = vpop.f32.mrf.mxu0
        %v2688 = vadd.f32 %v2648, %v2687
        %v2689 = vpop.f32.mrf.mxu0
        %v2690 = vpop.f32.mrf.mxu0
        %v2691 = vpop.f32.mrf.mxu0
        %2692 = vdwg.mxu0
        %2693 = vmatprep.subr.bf16.mxu0 0
        %2694 = vmatpush1.bf16.msra.mxu0 %v1716
        %2695 = vmatprep.subr.bf16.mxu0 0
        %2696 = vmatpush1.bf16.msra.mxu0 %v1715
        %2697 = vmatprep.subr.bf16.mxu0 0
        %2698 = vmatpush1.bf16.msra.mxu0 %v1714
        %2699 = vmatprep.subr.bf16.mxu0 0
        %2700 = vmatpush1.bf16.msra.mxu0 %v1713
        %2701 = vmatprep.subr.bf16.mxu0 0
        %2702 = vmatpush1.bf16.msra.mxu0 %v1712
        %2703 = vmatprep.subr.bf16.mxu0 0
        %2704 = vmatpush1.bf16.msra.mxu0 %v1711
        %2705 = vmatprep.subr.bf16.mxu0 0
        %2706 = vmatpush1.bf16.msra.mxu0 %v1710
        %2707 = vmatprep.subr.bf16.mxu0 0
        %2708 = vmatpush1.bf16.msra.mxu0 %v1709
        %2709 = vmatprep.subr.bf16.mxu0 0
        %2710 = vmatpush2.bf16.msra.mxu0 %v1724
        %2711 = vmatprep.subr.bf16.mxu0 0
        %2712 = vmatpush2.bf16.msra.mxu0 %v1723
        %2713 = vmatprep.subr.bf16.mxu0 0
        %2714 = vmatpush2.bf16.msra.mxu0 %v1722
        %2715 = vmatprep.subr.bf16.mxu0 0
        %2716 = vmatpush2.bf16.msra.mxu0 %v1721
        %2717 = vmatprep.subr.bf16.mxu0 0
        %2718 = vmatpush2.bf16.msra.mxu0 %v1720
        %2719 = vmatprep.subr.bf16.mxu0 0
        %2720 = vmatpush2.bf16.msra.mxu0 %v1719
        %2721 = vmatprep.subr.bf16.mxu0 0
        %2722 = vmatpush2.bf16.msra.mxu0 %v1718
        %2723 = vmatprep.subr.bf16.mxu0 0
        %2724 = vmatpush2.bf16.msra.mxu0 %v1717
        %2725 = vmatprep.mubr.bf16.mxu0 %v1104
        %2726 = vmatmul.mubr.bf16.gmra.mxu0 %v1103
        %v2727 = vpop.f32.mrf.mxu0
        %v2728 = vadd.f32 %v2688, %v2727
        %v2729 = vpop.f32.mrf.mxu0
        %v2730 = vpop.f32.mrf.mxu0
        %v2731 = vpop.f32.mrf.mxu0
        %2732 = vdwg.mxu0
        %2733 = vmatprep.subr.bf16.mxu0 0
        %2734 = vmatpush1.bf16.msra.mxu0 %v1732
        %2735 = vmatprep.subr.bf16.mxu0 0
        %2736 = vmatpush1.bf16.msra.mxu0 %v1731
        %2737 = vmatprep.subr.bf16.mxu0 0
        %2738 = vmatpush1.bf16.msra.mxu0 %v1730
        %2739 = vmatprep.subr.bf16.mxu0 0
        %2740 = vmatpush1.bf16.msra.mxu0 %v1729
        %2741 = vmatprep.subr.bf16.mxu0 0
        %2742 = vmatpush1.bf16.msra.mxu0 %v1728
        %2743 = vmatprep.subr.bf16.mxu0 0
        %2744 = vmatpush1.bf16.msra.mxu0 %v1727
        %2745 = vmatprep.subr.bf16.mxu0 0
        %2746 = vmatpush1.bf16.msra.mxu0 %v1726
        %2747 = vmatprep.subr.bf16.mxu0 0
        %2748 = vmatpush1.bf16.msra.mxu0 %v1725
        %2749 = vmatprep.subr.bf16.mxu0 0
        %2750 = vmatpush2.bf16.msra.mxu0 %v1740
        %2751 = vmatprep.subr.bf16.mxu0 0
        %2752 = vmatpush2.bf16.msra.mxu0 %v1739
        %2753 = vmatprep.subr.bf16.mxu0 0
        %2754 = vmatpush2.bf16.msra.mxu0 %v1738
        %2755 = vmatprep.subr.bf16.mxu0 0
        %2756 = vmatpush2.bf16.msra.mxu0 %v1737
        %2757 = vmatprep.subr.bf16.mxu0 0
        %2758 = vmatpush2.bf16.msra.mxu0 %v1736
        %2759 = vmatprep.subr.bf16.mxu0 0
        %2760 = vmatpush2.bf16.msra.mxu0 %v1735
        %2761 = vmatprep.subr.bf16.mxu0 0
        %2762 = vmatpush2.bf16.msra.mxu0 %v1734
        %2763 = vmatprep.subr.bf16.mxu0 0
        %2764 = vmatpush2.bf16.msra.mxu0 %v1733
        %2765 = vmatprep.mubr.bf16.mxu0 %v1106
        %2766 = vmatmul.mubr.bf16.gmra.mxu0 %v1105
        %v2767 = vpop.f32.mrf.mxu0
        %v2768 = vadd.f32 %v2728, %v2767
        %v2769 = vpop.f32.mrf.mxu0
        %v2770 = vpop.f32.mrf.mxu0
        %v2771 = vpop.f32.mrf.mxu0
        %2772 = vdwg.mxu0
        %2773 = vmatprep.subr.bf16.mxu0 0
        %2774 = vmatpush1.bf16.msra.mxu0 %v1748
        %2775 = vmatprep.subr.bf16.mxu0 0
        %2776 = vmatpush1.bf16.msra.mxu0 %v1747
        %2777 = vmatprep.subr.bf16.mxu0 0
        %2778 = vmatpush1.bf16.msra.mxu0 %v1746
        %2779 = vmatprep.subr.bf16.mxu0 0
        %2780 = vmatpush1.bf16.msra.mxu0 %v1745
        %2781 = vmatprep.subr.bf16.mxu0 0
        %2782 = vmatpush1.bf16.msra.mxu0 %v1744
        %2783 = vmatprep.subr.bf16.mxu0 0
        %2784 = vmatpush1.bf16.msra.mxu0 %v1743
        %2785 = vmatprep.subr.bf16.mxu0 0
        %2786 = vmatpush1.bf16.msra.mxu0 %v1742
        %2787 = vmatprep.subr.bf16.mxu0 0
        %2788 = vmatpush1.bf16.msra.mxu0 %v1741
        %2789 = vmatprep.subr.bf16.mxu0 0
        %2790 = vmatpush2.bf16.msra.mxu0 %v1756
        %2791 = vmatprep.subr.bf16.mxu0 0
        %2792 = vmatpush2.bf16.msra.mxu0 %v1755
        %2793 = vmatprep.subr.bf16.mxu0 0
        %2794 = vmatpush2.bf16.msra.mxu0 %v1754
        %2795 = vmatprep.subr.bf16.mxu0 0
        %2796 = vmatpush2.bf16.msra.mxu0 %v1753
        %2797 = vmatprep.subr.bf16.mxu0 0
        %2798 = vmatpush2.bf16.msra.mxu0 %v1752
        %2799 = vmatprep.subr.bf16.mxu0 0
        %2800 = vmatpush2.bf16.msra.mxu0 %v1751
        %2801 = vmatprep.subr.bf16.mxu0 0
        %2802 = vmatpush2.bf16.msra.mxu0 %v1750
        %2803 = vmatprep.subr.bf16.mxu0 0
        %2804 = vmatpush2.bf16.msra.mxu0 %v1749
        %2805 = vmatprep.mubr.bf16.mxu0 %v1108
        %2806 = vmatmul.mubr.bf16.gmra.mxu0 %v1107
        %v2807 = vpop.f32.mrf.mxu0
        %v2808 = vadd.f32 %v2768, %v2807
        %v2809 = vpop.f32.mrf.mxu0
        %v2810 = vpop.f32.mrf.mxu0
        %v2811 = vpop.f32.mrf.mxu0
        %2812 = vdwg.mxu0
        %2813 = vmatprep.subr.bf16.mxu0 0
        %2814 = vmatpush1.bf16.msra.mxu0 %v1764
        %2815 = vmatprep.subr.bf16.mxu0 0
        %2816 = vmatpush1.bf16.msra.mxu0 %v1763
        %2817 = vmatprep.subr.bf16.mxu0 0
        %2818 = vmatpush1.bf16.msra.mxu0 %v1762
        %2819 = vmatprep.subr.bf16.mxu0 0
        %2820 = vmatpush1.bf16.msra.mxu0 %v1761
        %2821 = vmatprep.subr.bf16.mxu0 0
        %2822 = vmatpush1.bf16.msra.mxu0 %v1760
        %2823 = vmatprep.subr.bf16.mxu0 0
        %2824 = vmatpush1.bf16.msra.mxu0 %v1759
        %2825 = vmatprep.subr.bf16.mxu0 0
        %2826 = vmatpush1.bf16.msra.mxu0 %v1758
        %2827 = vmatprep.subr.bf16.mxu0 0
        %2828 = vmatpush1.bf16.msra.mxu0 %v1757
        %2829 = vmatprep.subr.bf16.mxu0 0
        %2830 = vmatpush2.bf16.msra.mxu0 %v1772
        %2831 = vmatprep.subr.bf16.mxu0 0
        %2832 = vmatpush2.bf16.msra.mxu0 %v1771
        %2833 = vmatprep.subr.bf16.mxu0 0
        %2834 = vmatpush2.bf16.msra.mxu0 %v1770
        %2835 = vmatprep.subr.bf16.mxu0 0
        %2836 = vmatpush2.bf16.msra.mxu0 %v1769
        %2837 = vmatprep.subr.bf16.mxu0 0
        %2838 = vmatpush2.bf16.msra.mxu0 %v1768
        %2839 = vmatprep.subr.bf16.mxu0 0
        %2840 = vmatpush2.bf16.msra.mxu0 %v1767
        %2841 = vmatprep.subr.bf16.mxu0 0
        %2842 = vmatpush2.bf16.msra.mxu0 %v1766
        %2843 = vmatprep.subr.bf16.mxu0 0
        %2844 = vmatpush2.bf16.msra.mxu0 %v1765
        %2845 = vmatprep.mubr.bf16.mxu0 %v1110
        %2846 = vmatmul.mubr.bf16.gmra.mxu0 %v1109
        %v2847 = vpop.f32.mrf.mxu0
        %v2848 = vadd.f32 %v2808, %v2847
        %v2849 = vpop.f32.mrf.mxu0
        %v2850 = vpop.f32.mrf.mxu0
        %v2851 = vpop.f32.mrf.mxu0
        %2852 = vdwg.mxu0
        %2853 = vmatprep.subr.bf16.mxu0 0
        %2854 = vmatpush1.bf16.msra.mxu0 %v1780
        %2855 = vmatprep.subr.bf16.mxu0 0
        %2856 = vmatpush1.bf16.msra.mxu0 %v1779
        %2857 = vmatprep.subr.bf16.mxu0 0
        %2858 = vmatpush1.bf16.msra.mxu0 %v1778
        %2859 = vmatprep.subr.bf16.mxu0 0
        %2860 = vmatpush1.bf16.msra.mxu0 %v1777
        %2861 = vmatprep.subr.bf16.mxu0 0
        %2862 = vmatpush1.bf16.msra.mxu0 %v1776
        %2863 = vmatprep.subr.bf16.mxu0 0
        %2864 = vmatpush1.bf16.msra.mxu0 %v1775
        %2865 = vmatprep.subr.bf16.mxu0 0
        %2866 = vmatpush1.bf16.msra.mxu0 %v1774
        %2867 = vmatprep.subr.bf16.mxu0 0
        %2868 = vmatpush1.bf16.msra.mxu0 %v1773
        %2869 = vmatprep.subr.bf16.mxu0 0
        %2870 = vmatpush2.bf16.msra.mxu0 %v1788
        %2871 = vmatprep.subr.bf16.mxu0 0
        %2872 = vmatpush2.bf16.msra.mxu0 %v1787
        %2873 = vmatprep.subr.bf16.mxu0 0
        %2874 = vmatpush2.bf16.msra.mxu0 %v1786
        %2875 = vmatprep.subr.bf16.mxu0 0
        %2876 = vmatpush2.bf16.msra.mxu0 %v1785
        %2877 = vmatprep.subr.bf16.mxu0 0
        %2878 = vmatpush2.bf16.msra.mxu0 %v1784
        %2879 = vmatprep.subr.bf16.mxu0 0
        %2880 = vmatpush2.bf16.msra.mxu0 %v1783
        %2881 = vmatprep.subr.bf16.mxu0 0
        %2882 = vmatpush2.bf16.msra.mxu0 %v1782
        %2883 = vmatprep.subr.bf16.mxu0 0
        %2884 = vmatpush2.bf16.msra.mxu0 %v1781
        %2885 = vmatprep.mubr.bf16.mxu0 %v1112
        %2886 = vmatmul.mubr.bf16.gmra.mxu0 %v1111
        %v2887 = vpop.f32.mrf.mxu0
        %v2888 = vadd.f32 %v2848, %v2887
        %v2889 = vpop.f32.mrf.mxu0
        %v2890 = vpop.f32.mrf.mxu0
        %v2891 = vpop.f32.mrf.mxu0
        %2892 = vdwg.mxu0
        %2893 = vmatprep.subr.bf16.mxu0 0
        %2894 = vmatpush1.bf16.msra.mxu0 %v1796
        %2895 = vmatprep.subr.bf16.mxu0 0
        %2896 = vmatpush1.bf16.msra.mxu0 %v1795
        %2897 = vmatprep.subr.bf16.mxu0 0
        %2898 = vmatpush1.bf16.msra.mxu0 %v1794
        %2899 = vmatprep.subr.bf16.mxu0 0
        %2900 = vmatpush1.bf16.msra.mxu0 %v1793
        %2901 = vmatprep.subr.bf16.mxu0 0
        %2902 = vmatpush1.bf16.msra.mxu0 %v1792
        %2903 = vmatprep.subr.bf16.mxu0 0
        %2904 = vmatpush1.bf16.msra.mxu0 %v1791
        %2905 = vmatprep.subr.bf16.mxu0 0
        %2906 = vmatpush1.bf16.msra.mxu0 %v1790
        %2907 = vmatprep.subr.bf16.mxu0 0
        %2908 = vmatpush1.bf16.msra.mxu0 %v1789
        %2909 = vmatprep.subr.bf16.mxu0 0
        %2910 = vmatpush2.bf16.msra.mxu0 %v1804
        %2911 = vmatprep.subr.bf16.mxu0 0
        %2912 = vmatpush2.bf16.msra.mxu0 %v1803
        %2913 = vmatprep.subr.bf16.mxu0 0
        %2914 = vmatpush2.bf16.msra.mxu0 %v1802
        %2915 = vmatprep.subr.bf16.mxu0 0
        %2916 = vmatpush2.bf16.msra.mxu0 %v1801
        %2917 = vmatprep.subr.bf16.mxu0 0
        %2918 = vmatpush2.bf16.msra.mxu0 %v1800
        %2919 = vmatprep.subr.bf16.mxu0 0
        %2920 = vmatpush2.bf16.msra.mxu0 %v1799
        %2921 = vmatprep.subr.bf16.mxu0 0
        %2922 = vmatpush2.bf16.msra.mxu0 %v1798
        %2923 = vmatprep.subr.bf16.mxu0 0
        %2924 = vmatpush2.bf16.msra.mxu0 %v1797
        %2925 = vmatprep.mubr.bf16.mxu0 %v1114
        %2926 = vmatmul.mubr.bf16.gmra.mxu0 %v1113
        %v2927 = vpop.f32.mrf.mxu0
        %v2928 = vadd.f32 %v2888, %v2927
        %v2929 = vpop.f32.mrf.mxu0
        %v2930 = vpop.f32.mrf.mxu0
        %v2931 = vpop.f32.mrf.mxu0
        %2932 = vdwg.mxu0
        %2933 = vmatprep.subr.bf16.mxu0 0
        %2934 = vmatpush1.bf16.msra.mxu0 %v1812
        %2935 = vmatprep.subr.bf16.mxu0 0
        %2936 = vmatpush1.bf16.msra.mxu0 %v1811
        %2937 = vmatprep.subr.bf16.mxu0 0
        %2938 = vmatpush1.bf16.msra.mxu0 %v1810
        %2939 = vmatprep.subr.bf16.mxu0 0
        %2940 = vmatpush1.bf16.msra.mxu0 %v1809
        %2941 = vmatprep.subr.bf16.mxu0 0
        %2942 = vmatpush1.bf16.msra.mxu0 %v1808
        %2943 = vmatprep.subr.bf16.mxu0 0
        %2944 = vmatpush1.bf16.msra.mxu0 %v1807
        %2945 = vmatprep.subr.bf16.mxu0 0
        %2946 = vmatpush1.bf16.msra.mxu0 %v1806
        %2947 = vmatprep.subr.bf16.mxu0 0
        %2948 = vmatpush1.bf16.msra.mxu0 %v1805
        %2949 = vmatprep.subr.bf16.mxu0 0
        %2950 = vmatpush2.bf16.msra.mxu0 %v1820
        %2951 = vmatprep.subr.bf16.mxu0 0
        %2952 = vmatpush2.bf16.msra.mxu0 %v1819
        %2953 = vmatprep.subr.bf16.mxu0 0
        %2954 = vmatpush2.bf16.msra.mxu0 %v1818
        %2955 = vmatprep.subr.bf16.mxu0 0
        %2956 = vmatpush2.bf16.msra.mxu0 %v1817
        %2957 = vmatprep.subr.bf16.mxu0 0
        %2958 = vmatpush2.bf16.msra.mxu0 %v1816
        %2959 = vmatprep.subr.bf16.mxu0 0
        %2960 = vmatpush2.bf16.msra.mxu0 %v1815
        %2961 = vmatprep.subr.bf16.mxu0 0
        %2962 = vmatpush2.bf16.msra.mxu0 %v1814
        %2963 = vmatprep.subr.bf16.mxu0 0
        %2964 = vmatpush2.bf16.msra.mxu0 %v1813
        %2965 = vmatprep.mubr.bf16.mxu0 %v1116
        %2966 = vmatmul.mubr.bf16.gmra.mxu0 %v1115
        %v2967 = vpop.f32.mrf.mxu0
        %v2968 = vadd.f32 %v2928, %v2967
        %v2969 = vpop.f32.mrf.mxu0
        %v2970 = vpop.f32.mrf.mxu0
        %v2971 = vpop.f32.mrf.mxu0
        %2972 = vdwg.mxu0
        %2973 = vmatprep.subr.bf16.mxu0 0
        %2974 = vmatpush1.bf16.msra.mxu0 %v1828
        %2975 = vmatprep.subr.bf16.mxu0 0
        %2976 = vmatpush1.bf16.msra.mxu0 %v1827
        %2977 = vmatprep.subr.bf16.mxu0 0
        %2978 = vmatpush1.bf16.msra.mxu0 %v1826
        %2979 = vmatprep.subr.bf16.mxu0 0
        %2980 = vmatpush1.bf16.msra.mxu0 %v1825
        %2981 = vmatprep.subr.bf16.mxu0 0
        %2982 = vmatpush1.bf16.msra.mxu0 %v1824
        %2983 = vmatprep.subr.bf16.mxu0 0
        %2984 = vmatpush1.bf16.msra.mxu0 %v1823
        %2985 = vmatprep.subr.bf16.mxu0 0
        %2986 = vmatpush1.bf16.msra.mxu0 %v1822
        %2987 = vmatprep.subr.bf16.mxu0 0
        %2988 = vmatpush1.bf16.msra.mxu0 %v1821
        %2989 = vmatprep.subr.bf16.mxu0 0
        %2990 = vmatpush2.bf16.msra.mxu0 %v1836
        %2991 = vmatprep.subr.bf16.mxu0 0
        %2992 = vmatpush2.bf16.msra.mxu0 %v1835
        %2993 = vmatprep.subr.bf16.mxu0 0
        %2994 = vmatpush2.bf16.msra.mxu0 %v1834
        %2995 = vmatprep.subr.bf16.mxu0 0
        %2996 = vmatpush2.bf16.msra.mxu0 %v1833
        %2997 = vmatprep.subr.bf16.mxu0 0
        %2998 = vmatpush2.bf16.msra.mxu0 %v1832
        %2999 = vmatprep.subr.bf16.mxu0 0
        %3000 = vmatpush2.bf16.msra.mxu0 %v1831
        %3001 = vmatprep.subr.bf16.mxu0 0
        %3002 = vmatpush2.bf16.msra.mxu0 %v1830
        %3003 = vmatprep.subr.bf16.mxu0 0
        %3004 = vmatpush2.bf16.msra.mxu0 %v1829
        %3005 = vmatprep.mubr.bf16.mxu0 %v1118
        %3006 = vmatmul.mubr.bf16.gmra.mxu0 %v1117
        %v3007 = vpop.f32.mrf.mxu0
        %v3008 = vadd.f32 %v2968, %v3007
        %v3009 = vpop.f32.mrf.mxu0
        %v3010 = vpop.f32.mrf.mxu0
        %v3011 = vpop.f32.mrf.mxu0
        %3012 = vdwg.mxu0
        %3013 = vmatprep.subr.bf16.mxu0 0
        %3014 = vmatpush1.bf16.msra.mxu0 %v1844
        %3015 = vmatprep.subr.bf16.mxu0 0
        %3016 = vmatpush1.bf16.msra.mxu0 %v1843
        %3017 = vmatprep.subr.bf16.mxu0 0
        %3018 = vmatpush1.bf16.msra.mxu0 %v1842
        %3019 = vmatprep.subr.bf16.mxu0 0
        %3020 = vmatpush1.bf16.msra.mxu0 %v1841
        %3021 = vmatprep.subr.bf16.mxu0 0
        %3022 = vmatpush1.bf16.msra.mxu0 %v1840
        %3023 = vmatprep.subr.bf16.mxu0 0
        %3024 = vmatpush1.bf16.msra.mxu0 %v1839
        %3025 = vmatprep.subr.bf16.mxu0 0
        %3026 = vmatpush1.bf16.msra.mxu0 %v1838
        %3027 = vmatprep.subr.bf16.mxu0 0
        %3028 = vmatpush1.bf16.msra.mxu0 %v1837
        %3029 = vmatprep.subr.bf16.mxu0 0
        %3030 = vmatpush2.bf16.msra.mxu0 %v1852
        %3031 = vmatprep.subr.bf16.mxu0 0
        %3032 = vmatpush2.bf16.msra.mxu0 %v1851
        %3033 = vmatprep.subr.bf16.mxu0 0
        %3034 = vmatpush2.bf16.msra.mxu0 %v1850
        %3035 = vmatprep.subr.bf16.mxu0 0
        %3036 = vmatpush2.bf16.msra.mxu0 %v1849
        %3037 = vmatprep.subr.bf16.mxu0 0
        %3038 = vmatpush2.bf16.msra.mxu0 %v1848
        %3039 = vmatprep.subr.bf16.mxu0 0
        %3040 = vmatpush2.bf16.msra.mxu0 %v1847
        %3041 = vmatprep.subr.bf16.mxu0 0
        %3042 = vmatpush2.bf16.msra.mxu0 %v1846
        %3043 = vmatprep.subr.bf16.mxu0 0
        %3044 = vmatpush2.bf16.msra.mxu0 %v1845
        %3045 = vmatprep.mubr.bf16.mxu0 %v1120
        %3046 = vmatmul.mubr.bf16.gmra.mxu0 %v1119
        %v3047 = vpop.f32.mrf.mxu0
        %v3048 = vadd.f32 %v3008, %v3047
        %v3049 = vpop.f32.mrf.mxu0
        %v3050 = vpop.f32.mrf.mxu0
        %v3051 = vpop.f32.mrf.mxu0
        %3052 = vdwg.mxu0
        %3053 = vmatprep.subr.bf16.mxu0 0
        %3054 = vmatpush1.bf16.msra.mxu0 %v1860
        %3055 = vmatprep.subr.bf16.mxu0 0
        %3056 = vmatpush1.bf16.msra.mxu0 %v1859
        %3057 = vmatprep.subr.bf16.mxu0 0
        %3058 = vmatpush1.bf16.msra.mxu0 %v1858
        %3059 = vmatprep.subr.bf16.mxu0 0
        %3060 = vmatpush1.bf16.msra.mxu0 %v1857
        %3061 = vmatprep.subr.bf16.mxu0 0
        %3062 = vmatpush1.bf16.msra.mxu0 %v1856
        %3063 = vmatprep.subr.bf16.mxu0 0
        %3064 = vmatpush1.bf16.msra.mxu0 %v1855
        %3065 = vmatprep.subr.bf16.mxu0 0
        %3066 = vmatpush1.bf16.msra.mxu0 %v1854
        %3067 = vmatprep.subr.bf16.mxu0 0
        %3068 = vmatpush1.bf16.msra.mxu0 %v1853
        %3069 = vmatprep.subr.bf16.mxu0 0
        %3070 = vmatpush2.bf16.msra.mxu0 %v1868
        %3071 = vmatprep.subr.bf16.mxu0 0
        %3072 = vmatpush2.bf16.msra.mxu0 %v1867
        %3073 = vmatprep.subr.bf16.mxu0 0
        %3074 = vmatpush2.bf16.msra.mxu0 %v1866
        %3075 = vmatprep.subr.bf16.mxu0 0
        %3076 = vmatpush2.bf16.msra.mxu0 %v1865
        %3077 = vmatprep.subr.bf16.mxu0 0
        %3078 = vmatpush2.bf16.msra.mxu0 %v1864
        %3079 = vmatprep.subr.bf16.mxu0 0
        %3080 = vmatpush2.bf16.msra.mxu0 %v1863
        %3081 = vmatprep.subr.bf16.mxu0 0
        %3082 = vmatpush2.bf16.msra.mxu0 %v1862
        %3083 = vmatprep.subr.bf16.mxu0 0
        %3084 = vmatpush2.bf16.msra.mxu0 %v1861
        %3085 = vmatprep.mubr.bf16.mxu0 %v1122
        %3086 = vmatmul.mubr.bf16.gmra.mxu0 %v1121
        %v3087 = vpop.f32.mrf.mxu0
        %v3088 = vadd.f32 %v3048, %v3087
        %v3089 = vpop.f32.mrf.mxu0
        %v3090 = vpop.f32.mrf.mxu0
        %v3091 = vpop.f32.mrf.mxu0
        %3092 = vdwg.mxu0
        %3093 = vmatprep.subr.bf16.mxu0 0
        %3094 = vmatpush1.bf16.msra.mxu0 %v1876
        %3095 = vmatprep.subr.bf16.mxu0 0
        %3096 = vmatpush1.bf16.msra.mxu0 %v1875
        %3097 = vmatprep.subr.bf16.mxu0 0
        %3098 = vmatpush1.bf16.msra.mxu0 %v1874
        %3099 = vmatprep.subr.bf16.mxu0 0
        %3100 = vmatpush1.bf16.msra.mxu0 %v1873
        %3101 = vmatprep.subr.bf16.mxu0 0
        %3102 = vmatpush1.bf16.msra.mxu0 %v1872
        %3103 = vmatprep.subr.bf16.mxu0 0
        %3104 = vmatpush1.bf16.msra.mxu0 %v1871
        %3105 = vmatprep.subr.bf16.mxu0 0
        %3106 = vmatpush1.bf16.msra.mxu0 %v1870
        %3107 = vmatprep.subr.bf16.mxu0 0
        %3108 = vmatpush1.bf16.msra.mxu0 %v1869
        %3109 = vmatprep.subr.bf16.mxu0 0
        %3110 = vmatpush2.bf16.msra.mxu0 %v1884
        %3111 = vmatprep.subr.bf16.mxu0 0
        %3112 = vmatpush2.bf16.msra.mxu0 %v1883
        %3113 = vmatprep.subr.bf16.mxu0 0
        %3114 = vmatpush2.bf16.msra.mxu0 %v1882
        %3115 = vmatprep.subr.bf16.mxu0 0
        %3116 = vmatpush2.bf16.msra.mxu0 %v1881
        %3117 = vmatprep.subr.bf16.mxu0 0
        %3118 = vmatpush2.bf16.msra.mxu0 %v1880
        %3119 = vmatprep.subr.bf16.mxu0 0
        %3120 = vmatpush2.bf16.msra.mxu0 %v1879
        %3121 = vmatprep.subr.bf16.mxu0 0
        %3122 = vmatpush2.bf16.msra.mxu0 %v1878
        %3123 = vmatprep.subr.bf16.mxu0 0
        %3124 = vmatpush2.bf16.msra.mxu0 %v1877
        %3125 = vmatprep.mubr.bf16.mxu0 %v1124
        %3126 = vmatmul.mubr.bf16.gmra.mxu0 %v1123
        %v3127 = vpop.f32.mrf.mxu0
        %v3128 = vadd.f32 %v3088, %v3127
        %v3129 = vpop.f32.mrf.mxu0
        %v3130 = vpop.f32.mrf.mxu0
        %v3131 = vpop.f32.mrf.mxu0
        %3132 = vdwg.mxu0
        %3133 = vmatprep.subr.bf16.mxu0 0
        %3134 = vmatpush1.bf16.msra.mxu0 %v1892
        %3135 = vmatprep.subr.bf16.mxu0 0
        %3136 = vmatpush1.bf16.msra.mxu0 %v1891
        %3137 = vmatprep.subr.bf16.mxu0 0
        %3138 = vmatpush1.bf16.msra.mxu0 %v1890
        %3139 = vmatprep.subr.bf16.mxu0 0
        %3140 = vmatpush1.bf16.msra.mxu0 %v1889
        %3141 = vmatprep.subr.bf16.mxu0 0
        %3142 = vmatpush1.bf16.msra.mxu0 %v1888
        %3143 = vmatprep.subr.bf16.mxu0 0
        %3144 = vmatpush1.bf16.msra.mxu0 %v1887
        %3145 = vmatprep.subr.bf16.mxu0 0
        %3146 = vmatpush1.bf16.msra.mxu0 %v1886
        %3147 = vmatprep.subr.bf16.mxu0 0
        %3148 = vmatpush1.bf16.msra.mxu0 %v1885
        %3149 = vmatprep.subr.bf16.mxu0 0
        %3150 = vmatpush2.bf16.msra.mxu0 %v1900
        %3151 = vmatprep.subr.bf16.mxu0 0
        %3152 = vmatpush2.bf16.msra.mxu0 %v1899
        %3153 = vmatprep.subr.bf16.mxu0 0
        %3154 = vmatpush2.bf16.msra.mxu0 %v1898
        %3155 = vmatprep.subr.bf16.mxu0 0
        %3156 = vmatpush2.bf16.msra.mxu0 %v1897
        %3157 = vmatprep.subr.bf16.mxu0 0
        %3158 = vmatpush2.bf16.msra.mxu0 %v1896
        %3159 = vmatprep.subr.bf16.mxu0 0
        %3160 = vmatpush2.bf16.msra.mxu0 %v1895
        %3161 = vmatprep.subr.bf16.mxu0 0
        %3162 = vmatpush2.bf16.msra.mxu0 %v1894
        %3163 = vmatprep.subr.bf16.mxu0 0
        %3164 = vmatpush2.bf16.msra.mxu0 %v1893
        %3165 = vmatprep.mubr.bf16.mxu0 %v1126
        %3166 = vmatmul.mubr.bf16.gmra.mxu0 %v1125
        %v3167 = vpop.f32.mrf.mxu0
        %v3168 = vadd.f32 %v3128, %v3167
        %v3169 = vpop.f32.mrf.mxu0
        %v3170 = vpop.f32.mrf.mxu0
        %v3171 = vpop.f32.mrf.mxu0
        %3172 = vdwg.mxu0
        %3173 = vmatprep.subr.bf16.mxu0 0
        %3174 = vmatpush1.bf16.msra.mxu0 %v1908
        %3175 = vmatprep.subr.bf16.mxu0 0
        %3176 = vmatpush1.bf16.msra.mxu0 %v1907
        %3177 = vmatprep.subr.bf16.mxu0 0
        %3178 = vmatpush1.bf16.msra.mxu0 %v1906
        %3179 = vmatprep.subr.bf16.mxu0 0
        %3180 = vmatpush1.bf16.msra.mxu0 %v1905
        %3181 = vmatprep.subr.bf16.mxu0 0
        %3182 = vmatpush1.bf16.msra.mxu0 %v1904
        %3183 = vmatprep.subr.bf16.mxu0 0
        %3184 = vmatpush1.bf16.msra.mxu0 %v1903
        %3185 = vmatprep.subr.bf16.mxu0 0
        %3186 = vmatpush1.bf16.msra.mxu0 %v1902
        %3187 = vmatprep.subr.bf16.mxu0 0
        %3188 = vmatpush1.bf16.msra.mxu0 %v1901
        %3189 = vmatprep.subr.bf16.mxu0 0
        %3190 = vmatpush2.bf16.msra.mxu0 %v1916
        %3191 = vmatprep.subr.bf16.mxu0 0
        %3192 = vmatpush2.bf16.msra.mxu0 %v1915
        %3193 = vmatprep.subr.bf16.mxu0 0
        %3194 = vmatpush2.bf16.msra.mxu0 %v1914
        %3195 = vmatprep.subr.bf16.mxu0 0
        %3196 = vmatpush2.bf16.msra.mxu0 %v1913
        %3197 = vmatprep.subr.bf16.mxu0 0
        %3198 = vmatpush2.bf16.msra.mxu0 %v1912
        %3199 = vmatprep.subr.bf16.mxu0 0
        %3200 = vmatpush2.bf16.msra.mxu0 %v1911
        %3201 = vmatprep.subr.bf16.mxu0 0
        %3202 = vmatpush2.bf16.msra.mxu0 %v1910
        %3203 = vmatprep.subr.bf16.mxu0 0
        %3204 = vmatpush2.bf16.msra.mxu0 %v1909
        %3205 = vmatprep.mubr.bf16.mxu0 %v1128
        %3206 = vmatmul.mubr.bf16.gmra.mxu0 %v1127
        %v3207 = vpop.f32.mrf.mxu0
        %v3208 = vadd.f32 %v3168, %v3207
        %v3209 = vpop.f32.mrf.mxu0
        %v3210 = vpop.f32.mrf.mxu0
        %v3211 = vpop.f32.mrf.mxu0
        %3212 = vdwg.mxu0
        %3213 = vmatprep.subr.bf16.mxu0 0
        %3214 = vmatpush1.bf16.msra.mxu0 %v1924
        %3215 = vmatprep.subr.bf16.mxu0 0
        %3216 = vmatpush1.bf16.msra.mxu0 %v1923
        %3217 = vmatprep.subr.bf16.mxu0 0
        %3218 = vmatpush1.bf16.msra.mxu0 %v1922
        %3219 = vmatprep.subr.bf16.mxu0 0
        %3220 = vmatpush1.bf16.msra.mxu0 %v1921
        %3221 = vmatprep.subr.bf16.mxu0 0
        %3222 = vmatpush1.bf16.msra.mxu0 %v1920
        %3223 = vmatprep.subr.bf16.mxu0 0
        %3224 = vmatpush1.bf16.msra.mxu0 %v1919
        %3225 = vmatprep.subr.bf16.mxu0 0
        %3226 = vmatpush1.bf16.msra.mxu0 %v1918
        %3227 = vmatprep.subr.bf16.mxu0 0
        %3228 = vmatpush1.bf16.msra.mxu0 %v1917
        %3229 = vmatprep.subr.bf16.mxu0 0
        %3230 = vmatpush2.bf16.msra.mxu0 %v1932
        %3231 = vmatprep.subr.bf16.mxu0 0
        %3232 = vmatpush2.bf16.msra.mxu0 %v1931
        %3233 = vmatprep.subr.bf16.mxu0 0
        %3234 = vmatpush2.bf16.msra.mxu0 %v1930
        %3235 = vmatprep.subr.bf16.mxu0 0
        %3236 = vmatpush2.bf16.msra.mxu0 %v1929
        %3237 = vmatprep.subr.bf16.mxu0 0
        %3238 = vmatpush2.bf16.msra.mxu0 %v1928
        %3239 = vmatprep.subr.bf16.mxu0 0
        %3240 = vmatpush2.bf16.msra.mxu0 %v1927
        %3241 = vmatprep.subr.bf16.mxu0 0
        %3242 = vmatpush2.bf16.msra.mxu0 %v1926
        %3243 = vmatprep.subr.bf16.mxu0 0
        %3244 = vmatpush2.bf16.msra.mxu0 %v1925
        %3245 = vmatprep.mubr.bf16.mxu0 %v1130
        %3246 = vmatmul.mubr.bf16.gmra.mxu0 %v1129
        %v3247 = vpop.f32.mrf.mxu0
        %v3248 = vadd.f32 %v3208, %v3247
        %v3249 = vpop.f32.mrf.mxu0
        %v3250 = vpop.f32.mrf.mxu0
        %v3251 = vpop.f32.mrf.mxu0
        %3252 = vdwg.mxu0
        %3253 = vmatprep.subr.bf16.mxu0 0
        %3254 = vmatpush1.bf16.msra.mxu0 %v1940
        %3255 = vmatprep.subr.bf16.mxu0 0
        %3256 = vmatpush1.bf16.msra.mxu0 %v1939
        %3257 = vmatprep.subr.bf16.mxu0 0
        %3258 = vmatpush1.bf16.msra.mxu0 %v1938
        %3259 = vmatprep.subr.bf16.mxu0 0
        %3260 = vmatpush1.bf16.msra.mxu0 %v1937
        %3261 = vmatprep.subr.bf16.mxu0 0
        %3262 = vmatpush1.bf16.msra.mxu0 %v1936
        %3263 = vmatprep.subr.bf16.mxu0 0
        %3264 = vmatpush1.bf16.msra.mxu0 %v1935
        %3265 = vmatprep.subr.bf16.mxu0 0
        %3266 = vmatpush1.bf16.msra.mxu0 %v1934
        %3267 = vmatprep.subr.bf16.mxu0 0
        %3268 = vmatpush1.bf16.msra.mxu0 %v1933
        %3269 = vmatprep.subr.bf16.mxu0 0
        %3270 = vmatpush2.bf16.msra.mxu0 %v1948
        %3271 = vmatprep.subr.bf16.mxu0 0
        %3272 = vmatpush2.bf16.msra.mxu0 %v1947
        %3273 = vmatprep.subr.bf16.mxu0 0
        %3274 = vmatpush2.bf16.msra.mxu0 %v1946
        %3275 = vmatprep.subr.bf16.mxu0 0
        %3276 = vmatpush2.bf16.msra.mxu0 %v1945
        %3277 = vmatprep.subr.bf16.mxu0 0
        %3278 = vmatpush2.bf16.msra.mxu0 %v1944
        %3279 = vmatprep.subr.bf16.mxu0 0
        %3280 = vmatpush2.bf16.msra.mxu0 %v1943
        %3281 = vmatprep.subr.bf16.mxu0 0
        %3282 = vmatpush2.bf16.msra.mxu0 %v1942
        %3283 = vmatprep.subr.bf16.mxu0 0
        %3284 = vmatpush2.bf16.msra.mxu0 %v1941
        %3285 = vmatprep.mubr.bf16.mxu0 %v1132
        %3286 = vmatmul.mubr.bf16.gmra.mxu0 %v1131
        %v3287 = vpop.f32.mrf.mxu0
        %v3288 = vadd.f32 %v3248, %v3287
        %v3289 = vpop.f32.mrf.mxu0
        %v3290 = vpop.f32.mrf.mxu0
        %v3291 = vpop.f32.mrf.mxu0
        %3292 = vdwg.mxu0
        %3293 = vmatprep.subr.bf16.mxu0 0
        %3294 = vmatpush1.bf16.msra.mxu0 %v1956
        %3295 = vmatprep.subr.bf16.mxu0 0
        %3296 = vmatpush1.bf16.msra.mxu0 %v1955
        %3297 = vmatprep.subr.bf16.mxu0 0
        %3298 = vmatpush1.bf16.msra.mxu0 %v1954
        %3299 = vmatprep.subr.bf16.mxu0 0
        %3300 = vmatpush1.bf16.msra.mxu0 %v1953
        %3301 = vmatprep.subr.bf16.mxu0 0
        %3302 = vmatpush1.bf16.msra.mxu0 %v1952
        %3303 = vmatprep.subr.bf16.mxu0 0
        %3304 = vmatpush1.bf16.msra.mxu0 %v1951
        %3305 = vmatprep.subr.bf16.mxu0 0
        %3306 = vmatpush1.bf16.msra.mxu0 %v1950
        %3307 = vmatprep.subr.bf16.mxu0 0
        %3308 = vmatpush1.bf16.msra.mxu0 %v1949
        %3309 = vmatprep.subr.bf16.mxu0 0
        %3310 = vmatpush2.bf16.msra.mxu0 %v1964
        %3311 = vmatprep.subr.bf16.mxu0 0
        %3312 = vmatpush2.bf16.msra.mxu0 %v1963
        %3313 = vmatprep.subr.bf16.mxu0 0
        %3314 = vmatpush2.bf16.msra.mxu0 %v1962
        %3315 = vmatprep.subr.bf16.mxu0 0
        %3316 = vmatpush2.bf16.msra.mxu0 %v1961
        %3317 = vmatprep.subr.bf16.mxu0 0
        %3318 = vmatpush2.bf16.msra.mxu0 %v1960
        %3319 = vmatprep.subr.bf16.mxu0 0
        %3320 = vmatpush2.bf16.msra.mxu0 %v1959
        %3321 = vmatprep.subr.bf16.mxu0 0
        %3322 = vmatpush2.bf16.msra.mxu0 %v1958
        %3323 = vmatprep.subr.bf16.mxu0 0
        %3324 = vmatpush2.bf16.msra.mxu0 %v1957
        %3325 = vmatprep.mubr.bf16.mxu0 %v1134
        %3326 = vmatmul.mubr.bf16.gmra.mxu0 %v1133
        %v3327 = vpop.f32.mrf.mxu0
        %v3328 = vadd.f32 %v3288, %v3327
        %v3329 = vpop.f32.mrf.mxu0
        %v3330 = vpop.f32.mrf.mxu0
        %v3331 = vpop.f32.mrf.mxu0
        %3332 = vdwg.mxu0
        %3333 = vmatprep.subr.bf16.mxu0 0
        %3334 = vmatpush1.bf16.msra.mxu0 %v1972
        %3335 = vmatprep.subr.bf16.mxu0 0
        %3336 = vmatpush1.bf16.msra.mxu0 %v1971
        %3337 = vmatprep.subr.bf16.mxu0 0
        %3338 = vmatpush1.bf16.msra.mxu0 %v1970
        %3339 = vmatprep.subr.bf16.mxu0 0
        %3340 = vmatpush1.bf16.msra.mxu0 %v1969
        %3341 = vmatprep.subr.bf16.mxu0 0
        %3342 = vmatpush1.bf16.msra.mxu0 %v1968
        %3343 = vmatprep.subr.bf16.mxu0 0
        %3344 = vmatpush1.bf16.msra.mxu0 %v1967
        %3345 = vmatprep.subr.bf16.mxu0 0
        %3346 = vmatpush1.bf16.msra.mxu0 %v1966
        %3347 = vmatprep.subr.bf16.mxu0 0
        %3348 = vmatpush1.bf16.msra.mxu0 %v1965
        %3349 = vmatprep.subr.bf16.mxu0 0
        %3350 = vmatpush2.bf16.msra.mxu0 %v1980
        %3351 = vmatprep.subr.bf16.mxu0 0
        %3352 = vmatpush2.bf16.msra.mxu0 %v1979
        %3353 = vmatprep.subr.bf16.mxu0 0
        %3354 = vmatpush2.bf16.msra.mxu0 %v1978
        %3355 = vmatprep.subr.bf16.mxu0 0
        %3356 = vmatpush2.bf16.msra.mxu0 %v1977
        %3357 = vmatprep.subr.bf16.mxu0 0
        %3358 = vmatpush2.bf16.msra.mxu0 %v1976
        %3359 = vmatprep.subr.bf16.mxu0 0
        %3360 = vmatpush2.bf16.msra.mxu0 %v1975
        %3361 = vmatprep.subr.bf16.mxu0 0
        %3362 = vmatpush2.bf16.msra.mxu0 %v1974
        %3363 = vmatprep.subr.bf16.mxu0 0
        %3364 = vmatpush2.bf16.msra.mxu0 %v1973
        %3365 = vmatprep.mubr.bf16.mxu0 %v1136
        %3366 = vmatmul.mubr.bf16.gmra.mxu0 %v1135
        %v3367 = vpop.f32.mrf.mxu0
        %v3368 = vadd.f32 %v3328, %v3367
        %v3369 = vpop.f32.mrf.mxu0
        %v3370 = vpop.f32.mrf.mxu0
        %v3371 = vpop.f32.mrf.mxu0
        %3372 = vdwg.mxu0
        %3373 = vmatprep.subr.bf16.mxu0 0
        %3374 = vmatpush1.bf16.msra.mxu0 %v1988
        %3375 = vmatprep.subr.bf16.mxu0 0
        %3376 = vmatpush1.bf16.msra.mxu0 %v1987
        %3377 = vmatprep.subr.bf16.mxu0 0
        %3378 = vmatpush1.bf16.msra.mxu0 %v1986
        %3379 = vmatprep.subr.bf16.mxu0 0
        %3380 = vmatpush1.bf16.msra.mxu0 %v1985
        %3381 = vmatprep.subr.bf16.mxu0 0
        %3382 = vmatpush1.bf16.msra.mxu0 %v1984
        %3383 = vmatprep.subr.bf16.mxu0 0
        %3384 = vmatpush1.bf16.msra.mxu0 %v1983
        %3385 = vmatprep.subr.bf16.mxu0 0
        %3386 = vmatpush1.bf16.msra.mxu0 %v1982
        %3387 = vmatprep.subr.bf16.mxu0 0
        %3388 = vmatpush1.bf16.msra.mxu0 %v1981
        %3389 = vmatprep.subr.bf16.mxu0 0
        %3390 = vmatpush2.bf16.msra.mxu0 %v1996
        %3391 = vmatprep.subr.bf16.mxu0 0
        %3392 = vmatpush2.bf16.msra.mxu0 %v1995
        %3393 = vmatprep.subr.bf16.mxu0 0
        %3394 = vmatpush2.bf16.msra.mxu0 %v1994
        %3395 = vmatprep.subr.bf16.mxu0 0
        %3396 = vmatpush2.bf16.msra.mxu0 %v1993
        %3397 = vmatprep.subr.bf16.mxu0 0
        %3398 = vmatpush2.bf16.msra.mxu0 %v1992
        %3399 = vmatprep.subr.bf16.mxu0 0
        %3400 = vmatpush2.bf16.msra.mxu0 %v1991
        %3401 = vmatprep.subr.bf16.mxu0 0
        %3402 = vmatpush2.bf16.msra.mxu0 %v1990
        %3403 = vmatprep.subr.bf16.mxu0 0
        %3404 = vmatpush2.bf16.msra.mxu0 %v1989
        %3405 = vmatprep.mubr.bf16.mxu0 %v1138
        %3406 = vmatmul.mubr.bf16.gmra.mxu0 %v1137
        %v3407 = vpop.f32.mrf.mxu0
        %v3408 = vadd.f32 %v3368, %v3407
        %v3409 = vpop.f32.mrf.mxu0
        %v3410 = vpop.f32.mrf.mxu0
        %v3411 = vpop.f32.mrf.mxu0
        %3412 = vdwg.mxu0
        %3413 = vmatprep.subr.bf16.mxu0 0
        %3414 = vmatpush1.bf16.msra.mxu0 %v2004
        %3415 = vmatprep.subr.bf16.mxu0 0
        %3416 = vmatpush1.bf16.msra.mxu0 %v2003
        %3417 = vmatprep.subr.bf16.mxu0 0
        %3418 = vmatpush1.bf16.msra.mxu0 %v2002
        %3419 = vmatprep.subr.bf16.mxu0 0
        %3420 = vmatpush1.bf16.msra.mxu0 %v2001
        %3421 = vmatprep.subr.bf16.mxu0 0
        %3422 = vmatpush1.bf16.msra.mxu0 %v2000
        %3423 = vmatprep.subr.bf16.mxu0 0
        %3424 = vmatpush1.bf16.msra.mxu0 %v1999
        %3425 = vmatprep.subr.bf16.mxu0 0
        %3426 = vmatpush1.bf16.msra.mxu0 %v1998
        %3427 = vmatprep.subr.bf16.mxu0 0
        %3428 = vmatpush1.bf16.msra.mxu0 %v1997
        %3429 = vmatprep.subr.bf16.mxu0 0
        %3430 = vmatpush2.bf16.msra.mxu0 %v2012
        %3431 = vmatprep.subr.bf16.mxu0 0
        %3432 = vmatpush2.bf16.msra.mxu0 %v2011
        %3433 = vmatprep.subr.bf16.mxu0 0
        %3434 = vmatpush2.bf16.msra.mxu0 %v2010
        %3435 = vmatprep.subr.bf16.mxu0 0
        %3436 = vmatpush2.bf16.msra.mxu0 %v2009
        %3437 = vmatprep.subr.bf16.mxu0 0
        %3438 = vmatpush2.bf16.msra.mxu0 %v2008
        %3439 = vmatprep.subr.bf16.mxu0 0
        %3440 = vmatpush2.bf16.msra.mxu0 %v2007
        %3441 = vmatprep.subr.bf16.mxu0 0
        %3442 = vmatpush2.bf16.msra.mxu0 %v2006
        %3443 = vmatprep.subr.bf16.mxu0 0
        %3444 = vmatpush2.bf16.msra.mxu0 %v2005
        %3445 = vmatprep.mubr.bf16.mxu0 %v1140
        %3446 = vmatmul.mubr.bf16.gmra.mxu0 %v1139
        %v3447 = vpop.f32.mrf.mxu0
        %v3448 = vadd.f32 %v3408, %v3447
        %v3449 = vpop.f32.mrf.mxu0
        %v3450 = vpop.f32.mrf.mxu0
        %v3451 = vpop.f32.mrf.mxu0
        %3452 = vdwg.mxu0
        %3453 = vmatprep.subr.bf16.mxu0 0
        %3454 = vmatpush1.bf16.msra.mxu0 %v2020
        %3455 = vmatprep.subr.bf16.mxu0 0
        %3456 = vmatpush1.bf16.msra.mxu0 %v2019
        %3457 = vmatprep.subr.bf16.mxu0 0
        %3458 = vmatpush1.bf16.msra.mxu0 %v2018
        %3459 = vmatprep.subr.bf16.mxu0 0
        %3460 = vmatpush1.bf16.msra.mxu0 %v2017
        %3461 = vmatprep.subr.bf16.mxu0 0
        %3462 = vmatpush1.bf16.msra.mxu0 %v2016
        %3463 = vmatprep.subr.bf16.mxu0 0
        %3464 = vmatpush1.bf16.msra.mxu0 %v2015
        %3465 = vmatprep.subr.bf16.mxu0 0
        %3466 = vmatpush1.bf16.msra.mxu0 %v2014
        %3467 = vmatprep.subr.bf16.mxu0 0
        %3468 = vmatpush1.bf16.msra.mxu0 %v2013
        %3469 = vmatprep.subr.bf16.mxu0 0
        %3470 = vmatpush2.bf16.msra.mxu0 %v2028
        %3471 = vmatprep.subr.bf16.mxu0 0
        %3472 = vmatpush2.bf16.msra.mxu0 %v2027
        %3473 = vmatprep.subr.bf16.mxu0 0
        %3474 = vmatpush2.bf16.msra.mxu0 %v2026
        %3475 = vmatprep.subr.bf16.mxu0 0
        %3476 = vmatpush2.bf16.msra.mxu0 %v2025
        %3477 = vmatprep.subr.bf16.mxu0 0
        %3478 = vmatpush2.bf16.msra.mxu0 %v2024
        %3479 = vmatprep.subr.bf16.mxu0 0
        %3480 = vmatpush2.bf16.msra.mxu0 %v2023
        %3481 = vmatprep.subr.bf16.mxu0 0
        %3482 = vmatpush2.bf16.msra.mxu0 %v2022
        %3483 = vmatprep.subr.bf16.mxu0 0
        %3484 = vmatpush2.bf16.msra.mxu0 %v2021
        %3485 = vmatprep.mubr.bf16.mxu0 %v1142
        %3486 = vmatmul.mubr.bf16.gmra.mxu0 %v1141
        %v3487 = vpop.f32.mrf.mxu0
        %v3488 = vadd.f32 %v3448, %v3487
        %v3489 = vpop.f32.mrf.mxu0
        %v3490 = vpop.f32.mrf.mxu0
        %v3491 = vpop.f32.mrf.mxu0
        %3492 = vdwg.mxu0
        %3493 = vmatprep.subr.bf16.mxu0 0
        %3494 = vmatpush1.bf16.msra.mxu0 %v2036
        %3495 = vmatprep.subr.bf16.mxu0 0
        %3496 = vmatpush1.bf16.msra.mxu0 %v2035
        %3497 = vmatprep.subr.bf16.mxu0 0
        %3498 = vmatpush1.bf16.msra.mxu0 %v2034
        %3499 = vmatprep.subr.bf16.mxu0 0
        %3500 = vmatpush1.bf16.msra.mxu0 %v2033
        %3501 = vmatprep.subr.bf16.mxu0 0
        %3502 = vmatpush1.bf16.msra.mxu0 %v2032
        %3503 = vmatprep.subr.bf16.mxu0 0
        %3504 = vmatpush1.bf16.msra.mxu0 %v2031
        %3505 = vmatprep.subr.bf16.mxu0 0
        %3506 = vmatpush1.bf16.msra.mxu0 %v2030
        %3507 = vmatprep.subr.bf16.mxu0 0
        %3508 = vmatpush1.bf16.msra.mxu0 %v2029
        %3509 = vmatprep.subr.bf16.mxu0 0
        %3510 = vmatpush2.bf16.msra.mxu0 %v2044
        %3511 = vmatprep.subr.bf16.mxu0 0
        %3512 = vmatpush2.bf16.msra.mxu0 %v2043
        %3513 = vmatprep.subr.bf16.mxu0 0
        %3514 = vmatpush2.bf16.msra.mxu0 %v2042
        %3515 = vmatprep.subr.bf16.mxu0 0
        %3516 = vmatpush2.bf16.msra.mxu0 %v2041
        %3517 = vmatprep.subr.bf16.mxu0 0
        %3518 = vmatpush2.bf16.msra.mxu0 %v2040
        %3519 = vmatprep.subr.bf16.mxu0 0
        %3520 = vmatpush2.bf16.msra.mxu0 %v2039
        %3521 = vmatprep.subr.bf16.mxu0 0
        %3522 = vmatpush2.bf16.msra.mxu0 %v2038
        %3523 = vmatprep.subr.bf16.mxu0 0
        %3524 = vmatpush2.bf16.msra.mxu0 %v2037
        %3525 = vmatprep.mubr.bf16.mxu0 %v1144
        %3526 = vmatmul.mubr.bf16.gmra.mxu0 %v1143
        %v3527 = vpop.f32.mrf.mxu0
        %v3528 = vadd.f32 %v3488, %v3527
        %v3529 = vpop.f32.mrf.mxu0
        %v3530 = vpop.f32.mrf.mxu0
        %v3531 = vpop.f32.mrf.mxu0
        %3532 = vdwg.mxu0
        %3533 = vmatprep.subr.bf16.mxu0 0
        %3534 = vmatpush1.bf16.msra.mxu0 %v2052
        %3535 = vmatprep.subr.bf16.mxu0 0
        %3536 = vmatpush1.bf16.msra.mxu0 %v2051
        %3537 = vmatprep.subr.bf16.mxu0 0
        %3538 = vmatpush1.bf16.msra.mxu0 %v2050
        %3539 = vmatprep.subr.bf16.mxu0 0
        %3540 = vmatpush1.bf16.msra.mxu0 %v2049
        %3541 = vmatprep.subr.bf16.mxu0 0
        %3542 = vmatpush1.bf16.msra.mxu0 %v2048
        %3543 = vmatprep.subr.bf16.mxu0 0
        %3544 = vmatpush1.bf16.msra.mxu0 %v2047
        %3545 = vmatprep.subr.bf16.mxu0 0
        %3546 = vmatpush1.bf16.msra.mxu0 %v2046
        %3547 = vmatprep.subr.bf16.mxu0 0
        %3548 = vmatpush1.bf16.msra.mxu0 %v2045
        %3549 = vmatprep.subr.bf16.mxu0 0
        %3550 = vmatpush2.bf16.msra.mxu0 %v2060
        %3551 = vmatprep.subr.bf16.mxu0 0
        %3552 = vmatpush2.bf16.msra.mxu0 %v2059
        %3553 = vmatprep.subr.bf16.mxu0 0
        %3554 = vmatpush2.bf16.msra.mxu0 %v2058
        %3555 = vmatprep.subr.bf16.mxu0 0
        %3556 = vmatpush2.bf16.msra.mxu0 %v2057
        %3557 = vmatprep.subr.bf16.mxu0 0
        %3558 = vmatpush2.bf16.msra.mxu0 %v2056
        %3559 = vmatprep.subr.bf16.mxu0 0
        %3560 = vmatpush2.bf16.msra.mxu0 %v2055
        %3561 = vmatprep.subr.bf16.mxu0 0
        %3562 = vmatpush2.bf16.msra.mxu0 %v2054
        %3563 = vmatprep.subr.bf16.mxu0 0
        %3564 = vmatpush2.bf16.msra.mxu0 %v2053
        %3565 = vmatprep.mubr.bf16.mxu0 %v1146
        %3566 = vmatmul.mubr.bf16.gmra.mxu0 %v1145
        %v3567 = vpop.f32.mrf.mxu0
        %v3568 = vadd.f32 %v3528, %v3567
        %v3569 = vpop.f32.mrf.mxu0
        %v3570 = vpop.f32.mrf.mxu0
        %v3571 = vpop.f32.mrf.mxu0
        %3572 = vdwg.mxu0
        %3573 = vmatprep.subr.bf16.mxu0 0
        %3574 = vmatpush1.bf16.msra.mxu0 %v2068
        %3575 = vmatprep.subr.bf16.mxu0 0
        %3576 = vmatpush1.bf16.msra.mxu0 %v2067
        %3577 = vmatprep.subr.bf16.mxu0 0
        %3578 = vmatpush1.bf16.msra.mxu0 %v2066
        %3579 = vmatprep.subr.bf16.mxu0 0
        %3580 = vmatpush1.bf16.msra.mxu0 %v2065
        %3581 = vmatprep.subr.bf16.mxu0 0
        %3582 = vmatpush1.bf16.msra.mxu0 %v2064
        %3583 = vmatprep.subr.bf16.mxu0 0
        %3584 = vmatpush1.bf16.msra.mxu0 %v2063
        %3585 = vmatprep.subr.bf16.mxu0 0
        %3586 = vmatpush1.bf16.msra.mxu0 %v2062
        %3587 = vmatprep.subr.bf16.mxu0 0
        %3588 = vmatpush1.bf16.msra.mxu0 %v2061
        %3589 = vmatprep.subr.bf16.mxu0 0
        %3590 = vmatpush2.bf16.msra.mxu0 %v2076
        %3591 = vmatprep.subr.bf16.mxu0 0
        %3592 = vmatpush2.bf16.msra.mxu0 %v2075
        %3593 = vmatprep.subr.bf16.mxu0 0
        %3594 = vmatpush2.bf16.msra.mxu0 %v2074
        %3595 = vmatprep.subr.bf16.mxu0 0
        %3596 = vmatpush2.bf16.msra.mxu0 %v2073
        %3597 = vmatprep.subr.bf16.mxu0 0
        %3598 = vmatpush2.bf16.msra.mxu0 %v2072
        %3599 = vmatprep.subr.bf16.mxu0 0
        %3600 = vmatpush2.bf16.msra.mxu0 %v2071
        %3601 = vmatprep.subr.bf16.mxu0 0
        %3602 = vmatpush2.bf16.msra.mxu0 %v2070
        %3603 = vmatprep.subr.bf16.mxu0 0
        %3604 = vmatpush2.bf16.msra.mxu0 %v2069
        %3605 = vmatprep.mubr.bf16.mxu0 %v1148
        %3606 = vmatmul.mubr.bf16.gmra.mxu0 %v1147
        %v3607 = vpop.f32.mrf.mxu0
        %v3608 = vadd.f32 %v3568, %v3607
        %v3609 = vpop.f32.mrf.mxu0
        %v3610 = vpop.f32.mrf.mxu0
        %v3611 = vpop.f32.mrf.mxu0
        %3612 = vdwg.mxu0
        %3613 = vmatprep.subr.bf16.mxu0 0
        %3614 = vmatpush1.bf16.msra.mxu0 %v2084
        %3615 = vmatprep.subr.bf16.mxu0 0
        %3616 = vmatpush1.bf16.msra.mxu0 %v2083
        %3617 = vmatprep.subr.bf16.mxu0 0
        %3618 = vmatpush1.bf16.msra.mxu0 %v2082
        %3619 = vmatprep.subr.bf16.mxu0 0
        %3620 = vmatpush1.bf16.msra.mxu0 %v2081
        %3621 = vmatprep.subr.bf16.mxu0 0
        %3622 = vmatpush1.bf16.msra.mxu0 %v2080
        %3623 = vmatprep.subr.bf16.mxu0 0
        %3624 = vmatpush1.bf16.msra.mxu0 %v2079
        %3625 = vmatprep.subr.bf16.mxu0 0
        %3626 = vmatpush1.bf16.msra.mxu0 %v2078
        %3627 = vmatprep.subr.bf16.mxu0 0
        %3628 = vmatpush1.bf16.msra.mxu0 %v2077
        %3629 = vmatprep.subr.bf16.mxu0 0
        %3630 = vmatpush2.bf16.msra.mxu0 %v2092
        %3631 = vmatprep.subr.bf16.mxu0 0
        %3632 = vmatpush2.bf16.msra.mxu0 %v2091
        %3633 = vmatprep.subr.bf16.mxu0 0
        %3634 = vmatpush2.bf16.msra.mxu0 %v2090
        %3635 = vmatprep.subr.bf16.mxu0 0
        %3636 = vmatpush2.bf16.msra.mxu0 %v2089
        %3637 = vmatprep.subr.bf16.mxu0 0
        %3638 = vmatpush2.bf16.msra.mxu0 %v2088
        %3639 = vmatprep.subr.bf16.mxu0 0
        %3640 = vmatpush2.bf16.msra.mxu0 %v2087
        %3641 = vmatprep.subr.bf16.mxu0 0
        %3642 = vmatpush2.bf16.msra.mxu0 %v2086
        %3643 = vmatprep.subr.bf16.mxu0 0
        %3644 = vmatpush2.bf16.msra.mxu0 %v2085
        %3645 = vmatprep.mubr.bf16.mxu0 %v1150
        %3646 = vmatmul.mubr.bf16.gmra.mxu0 %v1149
        %v3647 = vpop.f32.mrf.mxu0
        %v3648 = vadd.f32 %v3608, %v3647
        %v3649 = vpop.f32.mrf.mxu0
        %v3650 = vpop.f32.mrf.mxu0
        %v3651 = vpop.f32.mrf.mxu0
        %3652 = vdwg.mxu0
        %3653 = vmatprep.subr.bf16.mxu0 0
        %3654 = vmatpush1.bf16.msra.mxu0 %v2100
        %3655 = vmatprep.subr.bf16.mxu0 0
        %3656 = vmatpush1.bf16.msra.mxu0 %v2099
        %3657 = vmatprep.subr.bf16.mxu0 0
        %3658 = vmatpush1.bf16.msra.mxu0 %v2098
        %3659 = vmatprep.subr.bf16.mxu0 0
        %3660 = vmatpush1.bf16.msra.mxu0 %v2097
        %3661 = vmatprep.subr.bf16.mxu0 0
        %3662 = vmatpush1.bf16.msra.mxu0 %v2096
        %3663 = vmatprep.subr.bf16.mxu0 0
        %3664 = vmatpush1.bf16.msra.mxu0 %v2095
        %3665 = vmatprep.subr.bf16.mxu0 0
        %3666 = vmatpush1.bf16.msra.mxu0 %v2094
        %3667 = vmatprep.subr.bf16.mxu0 0
        %3668 = vmatpush1.bf16.msra.mxu0 %v2093
        %3669 = vmatprep.subr.bf16.mxu0 0
        %3670 = vmatpush2.bf16.msra.mxu0 %v2108
        %3671 = vmatprep.subr.bf16.mxu0 0
        %3672 = vmatpush2.bf16.msra.mxu0 %v2107
        %3673 = vmatprep.subr.bf16.mxu0 0
        %3674 = vmatpush2.bf16.msra.mxu0 %v2106
        %3675 = vmatprep.subr.bf16.mxu0 0
        %3676 = vmatpush2.bf16.msra.mxu0 %v2105
        %3677 = vmatprep.subr.bf16.mxu0 0
        %3678 = vmatpush2.bf16.msra.mxu0 %v2104
        %3679 = vmatprep.subr.bf16.mxu0 0
        %3680 = vmatpush2.bf16.msra.mxu0 %v2103
        %3681 = vmatprep.subr.bf16.mxu0 0
        %3682 = vmatpush2.bf16.msra.mxu0 %v2102
        %3683 = vmatprep.subr.bf16.mxu0 0
        %3684 = vmatpush2.bf16.msra.mxu0 %v2101
        %3685 = vmatprep.mubr.bf16.mxu0 %v1152
        %3686 = vmatmul.mubr.bf16.gmra.mxu0 %v1151
        %v3687 = vpop.f32.mrf.mxu0
        %v3688 = vadd.f32 %v3648, %v3687
        %v3689 = vpop.f32.mrf.mxu0
        %v3690 = vpop.f32.mrf.mxu0
        %v3691 = vpop.f32.mrf.mxu0
        %3692 = vdwg.mxu0
        %3693 = vmatprep.subr.bf16.mxu0 0
        %3694 = vmatpush1.bf16.msra.mxu0 %v2116
        %3695 = vmatprep.subr.bf16.mxu0 0
        %3696 = vmatpush1.bf16.msra.mxu0 %v2115
        %3697 = vmatprep.subr.bf16.mxu0 0
        %3698 = vmatpush1.bf16.msra.mxu0 %v2114
        %3699 = vmatprep.subr.bf16.mxu0 0
        %3700 = vmatpush1.bf16.msra.mxu0 %v2113
        %3701 = vmatprep.subr.bf16.mxu0 0
        %3702 = vmatpush1.bf16.msra.mxu0 %v2112
        %3703 = vmatprep.subr.bf16.mxu0 0
        %3704 = vmatpush1.bf16.msra.mxu0 %v2111
        %3705 = vmatprep.subr.bf16.mxu0 0
        %3706 = vmatpush1.bf16.msra.mxu0 %v2110
        %3707 = vmatprep.subr.bf16.mxu0 0
        %3708 = vmatpush1.bf16.msra.mxu0 %v2109
        %3709 = vmatprep.subr.bf16.mxu0 0
        %3710 = vmatpush2.bf16.msra.mxu0 %v2124
        %3711 = vmatprep.subr.bf16.mxu0 0
        %3712 = vmatpush2.bf16.msra.mxu0 %v2123
        %3713 = vmatprep.subr.bf16.mxu0 0
        %3714 = vmatpush2.bf16.msra.mxu0 %v2122
        %3715 = vmatprep.subr.bf16.mxu0 0
        %3716 = vmatpush2.bf16.msra.mxu0 %v2121
        %3717 = vmatprep.subr.bf16.mxu0 0
        %3718 = vmatpush2.bf16.msra.mxu0 %v2120
        %3719 = vmatprep.subr.bf16.mxu0 0
        %3720 = vmatpush2.bf16.msra.mxu0 %v2119
        %3721 = vmatprep.subr.bf16.mxu0 0
        %3722 = vmatpush2.bf16.msra.mxu0 %v2118
        %3723 = vmatprep.subr.bf16.mxu0 0
        %3724 = vmatpush2.bf16.msra.mxu0 %v2117
        %3725 = vmatprep.mubr.bf16.mxu0 %v1154
        %3726 = vmatmul.mubr.bf16.gmra.mxu0 %v1153
        %v3727 = vpop.f32.mrf.mxu0
        %v3728 = vadd.f32 %v3688, %v3727
        %v3729 = vpop.f32.mrf.mxu0
        %v3730 = vpop.f32.mrf.mxu0
        %v3731 = vpop.f32.mrf.mxu0
        %3732 = vdwg.mxu0
        %3733 = vmatprep.subr.bf16.mxu0 0
        %3734 = vmatpush1.bf16.msra.mxu0 %v2132
        %3735 = vmatprep.subr.bf16.mxu0 0
        %3736 = vmatpush1.bf16.msra.mxu0 %v2131
        %3737 = vmatprep.subr.bf16.mxu0 0
        %3738 = vmatpush1.bf16.msra.mxu0 %v2130
        %3739 = vmatprep.subr.bf16.mxu0 0
        %3740 = vmatpush1.bf16.msra.mxu0 %v2129
        %3741 = vmatprep.subr.bf16.mxu0 0
        %3742 = vmatpush1.bf16.msra.mxu0 %v2128
        %3743 = vmatprep.subr.bf16.mxu0 0
        %3744 = vmatpush1.bf16.msra.mxu0 %v2127
        %3745 = vmatprep.subr.bf16.mxu0 0
        %3746 = vmatpush1.bf16.msra.mxu0 %v2126
        %3747 = vmatprep.subr.bf16.mxu0 0
        %3748 = vmatpush1.bf16.msra.mxu0 %v2125
        %3749 = vmatprep.subr.bf16.mxu0 0
        %3750 = vmatpush2.bf16.msra.mxu0 %v2140
        %3751 = vmatprep.subr.bf16.mxu0 0
        %3752 = vmatpush2.bf16.msra.mxu0 %v2139
        %3753 = vmatprep.subr.bf16.mxu0 0
        %3754 = vmatpush2.bf16.msra.mxu0 %v2138
        %3755 = vmatprep.subr.bf16.mxu0 0
        %3756 = vmatpush2.bf16.msra.mxu0 %v2137
        %3757 = vmatprep.subr.bf16.mxu0 0
        %3758 = vmatpush2.bf16.msra.mxu0 %v2136
        %3759 = vmatprep.subr.bf16.mxu0 0
        %3760 = vmatpush2.bf16.msra.mxu0 %v2135
        %3761 = vmatprep.subr.bf16.mxu0 0
        %3762 = vmatpush2.bf16.msra.mxu0 %v2134
        %3763 = vmatprep.subr.bf16.mxu0 0
        %3764 = vmatpush2.bf16.msra.mxu0 %v2133
        %3765 = vmatprep.mubr.bf16.mxu0 %v1156
        %3766 = vmatmul.mubr.bf16.gmra.mxu0 %v1155
        %v3767 = vpop.f32.mrf.mxu0
        %v3768 = vadd.f32 %v3728, %v3767
        %v3769 = vpop.f32.mrf.mxu0
        %v3770 = vpop.f32.mrf.mxu0
        %v3771 = vpop.f32.mrf.mxu0
        %3772 = vdwg.mxu0
        %3773 = vmatprep.subr.bf16.mxu0 0
        %3774 = vmatpush1.bf16.msra.mxu0 %v2148
        %3775 = vmatprep.subr.bf16.mxu0 0
        %3776 = vmatpush1.bf16.msra.mxu0 %v2147
        %3777 = vmatprep.subr.bf16.mxu0 0
        %3778 = vmatpush1.bf16.msra.mxu0 %v2146
        %3779 = vmatprep.subr.bf16.mxu0 0
        %3780 = vmatpush1.bf16.msra.mxu0 %v2145
        %3781 = vmatprep.subr.bf16.mxu0 0
        %3782 = vmatpush1.bf16.msra.mxu0 %v2144
        %3783 = vmatprep.subr.bf16.mxu0 0
        %3784 = vmatpush1.bf16.msra.mxu0 %v2143
        %3785 = vmatprep.subr.bf16.mxu0 0
        %3786 = vmatpush1.bf16.msra.mxu0 %v2142
        %3787 = vmatprep.subr.bf16.mxu0 0
        %3788 = vmatpush1.bf16.msra.mxu0 %v2141
        %3789 = vmatprep.subr.bf16.mxu0 0
        %3790 = vmatpush2.bf16.msra.mxu0 %v2156
        %3791 = vmatprep.subr.bf16.mxu0 0
        %3792 = vmatpush2.bf16.msra.mxu0 %v2155
        %3793 = vmatprep.subr.bf16.mxu0 0
        %3794 = vmatpush2.bf16.msra.mxu0 %v2154
        %3795 = vmatprep.subr.bf16.mxu0 0
        %3796 = vmatpush2.bf16.msra.mxu0 %v2153
        %3797 = vmatprep.subr.bf16.mxu0 0
        %3798 = vmatpush2.bf16.msra.mxu0 %v2152
        %3799 = vmatprep.subr.bf16.mxu0 0
        %3800 = vmatpush2.bf16.msra.mxu0 %v2151
        %3801 = vmatprep.subr.bf16.mxu0 0
        %3802 = vmatpush2.bf16.msra.mxu0 %v2150
        %3803 = vmatprep.subr.bf16.mxu0 0
        %3804 = vmatpush2.bf16.msra.mxu0 %v2149
        %3805 = vmatprep.mubr.bf16.mxu0 %v1158
        %3806 = vmatmul.mubr.bf16.gmra.mxu0 %v1157
        %v3807 = vpop.f32.mrf.mxu0
        %v3808 = vadd.f32 %v3768, %v3807
        %v3809 = vpop.f32.mrf.mxu0
        %v3810 = vpop.f32.mrf.mxu0
        %v3811 = vpop.f32.mrf.mxu0
        %3812 = vdwg.mxu0
        %3813 = vmatprep.subr.bf16.mxu0 0
        %3814 = vmatpush1.bf16.msra.mxu0 %v2164
        %3815 = vmatprep.subr.bf16.mxu0 0
        %3816 = vmatpush1.bf16.msra.mxu0 %v2163
        %3817 = vmatprep.subr.bf16.mxu0 0
        %3818 = vmatpush1.bf16.msra.mxu0 %v2162
        %3819 = vmatprep.subr.bf16.mxu0 0
        %3820 = vmatpush1.bf16.msra.mxu0 %v2161
        %3821 = vmatprep.subr.bf16.mxu0 0
        %3822 = vmatpush1.bf16.msra.mxu0 %v2160
        %3823 = vmatprep.subr.bf16.mxu0 0
        %3824 = vmatpush1.bf16.msra.mxu0 %v2159
        %3825 = vmatprep.subr.bf16.mxu0 0
        %3826 = vmatpush1.bf16.msra.mxu0 %v2158
        %3827 = vmatprep.subr.bf16.mxu0 0
        %3828 = vmatpush1.bf16.msra.mxu0 %v2157
        %3829 = vmatprep.subr.bf16.mxu0 0
        %3830 = vmatpush2.bf16.msra.mxu0 %v2172
        %3831 = vmatprep.subr.bf16.mxu0 0
        %3832 = vmatpush2.bf16.msra.mxu0 %v2171
        %3833 = vmatprep.subr.bf16.mxu0 0
        %3834 = vmatpush2.bf16.msra.mxu0 %v2170
        %3835 = vmatprep.subr.bf16.mxu0 0
        %3836 = vmatpush2.bf16.msra.mxu0 %v2169
        %3837 = vmatprep.subr.bf16.mxu0 0
        %3838 = vmatpush2.bf16.msra.mxu0 %v2168
        %3839 = vmatprep.subr.bf16.mxu0 0
        %3840 = vmatpush2.bf16.msra.mxu0 %v2167
        %3841 = vmatprep.subr.bf16.mxu0 0
        %3842 = vmatpush2.bf16.msra.mxu0 %v2166
        %3843 = vmatprep.subr.bf16.mxu0 0
        %3844 = vmatpush2.bf16.msra.mxu0 %v2165
        %3845 = vmatprep.mubr.bf16.mxu0 %v1160
        %3846 = vmatmul.mubr.bf16.gmra.mxu0 %v1159
        %v3847 = vpop.f32.mrf.mxu0
        %v3848 = vadd.f32 %v3808, %v3847
        %v3849 = vpop.f32.mrf.mxu0
        %v3850 = vpop.f32.mrf.mxu0
        %v3851 = vpop.f32.mrf.mxu0
        %3852 = vdwg.mxu0
        %3853 = vmatprep.subr.bf16.mxu0 0
        %3854 = vmatpush1.bf16.msra.mxu0 %v2180
        %3855 = vmatprep.subr.bf16.mxu0 0
        %3856 = vmatpush1.bf16.msra.mxu0 %v2179
        %3857 = vmatprep.subr.bf16.mxu0 0
        %3858 = vmatpush1.bf16.msra.mxu0 %v2178
        %3859 = vmatprep.subr.bf16.mxu0 0
        %3860 = vmatpush1.bf16.msra.mxu0 %v2177
        %3861 = vmatprep.subr.bf16.mxu0 0
        %3862 = vmatpush1.bf16.msra.mxu0 %v2176
        %3863 = vmatprep.subr.bf16.mxu0 0
        %3864 = vmatpush1.bf16.msra.mxu0 %v2175
        %3865 = vmatprep.subr.bf16.mxu0 0
        %3866 = vmatpush1.bf16.msra.mxu0 %v2174
        %3867 = vmatprep.subr.bf16.mxu0 0
        %3868 = vmatpush1.bf16.msra.mxu0 %v2173
        %3869 = vmatprep.subr.bf16.mxu0 0
        %3870 = vmatpush2.bf16.msra.mxu0 %v2188
        %3871 = vmatprep.subr.bf16.mxu0 0
        %3872 = vmatpush2.bf16.msra.mxu0 %v2187
        %3873 = vmatprep.subr.bf16.mxu0 0
        %3874 = vmatpush2.bf16.msra.mxu0 %v2186
        %3875 = vmatprep.subr.bf16.mxu0 0
        %3876 = vmatpush2.bf16.msra.mxu0 %v2185
        %3877 = vmatprep.subr.bf16.mxu0 0
        %3878 = vmatpush2.bf16.msra.mxu0 %v2184
        %3879 = vmatprep.subr.bf16.mxu0 0
        %3880 = vmatpush2.bf16.msra.mxu0 %v2183
        %3881 = vmatprep.subr.bf16.mxu0 0
        %3882 = vmatpush2.bf16.msra.mxu0 %v2182
        %3883 = vmatprep.subr.bf16.mxu0 0
        %3884 = vmatpush2.bf16.msra.mxu0 %v2181
        %3885 = vmatprep.mubr.bf16.mxu0 %v1162
        %3886 = vmatmul.mubr.bf16.gmra.mxu0 %v1161
        %v3887 = vpop.f32.mrf.mxu0
        %v3888 = vadd.f32 %v3848, %v3887
        %v3889 = vpop.f32.mrf.mxu0
        %v3890 = vpop.f32.mrf.mxu0
        %v3891 = vpop.f32.mrf.mxu0
        %3892 = vdwg.mxu0
        %3893 = vmatprep.subr.bf16.mxu0 0
        %3894 = vmatpush1.bf16.msra.mxu0 %v2196
        %3895 = vmatprep.subr.bf16.mxu0 0
        %3896 = vmatpush1.bf16.msra.mxu0 %v2195
        %3897 = vmatprep.subr.bf16.mxu0 0
        %3898 = vmatpush1.bf16.msra.mxu0 %v2194
        %3899 = vmatprep.subr.bf16.mxu0 0
        %3900 = vmatpush1.bf16.msra.mxu0 %v2193
        %3901 = vmatprep.subr.bf16.mxu0 0
        %3902 = vmatpush1.bf16.msra.mxu0 %v2192
        %3903 = vmatprep.subr.bf16.mxu0 0
        %3904 = vmatpush1.bf16.msra.mxu0 %v2191
        %3905 = vmatprep.subr.bf16.mxu0 0
        %3906 = vmatpush1.bf16.msra.mxu0 %v2190
        %3907 = vmatprep.subr.bf16.mxu0 0
        %3908 = vmatpush1.bf16.msra.mxu0 %v2189
        %3909 = vmatprep.subr.bf16.mxu0 0
        %3910 = vmatpush2.bf16.msra.mxu0 %v2204
        %3911 = vmatprep.subr.bf16.mxu0 0
        %3912 = vmatpush2.bf16.msra.mxu0 %v2203
        %3913 = vmatprep.subr.bf16.mxu0 0
        %3914 = vmatpush2.bf16.msra.mxu0 %v2202
        %3915 = vmatprep.subr.bf16.mxu0 0
        %3916 = vmatpush2.bf16.msra.mxu0 %v2201
        %3917 = vmatprep.subr.bf16.mxu0 0
        %3918 = vmatpush2.bf16.msra.mxu0 %v2200
        %3919 = vmatprep.subr.bf16.mxu0 0
        %3920 = vmatpush2.bf16.msra.mxu0 %v2199
        %3921 = vmatprep.subr.bf16.mxu0 0
        %3922 = vmatpush2.bf16.msra.mxu0 %v2198
        %3923 = vmatprep.subr.bf16.mxu0 0
        %3924 = vmatpush2.bf16.msra.mxu0 %v2197
        %3925 = vmatprep.mubr.bf16.mxu0 %v1164
        %3926 = vmatmul.mubr.bf16.gmra.mxu0 %v1163
        %v3927 = vpop.f32.mrf.mxu0
        %v3928 = vadd.f32 %v3888, %v3927
        %v3929 = vpop.f32.mrf.mxu0
        %v3930 = vpop.f32.mrf.mxu0
        %v3931 = vpop.f32.mrf.mxu0
        %3932 = vdwg.mxu0
        %3933 = vmatprep.subr.bf16.mxu0 0
        %3934 = vmatpush1.bf16.msra.mxu0 %v2212
        %3935 = vmatprep.subr.bf16.mxu0 0
        %3936 = vmatpush1.bf16.msra.mxu0 %v2211
        %3937 = vmatprep.subr.bf16.mxu0 0
        %3938 = vmatpush1.bf16.msra.mxu0 %v2210
        %3939 = vmatprep.subr.bf16.mxu0 0
        %3940 = vmatpush1.bf16.msra.mxu0 %v2209
        %3941 = vmatprep.subr.bf16.mxu0 0
        %3942 = vmatpush1.bf16.msra.mxu0 %v2208
        %3943 = vmatprep.subr.bf16.mxu0 0
        %3944 = vmatpush1.bf16.msra.mxu0 %v2207
        %3945 = vmatprep.subr.bf16.mxu0 0
        %3946 = vmatpush1.bf16.msra.mxu0 %v2206
        %3947 = vmatprep.subr.bf16.mxu0 0
        %3948 = vmatpush1.bf16.msra.mxu0 %v2205
        %3949 = vmatprep.subr.bf16.mxu0 0
        %3950 = vmatpush2.bf16.msra.mxu0 %v2220
        %3951 = vmatprep.subr.bf16.mxu0 0
        %3952 = vmatpush2.bf16.msra.mxu0 %v2219
        %3953 = vmatprep.subr.bf16.mxu0 0
        %3954 = vmatpush2.bf16.msra.mxu0 %v2218
        %3955 = vmatprep.subr.bf16.mxu0 0
        %3956 = vmatpush2.bf16.msra.mxu0 %v2217
        %3957 = vmatprep.subr.bf16.mxu0 0
        %3958 = vmatpush2.bf16.msra.mxu0 %v2216
        %3959 = vmatprep.subr.bf16.mxu0 0
        %3960 = vmatpush2.bf16.msra.mxu0 %v2215
        %3961 = vmatprep.subr.bf16.mxu0 0
        %3962 = vmatpush2.bf16.msra.mxu0 %v2214
        %3963 = vmatprep.subr.bf16.mxu0 0
        %3964 = vmatpush2.bf16.msra.mxu0 %v2213
        %3965 = vmatprep.mubr.bf16.mxu0 %v1166
        %3966 = vmatmul.mubr.bf16.gmra.mxu0 %v1165
        %v3967 = vpop.f32.mrf.mxu0
        %v3968 = vadd.f32 %v3928, %v3967
        %v3969 = vpop.f32.mrf.mxu0
        %v3970 = vpop.f32.mrf.mxu0
        %v3971 = vpop.f32.mrf.mxu0
        %3972 = vdwg.mxu0
        %3973 = vmatprep.subr.bf16.mxu0 0
        %3974 = vmatpush1.bf16.msra.mxu0 %v2228
        %3975 = vmatprep.subr.bf16.mxu0 0
        %3976 = vmatpush1.bf16.msra.mxu0 %v2227
        %3977 = vmatprep.subr.bf16.mxu0 0
        %3978 = vmatpush1.bf16.msra.mxu0 %v2226
        %3979 = vmatprep.subr.bf16.mxu0 0
        %3980 = vmatpush1.bf16.msra.mxu0 %v2225
        %3981 = vmatprep.subr.bf16.mxu0 0
        %3982 = vmatpush1.bf16.msra.mxu0 %v2224
        %3983 = vmatprep.subr.bf16.mxu0 0
        %3984 = vmatpush1.bf16.msra.mxu0 %v2223
        %3985 = vmatprep.subr.bf16.mxu0 0
        %3986 = vmatpush1.bf16.msra.mxu0 %v2222
        %3987 = vmatprep.subr.bf16.mxu0 0
        %3988 = vmatpush1.bf16.msra.mxu0 %v2221
        %3989 = vmatprep.subr.bf16.mxu0 0
        %3990 = vmatpush2.bf16.msra.mxu0 %v2236
        %3991 = vmatprep.subr.bf16.mxu0 0
        %3992 = vmatpush2.bf16.msra.mxu0 %v2235
        %3993 = vmatprep.subr.bf16.mxu0 0
        %3994 = vmatpush2.bf16.msra.mxu0 %v2234
        %3995 = vmatprep.subr.bf16.mxu0 0
        %3996 = vmatpush2.bf16.msra.mxu0 %v2233
        %3997 = vmatprep.subr.bf16.mxu0 0
        %3998 = vmatpush2.bf16.msra.mxu0 %v2232
        %3999 = vmatprep.subr.bf16.mxu0 0
        %4000 = vmatpush2.bf16.msra.mxu0 %v2231
        %4001 = vmatprep.subr.bf16.mxu0 0
        %4002 = vmatpush2.bf16.msra.mxu0 %v2230
        %4003 = vmatprep.subr.bf16.mxu0 0
        %4004 = vmatpush2.bf16.msra.mxu0 %v2229
        %4005 = vmatprep.mubr.bf16.mxu0 %v1168
        %4006 = vmatmul.mubr.bf16.gmra.mxu0 %v1167
        %v4007 = vpop.f32.mrf.mxu0
        %v4008 = vadd.f32 %v3968, %v4007
        %v4009 = vpop.f32.mrf.mxu0
        %v4010 = vpop.f32.mrf.mxu0
        %v4011 = vpop.f32.mrf.mxu0
        %4012 = vdwg.mxu0
        %4013 = vmatprep.subr.bf16.mxu0 0
        %4014 = vmatpush1.bf16.msra.mxu0 %v2244
        %4015 = vmatprep.subr.bf16.mxu0 0
        %4016 = vmatpush1.bf16.msra.mxu0 %v2243
        %4017 = vmatprep.subr.bf16.mxu0 0
        %4018 = vmatpush1.bf16.msra.mxu0 %v2242
        %4019 = vmatprep.subr.bf16.mxu0 0
        %4020 = vmatpush1.bf16.msra.mxu0 %v2241
        %4021 = vmatprep.subr.bf16.mxu0 0
        %4022 = vmatpush1.bf16.msra.mxu0 %v2240
        %4023 = vmatprep.subr.bf16.mxu0 0
        %4024 = vmatpush1.bf16.msra.mxu0 %v2239
        %4025 = vmatprep.subr.bf16.mxu0 0
        %4026 = vmatpush1.bf16.msra.mxu0 %v2238
        %4027 = vmatprep.subr.bf16.mxu0 0
        %4028 = vmatpush1.bf16.msra.mxu0 %v2237
        %4029 = vmatprep.subr.bf16.mxu0 0
        %4030 = vmatpush2.bf16.msra.mxu0 %v2252
        %4031 = vmatprep.subr.bf16.mxu0 0
        %4032 = vmatpush2.bf16.msra.mxu0 %v2251
        %4033 = vmatprep.subr.bf16.mxu0 0
        %4034 = vmatpush2.bf16.msra.mxu0 %v2250
        %4035 = vmatprep.subr.bf16.mxu0 0
        %4036 = vmatpush2.bf16.msra.mxu0 %v2249
        %4037 = vmatprep.subr.bf16.mxu0 0
        %4038 = vmatpush2.bf16.msra.mxu0 %v2248
        %4039 = vmatprep.subr.bf16.mxu0 0
        %4040 = vmatpush2.bf16.msra.mxu0 %v2247
        %4041 = vmatprep.subr.bf16.mxu0 0
        %4042 = vmatpush2.bf16.msra.mxu0 %v2246
        %4043 = vmatprep.subr.bf16.mxu0 0
        %4044 = vmatpush2.bf16.msra.mxu0 %v2245
        %4045 = vmatprep.mubr.bf16.mxu0 %v1170
        %4046 = vmatmul.mubr.bf16.gmra.mxu0 %v1169
        %v4047 = vpop.f32.mrf.mxu0
        %v4048 = vadd.f32 %v4008, %v4047
        %v4049 = vpop.f32.mrf.mxu0
        %v4050 = vpop.f32.mrf.mxu0
        %v4051 = vpop.f32.mrf.mxu0
        %4052 = vdwg.mxu0
        %4053 = vmatprep.subr.bf16.mxu0 0
        %4054 = vmatpush1.bf16.msra.mxu0 %v2260
        %4055 = vmatprep.subr.bf16.mxu0 0
        %4056 = vmatpush1.bf16.msra.mxu0 %v2259
        %4057 = vmatprep.subr.bf16.mxu0 0
        %4058 = vmatpush1.bf16.msra.mxu0 %v2258
        %4059 = vmatprep.subr.bf16.mxu0 0
        %4060 = vmatpush1.bf16.msra.mxu0 %v2257
        %4061 = vmatprep.subr.bf16.mxu0 0
        %4062 = vmatpush1.bf16.msra.mxu0 %v2256
        %4063 = vmatprep.subr.bf16.mxu0 0
        %4064 = vmatpush1.bf16.msra.mxu0 %v2255
        %4065 = vmatprep.subr.bf16.mxu0 0
        %4066 = vmatpush1.bf16.msra.mxu0 %v2254
        %4067 = vmatprep.subr.bf16.mxu0 0
        %4068 = vmatpush1.bf16.msra.mxu0 %v2253
        %4069 = vmatprep.subr.bf16.mxu0 0
        %4070 = vmatpush2.bf16.msra.mxu0 %v2268
        %4071 = vmatprep.subr.bf16.mxu0 0
        %4072 = vmatpush2.bf16.msra.mxu0 %v2267
        %4073 = vmatprep.subr.bf16.mxu0 0
        %4074 = vmatpush2.bf16.msra.mxu0 %v2266
        %4075 = vmatprep.subr.bf16.mxu0 0
        %4076 = vmatpush2.bf16.msra.mxu0 %v2265
        %4077 = vmatprep.subr.bf16.mxu0 0
        %4078 = vmatpush2.bf16.msra.mxu0 %v2264
        %4079 = vmatprep.subr.bf16.mxu0 0
        %4080 = vmatpush2.bf16.msra.mxu0 %v2263
        %4081 = vmatprep.subr.bf16.mxu0 0
        %4082 = vmatpush2.bf16.msra.mxu0 %v2262
        %4083 = vmatprep.subr.bf16.mxu0 0
        %4084 = vmatpush2.bf16.msra.mxu0 %v2261
        %4085 = vmatprep.mubr.bf16.mxu0 %v1172
        %4086 = vmatmul.mubr.bf16.gmra.mxu0 %v1171
        %v4087 = vpop.f32.mrf.mxu0
        %v4088 = vadd.f32 %v4048, %v4087
        %v4089 = vpop.f32.mrf.mxu0
        %v4090 = vpop.f32.mrf.mxu0
        %v4091 = vpop.f32.mrf.mxu0
        %4092 = vdwg.mxu0
        %4093 = vmatprep.subr.bf16.mxu0 0
        %4094 = vmatpush1.bf16.msra.mxu0 %v2276
        %4095 = vmatprep.subr.bf16.mxu0 0
        %4096 = vmatpush1.bf16.msra.mxu0 %v2275
        %4097 = vmatprep.subr.bf16.mxu0 0
        %4098 = vmatpush1.bf16.msra.mxu0 %v2274
        %4099 = vmatprep.subr.bf16.mxu0 0
        %4100 = vmatpush1.bf16.msra.mxu0 %v2273
        %4101 = vmatprep.subr.bf16.mxu0 0
        %4102 = vmatpush1.bf16.msra.mxu0 %v2272
        %4103 = vmatprep.subr.bf16.mxu0 0
        %4104 = vmatpush1.bf16.msra.mxu0 %v2271
        %4105 = vmatprep.subr.bf16.mxu0 0
        %4106 = vmatpush1.bf16.msra.mxu0 %v2270
        %4107 = vmatprep.subr.bf16.mxu0 0
        %4108 = vmatpush1.bf16.msra.mxu0 %v2269
        %4109 = vmatprep.subr.bf16.mxu0 0
        %4110 = vmatpush2.bf16.msra.mxu0 %v2284
        %4111 = vmatprep.subr.bf16.mxu0 0
        %4112 = vmatpush2.bf16.msra.mxu0 %v2283
        %4113 = vmatprep.subr.bf16.mxu0 0
        %4114 = vmatpush2.bf16.msra.mxu0 %v2282
        %4115 = vmatprep.subr.bf16.mxu0 0
        %4116 = vmatpush2.bf16.msra.mxu0 %v2281
        %4117 = vmatprep.subr.bf16.mxu0 0
        %4118 = vmatpush2.bf16.msra.mxu0 %v2280
        %4119 = vmatprep.subr.bf16.mxu0 0
        %4120 = vmatpush2.bf16.msra.mxu0 %v2279
        %4121 = vmatprep.subr.bf16.mxu0 0
        %4122 = vmatpush2.bf16.msra.mxu0 %v2278
        %4123 = vmatprep.subr.bf16.mxu0 0
        %4124 = vmatpush2.bf16.msra.mxu0 %v2277
        %4125 = vmatprep.mubr.bf16.mxu0 %v1174
        %4126 = vmatmul.mubr.bf16.gmra.mxu0 %v1173
        %v4127 = vpop.f32.mrf.mxu0
        %v4128 = vadd.f32 %v4088, %v4127
        %v4129 = vpop.f32.mrf.mxu0
        %v4130 = vpop.f32.mrf.mxu0
        %v4131 = vpop.f32.mrf.mxu0
        %4132 = vdwg.mxu0
        %4133 = vmatprep.subr.bf16.mxu0 0
        %4134 = vmatpush1.bf16.msra.mxu0 %v2292
        %4135 = vmatprep.subr.bf16.mxu0 0
        %4136 = vmatpush1.bf16.msra.mxu0 %v2291
        %4137 = vmatprep.subr.bf16.mxu0 0
        %4138 = vmatpush1.bf16.msra.mxu0 %v2290
        %4139 = vmatprep.subr.bf16.mxu0 0
        %4140 = vmatpush1.bf16.msra.mxu0 %v2289
        %4141 = vmatprep.subr.bf16.mxu0 0
        %4142 = vmatpush1.bf16.msra.mxu0 %v2288
        %4143 = vmatprep.subr.bf16.mxu0 0
        %4144 = vmatpush1.bf16.msra.mxu0 %v2287
        %4145 = vmatprep.subr.bf16.mxu0 0
        %4146 = vmatpush1.bf16.msra.mxu0 %v2286
        %4147 = vmatprep.subr.bf16.mxu0 0
        %4148 = vmatpush1.bf16.msra.mxu0 %v2285
        %4149 = vmatprep.subr.bf16.mxu0 0
        %4150 = vmatpush2.bf16.msra.mxu0 %v2300
        %4151 = vmatprep.subr.bf16.mxu0 0
        %4152 = vmatpush2.bf16.msra.mxu0 %v2299
        %4153 = vmatprep.subr.bf16.mxu0 0
        %4154 = vmatpush2.bf16.msra.mxu0 %v2298
        %4155 = vmatprep.subr.bf16.mxu0 0
        %4156 = vmatpush2.bf16.msra.mxu0 %v2297
        %4157 = vmatprep.subr.bf16.mxu0 0
        %4158 = vmatpush2.bf16.msra.mxu0 %v2296
        %4159 = vmatprep.subr.bf16.mxu0 0
        %4160 = vmatpush2.bf16.msra.mxu0 %v2295
        %4161 = vmatprep.subr.bf16.mxu0 0
        %4162 = vmatpush2.bf16.msra.mxu0 %v2294
        %4163 = vmatprep.subr.bf16.mxu0 0
        %4164 = vmatpush2.bf16.msra.mxu0 %v2293
        %4165 = vmatprep.mubr.bf16.mxu0 %v1176
        %4166 = vmatmul.mubr.bf16.gmra.mxu0 %v1175
        %v4167 = vpop.f32.mrf.mxu0
        %v4168 = vadd.f32 %v4128, %v4167
        %v4169 = vpop.f32.mrf.mxu0
        %v4170 = vpop.f32.mrf.mxu0
        %v4171 = vpop.f32.mrf.mxu0
        %4172 = vdwg.mxu0
        %4173 = vmatprep.subr.bf16.mxu0 0
        %4174 = vmatpush1.bf16.msra.mxu0 %v2308
        %4175 = vmatprep.subr.bf16.mxu0 0
        %4176 = vmatpush1.bf16.msra.mxu0 %v2307
        %4177 = vmatprep.subr.bf16.mxu0 0
        %4178 = vmatpush1.bf16.msra.mxu0 %v2306
        %4179 = vmatprep.subr.bf16.mxu0 0
        %4180 = vmatpush1.bf16.msra.mxu0 %v2305
        %4181 = vmatprep.subr.bf16.mxu0 0
        %4182 = vmatpush1.bf16.msra.mxu0 %v2304
        %4183 = vmatprep.subr.bf16.mxu0 0
        %4184 = vmatpush1.bf16.msra.mxu0 %v2303
        %4185 = vmatprep.subr.bf16.mxu0 0
        %4186 = vmatpush1.bf16.msra.mxu0 %v2302
        %4187 = vmatprep.subr.bf16.mxu0 0
        %4188 = vmatpush1.bf16.msra.mxu0 %v2301
        %4189 = vmatprep.subr.bf16.mxu0 0
        %4190 = vmatpush2.bf16.msra.mxu0 %v2316
        %4191 = vmatprep.subr.bf16.mxu0 0
        %4192 = vmatpush2.bf16.msra.mxu0 %v2315
        %4193 = vmatprep.subr.bf16.mxu0 0
        %4194 = vmatpush2.bf16.msra.mxu0 %v2314
        %4195 = vmatprep.subr.bf16.mxu0 0
        %4196 = vmatpush2.bf16.msra.mxu0 %v2313
        %4197 = vmatprep.subr.bf16.mxu0 0
        %4198 = vmatpush2.bf16.msra.mxu0 %v2312
        %4199 = vmatprep.subr.bf16.mxu0 0
        %4200 = vmatpush2.bf16.msra.mxu0 %v2311
        %4201 = vmatprep.subr.bf16.mxu0 0
        %4202 = vmatpush2.bf16.msra.mxu0 %v2310
        %4203 = vmatprep.subr.bf16.mxu0 0
        %4204 = vmatpush2.bf16.msra.mxu0 %v2309
        %4205 = vmatprep.mubr.bf16.mxu0 %v1178
        %4206 = vmatmul.mubr.bf16.gmra.mxu0 %v1177
        %v4207 = vpop.f32.mrf.mxu0
        %v4208 = vadd.f32 %v4168, %v4207
        %v4209 = vpop.f32.mrf.mxu0
        %v4210 = vpop.f32.mrf.mxu0
        %v4211 = vpop.f32.mrf.mxu0
        %4212 = vdwg.mxu0
        %4213 = vmatprep.subr.bf16.mxu0 0
        %4214 = vmatpush1.bf16.msra.mxu0 %v2324
        %4215 = vmatprep.subr.bf16.mxu0 0
        %4216 = vmatpush1.bf16.msra.mxu0 %v2323
        %4217 = vmatprep.subr.bf16.mxu0 0
        %4218 = vmatpush1.bf16.msra.mxu0 %v2322
        %4219 = vmatprep.subr.bf16.mxu0 0
        %4220 = vmatpush1.bf16.msra.mxu0 %v2321
        %4221 = vmatprep.subr.bf16.mxu0 0
        %4222 = vmatpush1.bf16.msra.mxu0 %v2320
        %4223 = vmatprep.subr.bf16.mxu0 0
        %4224 = vmatpush1.bf16.msra.mxu0 %v2319
        %4225 = vmatprep.subr.bf16.mxu0 0
        %4226 = vmatpush1.bf16.msra.mxu0 %v2318
        %4227 = vmatprep.subr.bf16.mxu0 0
        %4228 = vmatpush1.bf16.msra.mxu0 %v2317
        %4229 = vmatprep.subr.bf16.mxu0 0
        %4230 = vmatpush2.bf16.msra.mxu0 %v2332
        %4231 = vmatprep.subr.bf16.mxu0 0
        %4232 = vmatpush2.bf16.msra.mxu0 %v2331
        %4233 = vmatprep.subr.bf16.mxu0 0
        %4234 = vmatpush2.bf16.msra.mxu0 %v2330
        %4235 = vmatprep.subr.bf16.mxu0 0
        %4236 = vmatpush2.bf16.msra.mxu0 %v2329
        %4237 = vmatprep.subr.bf16.mxu0 0
        %4238 = vmatpush2.bf16.msra.mxu0 %v2328
        %4239 = vmatprep.subr.bf16.mxu0 0
        %4240 = vmatpush2.bf16.msra.mxu0 %v2327
        %4241 = vmatprep.subr.bf16.mxu0 0
        %4242 = vmatpush2.bf16.msra.mxu0 %v2326
        %4243 = vmatprep.subr.bf16.mxu0 0
        %4244 = vmatpush2.bf16.msra.mxu0 %v2325
        %4245 = vmatprep.mubr.bf16.mxu0 %v1180
        %4246 = vmatmul.mubr.bf16.gmra.mxu0 %v1179
        %v4247 = vpop.f32.mrf.mxu0
        %v4248 = vadd.f32 %v4208, %v4247
        %v4249 = vpop.f32.mrf.mxu0
        %v4250 = vpop.f32.mrf.mxu0
        %v4251 = vpop.f32.mrf.mxu0
        %4252 = vdwg.mxu0
        %s4253 = scalar_lea.vmem [#allocation7], %s34
        %v4254 = vld [vmem:[%s4253] sm:$0x1]
        %v4256 = vlaneseq
        %v4257 = vshrl.u32 %v4256, 7
        %v4258 = vsub.s32 0, %v4257
        %v4259 = vrot.slane %v4254, %v4258
        %v4261 = vmul.f32 %v4248, %v4259
        %s4262 = scalar_lea.vmem [#allocation8], %s34
        %v4263 = vld [vmem:[%s4262] sm:$0x1]
        %v4265 = vlaneseq
        %v4266 = vshrl.u32 %v4265, 7
        %v4267 = vsub.s32 0, %v4266
        %v4268 = vrot.slane %v4263, %v4267
        %v4270 = vadd.f32 %v4261, %v4268
        %v4271 = vmax.f32 %v4270, 0.0
        %s4272 = smul.u32 %s34, 128
        %s4273 = scalar_lea.vmem [#allocation10], %s4272
        %v4274 = vld [vmem:[%s4273] sm:$0xff]
        %v4275 = vld [vmem:[%s4273 + $0x8] sm:$0xff]
        %v4276 = vld [vmem:[%s4273 + $0x10] sm:$0xff]
        %v4277 = vld [vmem:[%s4273 + $0x18] sm:$0xff]
        %v4278 = vld [vmem:[%s4273 + $0x20] sm:$0xff]
        %v4279 = vld [vmem:[%s4273 + $0x28] sm:$0xff]
        %v4280 = vld [vmem:[%s4273 + $0x30] sm:$0xff]
        %v4281 = vld [vmem:[%s4273 + $0x38] sm:$0xff]
        %v4282 = vld [vmem:[%s4273 + $0x40] sm:$0xff]
        %v4283 = vld [vmem:[%s4273 + $0x48] sm:$0xff]
        %v4284 = vld [vmem:[%s4273 + $0x50] sm:$0xff]
        %v4285 = vld [vmem:[%s4273 + $0x58] sm:$0xff]
        %v4286 = vld [vmem:[%s4273 + $0x60] sm:$0xff]
        %v4287 = vld [vmem:[%s4273 + $0x68] sm:$0xff]
        %v4288 = vld [vmem:[%s4273 + $0x70] sm:$0xff]
        %v4289 = vld [vmem:[%s4273 + $0x78] sm:$0xff]
        %s4290 = scalar_lea.vmem [#allocation11], %s34
        %v4291 = vld [vmem:[%s4290] sm:$0x1]
        %v4293 = vlaneseq
        %v4294 = vshrl.u32 %v4293, 7
        %v4295 = vsub.s32 0, %v4294
        %v4296 = vrot.slane %v4291, %v4295
        %4298 = vmatprep.subr.mxu0 0.0
        %4299 = vmatpush1.msra.mxu0 %v4289
        %4300 = vmatprep.subr.mxu0 0.0
        %4301 = vmatpush1.msra.mxu0 %v4288
        %4302 = vmatprep.subr.mxu0 0.0
        %4303 = vmatpush1.msra.mxu0 %v4287
        %4304 = vmatprep.subr.mxu0 0.0
        %4305 = vmatpush1.msra.mxu0 %v4286
        %4306 = vmatprep.subr.mxu0 0.0
        %4307 = vmatpush1.msra.mxu0 %v4285
        %4308 = vmatprep.subr.mxu0 0.0
        %4309 = vmatpush1.msra.mxu0 %v4284
        %4310 = vmatprep.subr.mxu0 0.0
        %4311 = vmatpush1.msra.mxu0 %v4283
        %4312 = vmatprep.subr.mxu0 0.0
        %4313 = vmatpush1.msra.mxu0 %v4282
        %4314 = vmatprep.subr.mxu0 0.0
        %4315 = vmatpush1.msra.mxu0 %v4281
        %4316 = vmatprep.subr.mxu0 0.0
        %4317 = vmatpush1.msra.mxu0 %v4280
        %4318 = vmatprep.subr.mxu0 0.0
        %4319 = vmatpush1.msra.mxu0 %v4279
        %4320 = vmatprep.subr.mxu0 0.0
        %4321 = vmatpush1.msra.mxu0 %v4278
        %4322 = vmatprep.subr.mxu0 0.0
        %4323 = vmatpush1.msra.mxu0 %v4277
        %4324 = vmatprep.subr.mxu0 0.0
        %4325 = vmatpush1.msra.mxu0 %v4276
        %4326 = vmatprep.subr.mxu0 0.0
        %4327 = vmatpush1.msra.mxu0 %v4275
        %4328 = vmatprep.subr.mxu0 0.0
        %4329 = vmatpush1.msra.mxu0 %v4274
        %4330 = vmatprep.subr.mxu0 0.0
        %4331 = vmatpush2.msra.mxu0 0.0
        %4332 = vmatprep.subr.mxu0 0.0
        %4333 = vmatpush2.msra.mxu0 0.0
        %4334 = vmatprep.subr.mxu0 0.0
        %4335 = vmatpush2.msra.mxu0 0.0
        %4336 = vmatprep.subr.mxu0 0.0
        %4337 = vmatpush2.msra.mxu0 0.0
        %4338 = vmatprep.subr.mxu0 0.0
        %4339 = vmatpush2.msra.mxu0 0.0
        %4340 = vmatprep.subr.mxu0 0.0
        %4341 = vmatpush2.msra.mxu0 0.0
        %4342 = vmatprep.subr.mxu0 0.0
        %4343 = vmatpush2.msra.mxu0 0.0
        %4344 = vmatprep.subr.mxu0 0.0
        %4345 = vmatpush2.msra.mxu0 0.0
        %4346 = vmatprep.subr.mxu0 0.0
        %4347 = vmatpush2.msra.mxu0 0.0
        %4348 = vmatprep.subr.mxu0 0.0
        %4349 = vmatpush2.msra.mxu0 0.0
        %4350 = vmatprep.subr.mxu0 0.0
        %4351 = vmatpush2.msra.mxu0 0.0
        %4352 = vmatprep.subr.mxu0 0.0
        %4353 = vmatpush2.msra.mxu0 0.0
        %4354 = vmatprep.subr.mxu0 0.0
        %4355 = vmatpush2.msra.mxu0 0.0
        %4356 = vmatprep.subr.mxu0 0.0
        %4357 = vmatpush2.msra.mxu0 0.0
        %4358 = vmatprep.subr.mxu0 0.0
        %4359 = vmatpush2.msra.mxu0 0.0
        %4360 = vmatprep.subr.mxu0 0.0
        %4361 = vmatpush2.msra.mxu0 0.0
        %4362 = vmatprep.mubr.f32.mxu0 0.0
        %4363 = vmatmul.mubr.f32.gmra.mxu0 %v4271
        %v4364 = vpop.f32.mrf.mxu0
        %v4365 = vadd.f32 %v4296, %v4364
        %v4366 = vpop.f32.mrf.mxu0
        %4367 = vdwg.mxu0
        %v4368 = vmax.f32 %v4365, 0.0
        %s4369 = scalar_lea.vmem [#allocation13], %s4272
        %v4370 = vld [vmem:[%s4369] sm:$0xff]
        %v4371 = vld [vmem:[%s4369 + $0x8] sm:$0xff]
        %v4372 = vld [vmem:[%s4369 + $0x10] sm:$0xff]
        %v4373 = vld [vmem:[%s4369 + $0x18] sm:$0xff]
        %v4374 = vld [vmem:[%s4369 + $0x20] sm:$0xff]
        %v4375 = vld [vmem:[%s4369 + $0x28] sm:$0xff]
        %v4376 = vld [vmem:[%s4369 + $0x30] sm:$0xff]
        %v4377 = vld [vmem:[%s4369 + $0x38] sm:$0xff]
        %v4378 = vld [vmem:[%s4369 + $0x40] sm:$0xff]
        %v4379 = vld [vmem:[%s4369 + $0x48] sm:$0xff]
        %v4380 = vld [vmem:[%s4369 + $0x50] sm:$0xff]
        %v4381 = vld [vmem:[%s4369 + $0x58] sm:$0xff]
        %v4382 = vld [vmem:[%s4369 + $0x60] sm:$0xff]
        %v4383 = vld [vmem:[%s4369 + $0x68] sm:$0xff]
        %v4384 = vld [vmem:[%s4369 + $0x70] sm:$0xff]
        %v4385 = vld [vmem:[%s4369 + $0x78] sm:$0xff]
        %s4386 = scalar_lea.vmem [#allocation14], %s34
        %v4387 = vld [vmem:[%s4386] sm:$0x1]
        %v4389 = vlaneseq
        %v4390 = vshrl.u32 %v4389, 7
        %v4391 = vsub.s32 0, %v4390
        %v4392 = vrot.slane %v4387, %v4391
        %4394 = vmatprep.subr.mxu0 0.0
        %4395 = vmatpush1.msra.mxu0 %v4385
        %4396 = vmatprep.subr.mxu0 0.0
        %4397 = vmatpush1.msra.mxu0 %v4384
        %4398 = vmatprep.subr.mxu0 0.0
        %4399 = vmatpush1.msra.mxu0 %v4383
        %4400 = vmatprep.subr.mxu0 0.0
        %4401 = vmatpush1.msra.mxu0 %v4382
        %4402 = vmatprep.subr.mxu0 0.0
        %4403 = vmatpush1.msra.mxu0 %v4381
        %4404 = vmatprep.subr.mxu0 0.0
        %4405 = vmatpush1.msra.mxu0 %v4380
        %4406 = vmatprep.subr.mxu0 0.0
        %4407 = vmatpush1.msra.mxu0 %v4379
        %4408 = vmatprep.subr.mxu0 0.0
        %4409 = vmatpush1.msra.mxu0 %v4378
        %4410 = vmatprep.subr.mxu0 0.0
        %4411 = vmatpush1.msra.mxu0 %v4377
        %4412 = vmatprep.subr.mxu0 0.0
        %4413 = vmatpush1.msra.mxu0 %v4376
        %4414 = vmatprep.subr.mxu0 0.0
        %4415 = vmatpush1.msra.mxu0 %v4375
        %4416 = vmatprep.subr.mxu0 0.0
        %4417 = vmatpush1.msra.mxu0 %v4374
        %4418 = vmatprep.subr.mxu0 0.0
        %4419 = vmatpush1.msra.mxu0 %v4373
        %4420 = vmatprep.subr.mxu0 0.0
        %4421 = vmatpush1.msra.mxu0 %v4372
        %4422 = vmatprep.subr.mxu0 0.0
        %4423 = vmatpush1.msra.mxu0 %v4371
        %4424 = vmatprep.subr.mxu0 0.0
        %4425 = vmatpush1.msra.mxu0 %v4370
        %4426 = vmatprep.subr.mxu0 0.0
        %4427 = vmatpush2.msra.mxu0 0.0
        %4428 = vmatprep.subr.mxu0 0.0
        %4429 = vmatpush2.msra.mxu0 0.0
        %4430 = vmatprep.subr.mxu0 0.0
        %4431 = vmatpush2.msra.mxu0 0.0
        %4432 = vmatprep.subr.mxu0 0.0
        %4433 = vmatpush2.msra.mxu0 0.0
        %4434 = vmatprep.subr.mxu0 0.0
        %4435 = vmatpush2.msra.mxu0 0.0
        %4436 = vmatprep.subr.mxu0 0.0
        %4437 = vmatpush2.msra.mxu0 0.0
        %4438 = vmatprep.subr.mxu0 0.0
        %4439 = vmatpush2.msra.mxu0 0.0
        %4440 = vmatprep.subr.mxu0 0.0
        %4441 = vmatpush2.msra.mxu0 0.0
        %4442 = vmatprep.subr.mxu0 0.0
        %4443 = vmatpush2.msra.mxu0 0.0
        %4444 = vmatprep.subr.mxu0 0.0
        %4445 = vmatpush2.msra.mxu0 0.0
        %4446 = vmatprep.subr.mxu0 0.0
        %4447 = vmatpush2.msra.mxu0 0.0
        %4448 = vmatprep.subr.mxu0 0.0
        %4449 = vmatpush2.msra.mxu0 0.0
        %4450 = vmatprep.subr.mxu0 0.0
        %4451 = vmatpush2.msra.mxu0 0.0
        %4452 = vmatprep.subr.mxu0 0.0
        %4453 = vmatpush2.msra.mxu0 0.0
        %4454 = vmatprep.subr.mxu0 0.0
        %4455 = vmatpush2.msra.mxu0 0.0
        %4456 = vmatprep.subr.mxu0 0.0
        %4457 = vmatpush2.msra.mxu0 0.0
        %4458 = vmatprep.mubr.f32.mxu0 0.0
        %4459 = vmatmul.mubr.f32.gmra.mxu0 %v4368
        %v4460 = vpop.f32.mrf.mxu0
        %v4461 = vadd.f32 %v4392, %v4460
        %v4462 = vpop.f32.mrf.mxu0
        %4463 = vdwg.mxu0
        %v4464 = vmax.f32 %v4461, 0.0
        %s4465 = scalar_lea.vmem [#allocation16], %s4272
        %v4466 = vld [vmem:[%s4465] sm:$0xff]
        %v4467 = vld [vmem:[%s4465 + $0x8] sm:$0xff]
        %v4468 = vld [vmem:[%s4465 + $0x10] sm:$0xff]
        %v4469 = vld [vmem:[%s4465 + $0x18] sm:$0xff]
        %v4470 = vld [vmem:[%s4465 + $0x20] sm:$0xff]
        %v4471 = vld [vmem:[%s4465 + $0x28] sm:$0xff]
        %v4472 = vld [vmem:[%s4465 + $0x30] sm:$0xff]
        %v4473 = vld [vmem:[%s4465 + $0x38] sm:$0xff]
        %v4474 = vld [vmem:[%s4465 + $0x40] sm:$0xff]
        %v4475 = vld [vmem:[%s4465 + $0x48] sm:$0xff]
        %v4476 = vld [vmem:[%s4465 + $0x50] sm:$0xff]
        %v4477 = vld [vmem:[%s4465 + $0x58] sm:$0xff]
        %v4478 = vld [vmem:[%s4465 + $0x60] sm:$0xff]
        %v4479 = vld [vmem:[%s4465 + $0x68] sm:$0xff]
        %v4480 = vld [vmem:[%s4465 + $0x70] sm:$0xff]
        %v4481 = vld [vmem:[%s4465 + $0x78] sm:$0xff]
        %s4482 = scalar_lea.vmem [#allocation17], %s34
        %v4483 = vld [vmem:[%s4482] sm:$0x1]
        %v4485 = vlaneseq
        %v4486 = vshrl.u32 %v4485, 7
        %v4487 = vsub.s32 0, %v4486
        %v4488 = vrot.slane %v4483, %v4487
        %4490 = vmatprep.subr.mxu0 0.0
        %4491 = vmatpush1.msra.mxu0 %v4481
        %4492 = vmatprep.subr.mxu0 0.0
        %4493 = vmatpush1.msra.mxu0 %v4480
        %4494 = vmatprep.subr.mxu0 0.0
        %4495 = vmatpush1.msra.mxu0 %v4479
        %4496 = vmatprep.subr.mxu0 0.0
        %4497 = vmatpush1.msra.mxu0 %v4478
        %4498 = vmatprep.subr.mxu0 0.0
        %4499 = vmatpush1.msra.mxu0 %v4477
        %4500 = vmatprep.subr.mxu0 0.0
        %4501 = vmatpush1.msra.mxu0 %v4476
        %4502 = vmatprep.subr.mxu0 0.0
        %4503 = vmatpush1.msra.mxu0 %v4475
        %4504 = vmatprep.subr.mxu0 0.0
        %4505 = vmatpush1.msra.mxu0 %v4474
        %4506 = vmatprep.subr.mxu0 0.0
        %4507 = vmatpush1.msra.mxu0 %v4473
        %4508 = vmatprep.subr.mxu0 0.0
        %4509 = vmatpush1.msra.mxu0 %v4472
        %4510 = vmatprep.subr.mxu0 0.0
        %4511 = vmatpush1.msra.mxu0 %v4471
        %4512 = vmatprep.subr.mxu0 0.0
        %4513 = vmatpush1.msra.mxu0 %v4470
        %4514 = vmatprep.subr.mxu0 0.0
        %4515 = vmatpush1.msra.mxu0 %v4469
        %4516 = vmatprep.subr.mxu0 0.0
        %4517 = vmatpush1.msra.mxu0 %v4468
        %4518 = vmatprep.subr.mxu0 0.0
        %4519 = vmatpush1.msra.mxu0 %v4467
        %4520 = vmatprep.subr.mxu0 0.0
        %4521 = vmatpush1.msra.mxu0 %v4466
        %4522 = vmatprep.subr.mxu0 0.0
        %4523 = vmatpush2.msra.mxu0 0.0
        %4524 = vmatprep.subr.mxu0 0.0
        %4525 = vmatpush2.msra.mxu0 0.0
        %4526 = vmatprep.subr.mxu0 0.0
        %4527 = vmatpush2.msra.mxu0 0.0
        %4528 = vmatprep.subr.mxu0 0.0
        %4529 = vmatpush2.msra.mxu0 0.0
        %4530 = vmatprep.subr.mxu0 0.0
        %4531 = vmatpush2.msra.mxu0 0.0
        %4532 = vmatprep.subr.mxu0 0.0
        %4533 = vmatpush2.msra.mxu0 0.0
        %4534 = vmatprep.subr.mxu0 0.0
        %4535 = vmatpush2.msra.mxu0 0.0
        %4536 = vmatprep.subr.mxu0 0.0
        %4537 = vmatpush2.msra.mxu0 0.0
        %4538 = vmatprep.subr.mxu0 0.0
        %4539 = vmatpush2.msra.mxu0 0.0
        %4540 = vmatprep.subr.mxu0 0.0
        %4541 = vmatpush2.msra.mxu0 0.0
        %4542 = vmatprep.subr.mxu0 0.0
        %4543 = vmatpush2.msra.mxu0 0.0
        %4544 = vmatprep.subr.mxu0 0.0
        %4545 = vmatpush2.msra.mxu0 0.0
        %4546 = vmatprep.subr.mxu0 0.0
        %4547 = vmatpush2.msra.mxu0 0.0
        %4548 = vmatprep.subr.mxu0 0.0
        %4549 = vmatpush2.msra.mxu0 0.0
        %4550 = vmatprep.subr.mxu0 0.0
        %4551 = vmatpush2.msra.mxu0 0.0
        %4552 = vmatprep.subr.mxu0 0.0
        %4553 = vmatpush2.msra.mxu0 0.0
        %4554 = vmatprep.mubr.f32.mxu0 0.0
        %4555 = vmatmul.mubr.f32.gmra.mxu0 %v4464
        %v4556 = vpop.f32.mrf.mxu0
        %v4557 = vadd.f32 %v4488, %v4556
        %v4558 = vpop.f32.mrf.mxu0
        %4559 = vdwg.mxu0
        %4560 = vst [vmem:[%s531] sm:$0x3] %v4557
        %s4561 = sand.u32 %s262, 1
        %s4562 = scalar_lea.sflag [#allocation4], %s4561
        %s4563 = sand.u32 %s262, 1
        %s4564 = smul.addr %s4563, 2
        %s4565 = scalar_lea.vmem [#allocation19], %s4564
        // Predicated region
        $region101: #{tpu_custom_call.1} parent=59 // pred_check
          %p4566 = pneg %p272
        $region102: #{tpu_custom_call.1} parent=59 // pred_check_branch
          %4568 = sbr.rel (%p4566) target = $region104
        $region103: #{tpu_custom_call.1} parent=59 // pred_region
          %s4570 = ssub.s32 32, 32
          %4571 = vsyncadd %s4562, %s4570
          %s4572 = smul.addr %s34, 32
          %s4573 = scalar_lea.hbm %s10, %s4572
          %s4575 = sshll.u32 %s4565, 4
          %s4576 = int_to_ptr.vmem [resolvable:$true] %s4575
          %4578 = dma.vmem_to_hbm [thread:$0]  %s4576, 32, %s4573, %s4562
        $region104: #{tpu_custom_call.1} parent=59 // pred_fallthru
          _
      $region60: #{tpu_custom_call.1} parent=5 // pred_fallthru
        _
      %p4579 = scmp.le.s32.totalorder 2, %s29
      // Predicated region
      $region105: #{tpu_custom_call.1} parent=5 // pred_check
        %p4580 = pneg %p4579
      $region106: #{tpu_custom_call.1} parent=5 // pred_check_branch
        %4582 = sbr.rel (%p4580) target = $region108
      $region107: #{tpu_custom_call.1} parent=5 // pred_region
        %s4583 = ssub.s32 %s29, 2
        // Predicated region
        $region109: #{tpu_custom_call.1} parent=107 // pred_check
          %p4584 = pneg %p278
        $region110: #{tpu_custom_call.1} parent=107 // pred_check_branch
          %4586 = sbr.rel (%p4584) target = $region112
        $region111: #{tpu_custom_call.1} parent=107 // pred_region
          %s4587 = sand.u32 %s263, 1
          %s4588 = scalar_lea.sflag [#allocation4], %s4587
          %s4589 = sand.u32 %s263, 1
          %s4590 = smul.addr %s4589, 2
          %s4591 = scalar_lea.vmem [#allocation19], %s4590
          %4592 = dma.done %s4588, 32
        $region112: #{tpu_custom_call.1} parent=107 // pred_fallthru
          _
      $region108: #{tpu_custom_call.1} parent=5 // pred_fallthru
        _
    $region6: #{tpu_custom_call.1} parent=1 // loop_footer
      %s33 = sadd.s32 1, %s29
    $region7: #{tpu_custom_call.1} parent=1 // loop_footer_branch
      %28 = sbr.rel target = $region3
    $region8: #{tpu_custom_call.1} parent=1 // loop_exit
      _
    %4593 = vsyncpa [#allocation3], 1
    %s4594 = scalar_lea.sflag [#allocation3], 1
    %4595 = vsyncpa %s4594, 1
    %4596 = vsyncpa [#allocation6], 1
    %s4597 = scalar_lea.sflag [#allocation6], 1
    %4598 = vsyncpa %s4597, 1
    %4599 = vsyncpa [#allocation9], 1
    %4600 = vsyncpa [#allocation12], 1
    %4601 = vsyncpa [#allocation15], 1
    %4602 = vsyncpa [#allocation18], 1
    %4603 = vsyncpa [#allocation4], 1
    %s4604 = scalar_lea.sflag [#allocation4], 1
    %4605 = vsyncpa %s4604, 1

</llo_original>
